<compile_context>
chip_gen: v5e
topology: v5e:2x2
jax: 0.10.0
libtpu: 0.0.40
codegen_flags: <defaults>
</compile_context>

<pallas_src>
import jax
import jax.numpy as jnp
from jax.experimental import pallas as pl
from jax.experimental.pallas import tpu as pltpu


def _build_col(x_ref, col_ref, taps, TH, Wp, Cin):
    # Assemble the im2col scratch: column block k holds the (dy, dx) tap of the
    # (TH+2, Wp+2) halo-inclusive input window.
    for k, (dy, dx) in enumerate(taps):
        col_ref[:, k * Cin:(k + 1) * Cin] = (
            x_ref[0, 0, dy:dy + TH, dx:dx + Wp, :].reshape(TH * Wp, Cin))


def _go_up_kernel_phase(x_ref, w_ref, b_ref, o_ref, col_ref):
    # Wide-Cout path: one K=4*Cin dot per phase, lane-dense Cout_p output.
    #   x_ref  : (1, 1, TH+2, Wp+2, Cin)  bf16 row tile (incl. replicate halo)
    #   w_ref  : (4, 4*Cin, Co)           bf16 phase filters (K = tap-major)
    #   b_ref  : (1, Co)                  f32
    #   o_ref  : (1, 4, TH, Wp, Co)       f32  (phase = 2*py + px)
    #   col_ref: (TH*Wp, 4*Cin)           bf16 im2col scratch
    _, _, TH, Wp, Co = o_ref.shape
    Cin = x_ref.shape[-1]
    bias = b_ref[...]                       # read once; add fuses with the ReLU pass
    for py in range(2):
        for px in range(2):
            taps = [(py + a, px + b) for a in range(2) for b in range(2)]
            _build_col(x_ref, col_ref, taps, TH, Wp, Cin)
            acc = jnp.dot(col_ref[...], w_ref[2 * py + px],
                          preferred_element_type=jnp.float32)
            o_ref[0, 2 * py + px] = (jnp.maximum(acc + bias, 0.0)
                                     .reshape(TH, Wp, Co).astype(o_ref.dtype))


def _go_up_kernel_packed(x_ref, w_ref, b_ref, o_ref, col_ref):
    # Small-Cout path: all 4 phases packed along the lane axis (stride 32),
    # computed with a single K=9*Cin dot over the full 3x3 tap window.
    #   x_ref  : (1, 1, TH+2, Wp+2, Cin)  bf16
    #   w_ref  : (9*Cin, 128)             bf16
    #   b_ref  : (1, 128)                 f32
    #   o_ref  : (1, TH, Wp, 128)         f32
    #   col_ref: (TH*Wp, 9*Cin)           bf16 im2col scratch
    _, TH, Wp, L = o_ref.shape
    Cin = x_ref.shape[-1]
    taps = [(dy, dx) for dy in range(3) for dx in range(3)]
    _build_col(x_ref, col_ref, taps, TH, Wp, Cin)
    acc = jnp.dot(col_ref[...], w_ref[...], preferred_element_type=jnp.float32)
    o_ref[0] = (jnp.maximum(acc + b_ref[...], 0.0)
                .reshape(TH, Wp, L).astype(o_ref.dtype))


def _tile_plan(H, Wp, cin, k_col, out_lanes, w_bytes, n_batch, tile_h=None):
    """Row-tile height + matching scoped-VMEM limit for the current chip."""
    try:
        vmem_cap = int(pltpu.get_tpu_info().vmem_capacity_bytes)
    except Exception:
        vmem_cap = 64 << 20                       # assume the smallest (v7x per-TC)
    budget = min(vmem_cap // 2, 96 << 20)         # headroom for Mosaic internals

    def footprint(th):
        return (2 * (th + 2) * (Wp + 2) * cin * 2   # double-buffered input blk (bf16)
                + 2 * th * Wp * out_lanes * 4       # double-buffered output blk (f32)
                + th * Wp * k_col * 2               # im2col scratch (bf16)
                + 2 * w_bytes)                      # weights + bias (+ 2nd buffer)

    if tile_h is None:
        h_cap = -(-H // 8) * 8
        tile_h = 8
        while tile_h + 8 <= h_cap and footprint(tile_h + 8) <= budget:
            tile_h += 8
        # v7x has 2 TensorCores per chip: keep >= 2 'parallel' grid steps alive.
        if n_batch < 2 and H > 8:
            tile_h = min(tile_h, max(8, (-(-H // 2) + 7) // 8 * 8))
    vmem_limit = min(int(vmem_cap * 0.9), 110 << 20)
    return int(tile_h), int(vmem_limit)


def go_up_nearest(x_nchw, weight_oihw, bias, *, tile_h=None):
    """Forward of goUp_nearest.

    x_nchw      : (N, Cin, H, W)     float32
    weight_oihw : (Cout, Cin, 3, 3)  float32 (PyTorch Conv2d layout)
    bias        : (Cout,)            float32
    returns     : (N, Cout, 2H, 2W)  float32
    """
    N, Cin, H, W = x_nchw.shape
    Cout = weight_oihw.shape[0]

    # ---- fold the x2 nearest upsample into 4 phase (sub-pixel) 2x2 filters ----
    # Output pixel (2r+py, 2c+px) only sees x rows r+py-1+a, cols c+px-1+b
    # (a, b in {0,1}, replicate-clamped); collapsed 3x3 taps are summed.
    w = jnp.transpose(weight_oihw, (2, 3, 1, 0)).astype(jnp.float32)  # (3,3,Cin,Cout)
    wp = jnp.zeros((4, 4, Cin, Cout), jnp.float32)
    for py in range(2):
        for px in range(2):
            for dy in range(3):
                a = (py + dy - 1) // 2 - py + 1
                for dx in range(3):
                    b = (px + dx - 1) // 2 - px + 1
                    wp = wp.at[2 * py + px, 2 * a + b].add(w[dy, dx])

    packed = Cout <= 32          # phase-packed lanes: big writeback win for small Cout
    if packed:
        CQ = 32                  # per-phase lane block (4 * 32 = 128 dense lanes)
        wk = jnp.zeros((3, 3, Cin, 128), jnp.float32)
        bk = jnp.zeros((1, 128), jnp.float32)
        for py in range(2):
            for px in range(2):
                p = 2 * py + px
                bk = bk.at[0, p * CQ:p * CQ + Cout].set(bias.astype(jnp.float32))
                for a in range(2):
                    for b in range(2):
                        wk = wk.at[py + a, px + b, :,
                                   p * CQ:p * CQ + Cout].set(wp[p, 2 * a + b])
        wk = wk.reshape(9 * Cin, 128).astype(jnp.bfloat16)
        k_col, out_lanes = 9 * Cin, 128
    else:
        Cout_p = -(-Cout // 128) * 128                      # lane-dense output channels
        wk = jnp.zeros((4, 4, Cin, Cout_p), jnp.float32).at[..., :Cout].set(wp)
        wk = wk.reshape(4, 4 * Cin, Cout_p).astype(jnp.bfloat16)
        bk = jnp.zeros((1, Cout_p), jnp.float32).at[0, :Cout].set(
            bias.astype(jnp.float32))
        k_col, out_lanes = 4 * Cin, 4 * Cout_p

    w_bytes = int(wk.size) * 2 + int(bk.size) * 4

    # ---- layout glue (plain JAX): NHWC bf16, replicate pads, row tiling ----
    x = jnp.transpose(x_nchw, (0, 2, 3, 1)).astype(jnp.bfloat16)   # (N, H, W, Cin)
    Wp = -(-W // 16) * 16                                          # bf16 sublane packing
    if Wp > W:
        x = jnp.pad(x, ((0, 0), (0, 0), (0, Wp - W), (0, 0)), mode="edge")

    tile_h, vmem_limit = _tile_plan(H, Wp, Cin, k_col, out_lanes, w_bytes, N, tile_h)
    Hp = -(-H // tile_h) * tile_h
    if Hp > H:
        x = jnp.pad(x, ((0, 0), (0, Hp - H), (0, 0), (0, 0)), mode="edge")
    xm = jnp.pad(x, ((0, 0), (0, 0), (1, 1), (0, 0)), mode="edge")  # column halo
    T = Hp // tile_h
    # Halo-inclusive row tiles: removes the per-step window copy in the kernel.
    row_idx = jnp.clip(jnp.arange(T)[:, None] * tile_h
                       + jnp.arange(tile_h + 2)[None, :] - 1, 0, Hp - 1)
    x_t = xm[:, row_idx]                                            # (N,T,TH+2,Wp+2,Cin)

    # ---- pallas_call -------------------------------------------------------
    if packed:
        kernel = _go_up_kernel_packed
        out_shape = jax.ShapeDtypeStruct((N, Hp, Wp, 128), jnp.float32)
        out_spec = pl.BlockSpec((1, tile_h, Wp, 128), lambda n, t: (n, t, 0, 0))
        flops = 2 * N * Hp * Wp * 9 * Cin * 128
    else:
        kernel = _go_up_kernel_phase
        out_shape = jax.ShapeDtypeStruct((N, 4, Hp, Wp, Cout_p), jnp.float32)
        out_spec = pl.BlockSpec((1, 4, tile_h, Wp, Cout_p),
                                lambda n, t: (n, 0, t, 0, 0))
        flops = 2 * N * Hp * Wp * 16 * Cin * Cout_p

    bytes_accessed = (int(x_t.size) * 2 + w_bytes + N * Hp * Wp * out_lanes * 4)

    out = pl.pallas_call(
        kernel,
        out_shape=out_shape,
        grid_spec=pltpu.PrefetchScalarGridSpec(
            num_scalar_prefetch=0,
            grid=(N, T),
            in_specs=[
                pl.BlockSpec((1, 1, tile_h + 2, Wp + 2, Cin),
                             lambda n, t: (n, t, 0, 0, 0)),
                pl.BlockSpec(wk.shape, lambda n, t: (0,) * wk.ndim),
                pl.BlockSpec(bk.shape, lambda n, t: (0, 0)),
            ],
            out_specs=out_spec,
            scratch_shapes=[pltpu.VMEM((tile_h * Wp, k_col), jnp.bfloat16)],
        ),
        compiler_params=pltpu.CompilerParams(
            dimension_semantics=("parallel", "parallel"),
            vmem_limit_bytes=vmem_limit),
        cost_estimate=pl.CostEstimate(flops=int(flops), transcendentals=0,
                                      bytes_accessed=int(bytes_accessed)),
    )(x_t, wk, bk)

    # ---- un-interleave phases, drop padding, back to NCHW -------------------
    if packed:
        o = out[:, :H, :W, :].reshape(N, H, W, 4, 32)[..., :Cout]   # (N,H,W,ph,Cout)
        o = o.reshape(N, H, W, 2, 2, Cout)                          # (...,py,px,Cout)
        y = jnp.transpose(o, (0, 5, 1, 3, 2, 4))                    # (N,Cout,H,py,W,px)
    else:
        o = out[:, :, :H, :W, :Cout]                                # (N,4,H,W,Cout)
        o = o.reshape(N, 2, 2, H, W, Cout)                          # (N,py,px,H,W,Cout)
        y = jnp.transpose(o, (0, 5, 3, 1, 4, 2))                    # (N,Cout,H,py,W,px)
    return y.reshape(N, Cout, 2 * H, 2 * W)


def _init_params(key, dims_in, dims_out):
    # Deterministic init mimicking PyTorch Conv2d default (uniform, fan_in).
    kw, kb = jax.random.split(key)
    fan_in = dims_in * 3 * 3
    bound = 1.0 / jnp.sqrt(fan_in)
    weight = jax.random.uniform(kw, (dims_out, dims_in, 3, 3),
                                jnp.float32, -bound, bound)
    bias = jax.random.uniform(kb, (dims_out,), jnp.float32, -bound, bound)
    return weight, bias


def _reference(x_nchw, weight_oihw, bias):
    # Direct transcription of the PyTorch module, in plain JAX (f32).
    u = jnp.repeat(jnp.repeat(x_nchw, 2, axis=2), 2, axis=3)
    up = jnp.pad(u, ((0, 0), (0, 0), (1, 1), (1, 1)), mode="edge")
    y = jax.lax.conv_general_dilated(
        up, weight_oihw, window_strides=(1, 1), padding="VALID",
        dimension_numbers=("NCHW", "OIHW", "NCHW"),
        precision=jax.lax.Precision.HIGHEST)
    return jnp.maximum(y + bias[None, :, None, None], 0.0)


if __name__ == "__main__":
    key = jax.random.PRNGKey(0)
    kx, kp = jax.random.split(key)

    # Config 1: small Cout -> phase-packed lane layout (one K=9*Cin dot).
    N, Cin, Cout, H, W = 2, 4, 8, 16, 16
    x = jax.random.normal(kx, (N, Cin, H, W), jnp.float32)
    weight, bias = _init_params(kp, Cin, Cout)
    y = go_up_nearest(x, weight, bias)
    jax.block_until_ready(y)
    assert y.shape == (N, Cout, 2 * H, 2 * W), y.shape
    ref = _reference(x, weight, bias)
    err = float(jnp.max(jnp.abs(y - ref)))
    assert err < 5e-2, f"packed path max abs error {err}"   # bf16 inputs -> looser tol

    # Config 2: wide Cout -> per-phase lane-dense layout (K=4*Cin dots),
    # also exercises N=1 row-tile split for v7x's 2 TensorCores.
    k2x, k2p = jax.random.split(jax.random.PRNGKey(1))
    N2, Cin2, Cout2, H2, W2 = 1, 4, 48, 16, 16
    x2 = jax.random.normal(k2x, (N2, Cin2, H2, W2), jnp.float32)
    w2, b2 = _init_params(k2p, Cin2, Cout2)
    y2 = go_up_nearest(x2, w2, b2)
    jax.block_until_ready(y2)
    assert y2.shape == (N2, Cout2, 2 * H2, 2 * W2), y2.shape
    ref2 = _reference(x2, w2, b2)
    err2 = float(jnp.max(jnp.abs(y2 - ref2)))
    assert err2 < 5e-2, f"phase path max abs error {err2}"

    print("KERNEL_OK")
</pallas_src>

<mosaic_0001>
module attributes {stable_mosaic.version = 11 : i64} {
  func.func @_go_up_kernel_packed(%arg0: i32, %arg1: i32, %arg2: memref<1x1x18x18x4xbf16, #tpu.memory_space<vmem>>, %arg3: memref<36x128xbf16, #tpu.memory_space<vmem>>, %arg4: memref<1x128xf32, #tpu.memory_space<vmem>>, %arg5: memref<1x16x16x128xf32, #tpu.memory_space<vmem>>, %arg6: memref<256x36xbf16, #tpu.memory_space<vmem>>) attributes {dimension_semantics = [#tpu.dimension_semantics<parallel>, #tpu.dimension_semantics<parallel>], iteration_bounds = array<i64: 2, 1>, scalar_prefetch = 0 : i64, scratch_operands = 1 : i64, tpu.core_type = #tpu.core_type<tc>, window_params = [{transform_indices = @transform_0, window_bounds = array<i64: 1, 1, 18, 18, 4>}, {pipeline_mode = #tpu.pipeline_mode<synchronous>, transform_indices = @transform_1, window_bounds = array<i64: 36, 128>}, {pipeline_mode = #tpu.pipeline_mode<synchronous>, transform_indices = @transform_2, window_bounds = array<i64: 1, 128>}, {transform_indices = @transform_3, window_bounds = array<i64: 1, 16, 16, 128>}]} {
    %c0 = arith.constant 0 : index
    %c0_0 = arith.constant 0 : index
    %c0_1 = arith.constant 0 : index
    %c0_2 = arith.constant 0 : index
    %c0_3 = arith.constant 0 : index
    %0 = vector.load %arg2[%c0, %c0_0, %c0_1, %c0_2, %c0_3] : memref<1x1x18x18x4xbf16, #tpu.memory_space<vmem>>, vector<1x1x16x16x4xbf16>
    %1 = vector.shape_cast %0 : vector<1x1x16x16x4xbf16> to vector<16x16x4xbf16>
    %2 = vector.shape_cast %1 : vector<16x16x4xbf16> to vector<256x4xbf16>
    %c0_4 = arith.constant 0 : index
    %c0_5 = arith.constant 0 : index
    %3 = vector.load %arg6[%c0_4, %c0_5] : memref<256x36xbf16, #tpu.memory_space<vmem>>, vector<256x4xbf16>
    tpu.vector_store %arg6[%c0_4, %c0_5], %2 {strides = array<i32>} : memref<256x36xbf16, #tpu.memory_space<vmem>>, vector<256x4xbf16>,
    %c0_6 = arith.constant 0 : index
    %c0_7 = arith.constant 0 : index
    %c0_8 = arith.constant 0 : index
    %c1 = arith.constant 1 : index
    %c0_9 = arith.constant 0 : index
    %4 = vector.load %arg2[%c0_6, %c0_7, %c0_8, %c1, %c0_9] : memref<1x1x18x18x4xbf16, #tpu.memory_space<vmem>>, vector<1x1x16x16x4xbf16>
    %5 = vector.shape_cast %4 : vector<1x1x16x16x4xbf16> to vector<16x16x4xbf16>
    %6 = vector.shape_cast %5 : vector<16x16x4xbf16> to vector<256x4xbf16>
    %c0_10 = arith.constant 0 : index
    %c4 = arith.constant 4 : index
    %7 = vector.load %arg6[%c0_10, %c4] : memref<256x36xbf16, #tpu.memory_space<vmem>>, vector<256x4xbf16>
    tpu.vector_store %arg6[%c0_10, %c4], %6 {strides = array<i32>} : memref<256x36xbf16, #tpu.memory_space<vmem>>, vector<256x4xbf16>,
    %c0_11 = arith.constant 0 : index
    %c0_12 = arith.constant 0 : index
    %c0_13 = arith.constant 0 : index
    %c2 = arith.constant 2 : index
    %c0_14 = arith.constant 0 : index
    %8 = vector.load %arg2[%c0_11, %c0_12, %c0_13, %c2, %c0_14] : memref<1x1x18x18x4xbf16, #tpu.memory_space<vmem>>, vector<1x1x16x16x4xbf16>
    %9 = vector.shape_cast %8 : vector<1x1x16x16x4xbf16> to vector<16x16x4xbf16>
    %10 = vector.shape_cast %9 : vector<16x16x4xbf16> to vector<256x4xbf16>
    %c0_15 = arith.constant 0 : index
    %c8 = arith.constant 8 : index
    %11 = vector.load %arg6[%c0_15, %c8] : memref<256x36xbf16, #tpu.memory_space<vmem>>, vector<256x4xbf16>
    tpu.vector_store %arg6[%c0_15, %c8], %10 {strides = array<i32>} : memref<256x36xbf16, #tpu.memory_space<vmem>>, vector<256x4xbf16>,
    %c0_16 = arith.constant 0 : index
    %c0_17 = arith.constant 0 : index
    %c1_18 = arith.constant 1 : index
    %c0_19 = arith.constant 0 : index
    %c0_20 = arith.constant 0 : index
    %12 = vector.load %arg2[%c0_16, %c0_17, %c1_18, %c0_19, %c0_20] : memref<1x1x18x18x4xbf16, #tpu.memory_space<vmem>>, vector<1x1x16x16x4xbf16>
    %13 = vector.shape_cast %12 : vector<1x1x16x16x4xbf16> to vector<16x16x4xbf16>
    %14 = vector.shape_cast %13 : vector<16x16x4xbf16> to vector<256x4xbf16>
    %c0_21 = arith.constant 0 : index
    %c12 = arith.constant 12 : index
    %15 = vector.load %arg6[%c0_21, %c12] : memref<256x36xbf16, #tpu.memory_space<vmem>>, vector<256x4xbf16>
    tpu.vector_store %arg6[%c0_21, %c12], %14 {strides = array<i32>} : memref<256x36xbf16, #tpu.memory_space<vmem>>, vector<256x4xbf16>,
    %c0_22 = arith.constant 0 : index
    %c0_23 = arith.constant 0 : index
    %c1_24 = arith.constant 1 : index
    %c1_25 = arith.constant 1 : index
    %c0_26 = arith.constant 0 : index
    %16 = vector.load %arg2[%c0_22, %c0_23, %c1_24, %c1_25, %c0_26] : memref<1x1x18x18x4xbf16, #tpu.memory_space<vmem>>, vector<1x1x16x16x4xbf16>
    %17 = vector.shape_cast %16 : vector<1x1x16x16x4xbf16> to vector<16x16x4xbf16>
    %18 = vector.shape_cast %17 : vector<16x16x4xbf16> to vector<256x4xbf16>
    %c0_27 = arith.constant 0 : index
    %c16 = arith.constant 16 : index
    %19 = vector.load %arg6[%c0_27, %c16] : memref<256x36xbf16, #tpu.memory_space<vmem>>, vector<256x4xbf16>
    tpu.vector_store %arg6[%c0_27, %c16], %18 {strides = array<i32>} : memref<256x36xbf16, #tpu.memory_space<vmem>>, vector<256x4xbf16>,
    %c0_28 = arith.constant 0 : index
    %c0_29 = arith.constant 0 : index
    %c1_30 = arith.constant 1 : index
    %c2_31 = arith.constant 2 : index
    %c0_32 = arith.constant 0 : index
    %20 = vector.load %arg2[%c0_28, %c0_29, %c1_30, %c2_31, %c0_32] : memref<1x1x18x18x4xbf16, #tpu.memory_space<vmem>>, vector<1x1x16x16x4xbf16>
    %21 = vector.shape_cast %20 : vector<1x1x16x16x4xbf16> to vector<16x16x4xbf16>
    %22 = vector.shape_cast %21 : vector<16x16x4xbf16> to vector<256x4xbf16>
    %c0_33 = arith.constant 0 : index
    %c20 = arith.constant 20 : index
    %23 = vector.load %arg6[%c0_33, %c20] : memref<256x36xbf16, #tpu.memory_space<vmem>>, vector<256x4xbf16>
    tpu.vector_store %arg6[%c0_33, %c20], %22 {strides = array<i32>} : memref<256x36xbf16, #tpu.memory_space<vmem>>, vector<256x4xbf16>,
    %c0_34 = arith.constant 0 : index
    %c0_35 = arith.constant 0 : index
    %c2_36 = arith.constant 2 : index
    %c0_37 = arith.constant 0 : index
    %c0_38 = arith.constant 0 : index
    %24 = vector.load %arg2[%c0_34, %c0_35, %c2_36, %c0_37, %c0_38] : memref<1x1x18x18x4xbf16, #tpu.memory_space<vmem>>, vector<1x1x16x16x4xbf16>
    %25 = vector.shape_cast %24 : vector<1x1x16x16x4xbf16> to vector<16x16x4xbf16>
    %26 = vector.shape_cast %25 : vector<16x16x4xbf16> to vector<256x4xbf16>
    %c0_39 = arith.constant 0 : index
    %c24 = arith.constant 24 : index
    %27 = vector.load %arg6[%c0_39, %c24] : memref<256x36xbf16, #tpu.memory_space<vmem>>, vector<256x4xbf16>
    tpu.vector_store %arg6[%c0_39, %c24], %26 {strides = array<i32>} : memref<256x36xbf16, #tpu.memory_space<vmem>>, vector<256x4xbf16>,
    %c0_40 = arith.constant 0 : index
    %c0_41 = arith.constant 0 : index
    %c2_42 = arith.constant 2 : index
    %c1_43 = arith.constant 1 : index
    %c0_44 = arith.constant 0 : index
    %28 = vector.load %arg2[%c0_40, %c0_41, %c2_42, %c1_43, %c0_44] : memref<1x1x18x18x4xbf16, #tpu.memory_space<vmem>>, vector<1x1x16x16x4xbf16>
    %29 = vector.shape_cast %28 : vector<1x1x16x16x4xbf16> to vector<16x16x4xbf16>
    %30 = vector.shape_cast %29 : vector<16x16x4xbf16> to vector<256x4xbf16>
    %c0_45 = arith.constant 0 : index
    %c28 = arith.constant 28 : index
    %31 = vector.load %arg6[%c0_45, %c28] : memref<256x36xbf16, #tpu.memory_space<vmem>>, vector<256x4xbf16>
    tpu.vector_store %arg6[%c0_45, %c28], %30 {strides = array<i32>} : memref<256x36xbf16, #tpu.memory_space<vmem>>, vector<256x4xbf16>,
    %c0_46 = arith.constant 0 : index
    %c0_47 = arith.constant 0 : index
    %c2_48 = arith.constant 2 : index
    %c2_49 = arith.constant 2 : index
    %c0_50 = arith.constant 0 : index
    %32 = vector.load %arg2[%c0_46, %c0_47, %c2_48, %c2_49, %c0_50] : memref<1x1x18x18x4xbf16, #tpu.memory_space<vmem>>, vector<1x1x16x16x4xbf16>
    %33 = vector.shape_cast %32 : vector<1x1x16x16x4xbf16> to vector<16x16x4xbf16>
    %34 = vector.shape_cast %33 : vector<16x16x4xbf16> to vector<256x4xbf16>
    %c0_51 = arith.constant 0 : index
    %c32 = arith.constant 32 : index
    %35 = vector.load %arg6[%c0_51, %c32] : memref<256x36xbf16, #tpu.memory_space<vmem>>, vector<256x4xbf16>
    tpu.vector_store %arg6[%c0_51, %c32], %34 {strides = array<i32>} : memref<256x36xbf16, #tpu.memory_space<vmem>>, vector<256x4xbf16>,
    %c0_52 = arith.constant 0 : index
    %c0_53 = arith.constant 0 : index
    %36 = vector.load %arg6[%c0_52, %c0_53] : memref<256x36xbf16, #tpu.memory_space<vmem>>, vector<256x36xbf16>
    %c0_54 = arith.constant 0 : index
    %c0_55 = arith.constant 0 : index
    %37 = vector.load %arg3[%c0_54, %c0_55] : memref<36x128xbf16, #tpu.memory_space<vmem>>, vector<36x128xbf16>
    %cst = arith.constant dense<0.000000e+00> : vector<256x128xf32>
    %38 = tpu.matmul %36, %37, %cst {dimension_numbers = #tpu.dot_dimension_numbers<[1], [0], [0], [1], [0, 0, 1, 1], [], []>} : vector<256x36xbf16>, vector<36x128xbf16>, vector<256x128xf32> -> vector<256x128xf32>
    %c0_56 = arith.constant 0 : index
    %c0_57 = arith.constant 0 : index
    %39 = vector.load %arg4[%c0_56, %c0_57] : memref<1x128xf32, #tpu.memory_space<vmem>>, vector<1x128xf32>
    %40 = vector.broadcast %39 : vector<1x128xf32> to vector<256x128xf32>
    %41 = arith.addf %38, %40 : vector<256x128xf32>
    %cst_58 = arith.constant 0.000000e+00 : f32
    %42 = vector.broadcast %cst_58 : f32 to vector<256x128xf32>
    %43 = arith.maximumf %41, %42 : vector<256x128xf32>
    %44 = vector.shape_cast %43 : vector<256x128xf32> to vector<16x16x128xf32>
    %c0_59 = arith.constant 0 : index
    %c0_60 = arith.constant 0 : index
    %c0_61 = arith.constant 0 : index
    %c0_62 = arith.constant 0 : index
    %45 = vector.load %arg5[%c0_59, %c0_60, %c0_61, %c0_62] : memref<1x16x16x128xf32, #tpu.memory_space<vmem>>, vector<1x16x16x128xf32>
    %46 = vector.shape_cast %45 : vector<1x16x16x128xf32> to vector<16x16x128xf32>
    %47 = vector.shape_cast %44 : vector<16x16x128xf32> to vector<1x16x16x128xf32>
    tpu.vector_store %arg5[%c0_59, %c0_60, %c0_61, %c0_62], %47 {strides = array<i32>} : memref<1x16x16x128xf32, #tpu.memory_space<vmem>>, vector<1x16x16x128xf32>,
    return
  }
  func.func @transform_0(%arg0: i32, %arg1: i32) -> (i32, i32, i32, i32, i32) {
    %c0_i32 = arith.constant 0 : i32
    %c0_i32_0 = arith.constant 0 : i32
    %c0_i32_1 = arith.constant 0 : i32
    %c0_i32_2 = arith.constant 0 : i32
    return %arg0, %arg1, %c0_i32, %c0_i32_0, %c0_i32_1 : i32, i32, i32, i32, i32
  }
  func.func @transform_1(%arg0: i32, %arg1: i32) -> (i32, i32) {
    %c0_i32 = arith.constant 0 : i32
    %c0_i32_0 = arith.constant 0 : i32
    %c0_i32_1 = arith.constant 0 : i32
    return %c0_i32, %c0_i32_0 : i32, i32
  }
  func.func @transform_2(%arg0: i32, %arg1: i32) -> (i32, i32) {
    %c0_i32 = arith.constant 0 : i32
    %c0_i32_0 = arith.constant 0 : i32
    %c0_i32_1 = arith.constant 0 : i32
    return %c0_i32, %c0_i32_0 : i32, i32
  }
  func.func @transform_3(%arg0: i32, %arg1: i32) -> (i32, i32, i32, i32) {
    %c0_i32 = arith.constant 0 : i32
    %c0_i32_0 = arith.constant 0 : i32
    %c0_i32_1 = arith.constant 0 : i32
    return %arg0, %arg1, %c0_i32, %c0_i32_0 : i32, i32, i32, i32
  }
}

</mosaic_0001>

<llo_original>
// kernel: tpu_custom_call.1
$region0: #{tpu_custom_call.1}
  #allocation0 [shape = 'u32[]', space=smem, size = 0x4, offset = 0x4, fixed_abs, tag = 'smem constant byte address 0x4 - core index']
  #allocation1 [shape = 'u32[72,128]{1,0:T(1,128)}', space=vmem, size = 0x9000, scoped, tag = 'internal scratch']
  #allocation2 [shape = 'bf16[256,36]{1,0:T(8,128)(2,1)}', space=vmem, size = 0x10000, scoped, tag = 'scratch operand']
  %s0 = inlined_call_operand.vmem [shape: bf16[2,1,18,18,4], index: 0, kind: input, shape index: {}]
  %s1 = inlined_call_operand.vmem [shape: bf16[36,128], index: 1, kind: input, shape index: {}]
  %s2 = inlined_call_operand.vmem [shape: f32[1,128], index: 2, kind: input, shape index: {}]
  %s3 = inlined_call_operand.hbm [shape: f32[2,16,16,128], index: 3, kind: output, shape index: {}]
  %s4 = sld [smem:[#allocation0]]
  $region45: #{tpu_custom_call.1} parent=0
    _
  %s6 = ssub.s32 1, %s4
  %s7 = scalar_select 0, %s6, %s4
  $region1: #{tpu_custom_call.1} parent=0
    #allocation3 [shape = 'u8[262144]{0}', space=vmem, size = 0x40000, scoped, tag = 'output window, operand 0']
    #allocation4 [shape = 's32[2]{0}', space=sflag, size = 0x8, scoped, tag = 'scoped memory for tpu_custom_call.1']
    %8 = vsyncpa [#allocation4], 0
    %s9 = scalar_lea.sflag [#allocation4], 1
    %10 = vsyncpa %s9, 0
    loop: start=0, step=1, limit=4
    $region2: #{tpu_custom_call.1} parent=1 // loop_pre_header
      _
    $region3: #{tpu_custom_call.1} parent=1 // loop_header
      %s12 = sphi 0, %s16
      %p13 = scmp.ge.s32.totalorder %s12, 4
      %s19 = sphi 0, %s31
      %s20 = sphi 0, %s27
      %s21 = sphi 0, %s19
      %s22 = sphi 0, %s20
      %s23 = sphi 0, %s21
      %s24 = sphi 0, %s22
      %s36 = sphi 0, %s38
      %s39 = sphi 0, %s36
      %s40 = sphi 0, %s39
      %s56 = sphi 0, %s40
      %s60 = sphi 0, %s60
      %s62 = sphi 0, %s60
      %s63 = sphi 0, %s62
      %s77 = sphi 0, %s63
      %s81 = sphi 0, %s81
      %s83 = sphi 0, %s81
      %s84 = sphi 0, %s83
      %s98 = sphi 0, %s84
      %s106 = sphi 0, %s108
      %s109 = sphi 0, %s106
      %s110 = sphi 0, %s109
      %s126 = sphi 0, %s110
    $region4: #{tpu_custom_call.1} parent=1 // loop_header_branch
      %15 = sbr.rel (%p13) target = $region8
    $region5: #{tpu_custom_call.1} parent=1 // loop_body
      %s17 = ssub.s32 %s12, 1
      %s18 = ssub.s32 %s12, 2
      %s25 = sadd.s32 1, %s20
      %p26 = scmp.ge.s32.totalorder %s25, 1
      %s27 = scalar_select %p26, 0, %s25
      %s28 = sadd.s32 1, %s19
      %s29 = scalar_select %p26, %s28, %s19
      %p30 = scmp.ge.s32.totalorder %s29, 2
      %s31 = scalar_select %p30, 0, %s29
      %s32 = ssub.s32 %s19, %s31
      %s33 = ssub.s32 %s20, %s27
      %s34 = sor.u32 %s32, %s33
      %p35 = scmp.eq.s32.totalorder %s34, 0
      %s37 = sadd.s32 %s36, 1
      %s38 = scalar_select %p35, %s36, %s37
      %p41 = pneg %p35
      %p42 = scmp.eq.s32.totalorder %s12, 1
      %p43 = por %p41, %p42
      %p44 = scmp.ne.s32.totalorder %s36, %s39
      %p45 = scmp.eq.s32.totalorder %s12, 0
      %p46 = por %p44, %p45
      %p47 = scmp.ne.s32.totalorder %s36, %s39
      %p48 = scmp.eq.s32.totalorder %s17, 1
      %p49 = por %p47, %p48
      %p50 = scmp.ne.s32.totalorder %s39, %s40
      %p51 = scmp.eq.s32.totalorder %s17, 0
      %p52 = por %p50, %p51
      %p53 = scmp.ne.s32.totalorder %s39, %s40
      %p54 = scmp.eq.s32.totalorder %s18, 1
      %p55 = por %p53, %p54
      %p57 = scmp.ne.s32.totalorder %s40, %s56
      %p58 = scmp.eq.s32.totalorder %s18, 0
      %p59 = por %p57, %p58
      %s61 = sadd.s32 %s60, 1
      %p64 = scmp.eq.s32.totalorder %s12, 1
      %p65 = scmp.ne.s32.totalorder %s60, %s62
      %p66 = scmp.eq.s32.totalorder %s12, 0
      %p67 = por %p65, %p66
      %p68 = scmp.ne.s32.totalorder %s60, %s62
      %p69 = scmp.eq.s32.totalorder %s17, 1
      %p70 = por %p68, %p69
      %p71 = scmp.ne.s32.totalorder %s62, %s63
      %p72 = scmp.eq.s32.totalorder %s17, 0
      %p73 = por %p71, %p72
      %p74 = scmp.ne.s32.totalorder %s62, %s63
      %p75 = scmp.eq.s32.totalorder %s18, 1
      %p76 = por %p74, %p75
      %p78 = scmp.ne.s32.totalorder %s63, %s77
      %p79 = scmp.eq.s32.totalorder %s18, 0
      %p80 = por %p78, %p79
      %s82 = sadd.s32 %s81, 1
      %p85 = scmp.eq.s32.totalorder %s12, 1
      %p86 = scmp.ne.s32.totalorder %s81, %s83
      %p87 = scmp.eq.s32.totalorder %s12, 0
      %p88 = por %p86, %p87
      %p89 = scmp.ne.s32.totalorder %s81, %s83
      %p90 = scmp.eq.s32.totalorder %s17, 1
      %p91 = por %p89, %p90
      %p92 = scmp.ne.s32.totalorder %s83, %s84
      %p93 = scmp.eq.s32.totalorder %s17, 0
      %p94 = por %p92, %p93
      %p95 = scmp.ne.s32.totalorder %s83, %s84
      %p96 = scmp.eq.s32.totalorder %s18, 1
      %p97 = por %p95, %p96
      %p99 = scmp.ne.s32.totalorder %s84, %s98
      %p100 = scmp.eq.s32.totalorder %s18, 0
      %p101 = por %p99, %p100
      %s102 = ssub.s32 %s19, %s31
      %s103 = ssub.s32 %s20, %s27
      %s104 = sor.u32 %s102, %s103
      %p105 = scmp.eq.s32.totalorder %s104, 0
      %s107 = sadd.s32 %s106, 1
      %s108 = scalar_select %p105, %s106, %s107
      %p111 = pneg %p105
      %p112 = scmp.eq.s32.totalorder %s12, 1
      %p113 = por %p111, %p112
      %p114 = scmp.ne.s32.totalorder %s106, %s109
      %p115 = scmp.eq.s32.totalorder %s12, 0
      %p116 = por %p114, %p115
      %p117 = scmp.ne.s32.totalorder %s106, %s109
      %p118 = scmp.eq.s32.totalorder %s17, 1
      %p119 = por %p117, %p118
      %p120 = scmp.ne.s32.totalorder %s109, %s110
      %p121 = scmp.eq.s32.totalorder %s17, 0
      %p122 = por %p120, %p121
      %p123 = scmp.ne.s32.totalorder %s109, %s110
      %p124 = scmp.eq.s32.totalorder %s18, 1
      %p125 = por %p123, %p124
      %p127 = scmp.ne.s32.totalorder %s110, %s126
      %p128 = scmp.eq.s32.totalorder %s18, 0
      %p129 = por %p127, %p128
      %p130 = scmp.le.s32.totalorder 1, %s12
      %p131 = scmp.lt.s32.totalorder %s12, 3
      %p132 = pnand %p130, %p131
      %p133 = pneg %p132
      // Predicated region
      $region9: #{tpu_custom_call.1} parent=5 // pred_check
        _
      $region10: #{tpu_custom_call.1} parent=5 // pred_check_branch
        %135 = sbr.rel (%p132) target = $region12
      $region11: #{tpu_custom_call.1} parent=5 // pred_region
        %s136 = ssub.s32 %s12, 1
        // Predicated region
        $region13: #{tpu_custom_call.1} parent=11 // pred_check
          %p137 = pneg %p73
        $region14: #{tpu_custom_call.1} parent=11 // pred_check_branch
          %139 = sbr.rel (%p137) target = $region16
        $region15: #{tpu_custom_call.1} parent=11 // pred_region
          _
        $region16: #{tpu_custom_call.1} parent=11 // pred_fallthru
          _
        // Predicated region
        $region17: #{tpu_custom_call.1} parent=11 // pred_check
          %p140 = pneg %p94
        $region18: #{tpu_custom_call.1} parent=11 // pred_check_branch
          %142 = sbr.rel (%p140) target = $region20
        $region19: #{tpu_custom_call.1} parent=11 // pred_region
          _
        $region20: #{tpu_custom_call.1} parent=11 // pred_fallthru
          _
      $region12: #{tpu_custom_call.1} parent=5 // pred_fallthru
        _
      %p143 = scmp.lt.s32.totalorder %s12, 2
      // Predicated region
      $region21: #{tpu_custom_call.1} parent=5 // pred_check
        %p144 = pneg %p143
      $region22: #{tpu_custom_call.1} parent=5 // pred_check_branch
        %146 = sbr.rel (%p144) target = $region24
      $region23: #{tpu_custom_call.1} parent=5 // pred_region
        // Predicated region
        $region25: #{tpu_custom_call.1} parent=23 // pred_check
          %p147 = pneg %p46
        $region26: #{tpu_custom_call.1} parent=23 // pred_check_branch
          %149 = sbr.rel (%p147) target = $region28
        $region27: #{tpu_custom_call.1} parent=23 // pred_region
          %p150 = scmp.lt.s32.totalorder %s19, 1
          %s151 = scalar_select %p150, %s19, 1
          %p152 = scmp.lt.s32.totalorder %s20, 0
          %s153 = scalar_select %p152, %s20, 0
          %s154 = smul.addr %s153, 54
          %s155 = smul.addr %s151, 54
          %s156 = sadd.s32 %s154, %s155
          %s157 = smul.addr %s156, 4
          %s158 = scalar_lea.vmem %s0, %s157
        $region28: #{tpu_custom_call.1} parent=23 // pred_fallthru
          _
      $region24: #{tpu_custom_call.1} parent=5 // pred_fallthru
        _
      %p159 = scmp.le.s32.totalorder 1, %s12
      %p160 = scmp.lt.s32.totalorder %s12, 3
      %p161 = pnand %p159, %p160
      %p162 = pneg %p161
      // Predicated region
      $region29: #{tpu_custom_call.1} parent=5 // pred_check
        _
      $region30: #{tpu_custom_call.1} parent=5 // pred_check_branch
        %164 = sbr.rel (%p161) target = $region32
      $region31: #{tpu_custom_call.1} parent=5 // pred_region
        %s165 = ssub.s32 %s12, 1
        %p166 = scmp.lt.s32.totalorder %s21, 1
        %s167 = scalar_select %p166, %s21, 1
        %p168 = scmp.lt.s32.totalorder %s22, 0
        %s169 = scalar_select %p168, %s22, 0
        %s170 = smul.addr %s169, 54
        %s171 = smul.addr %s167, 54
        %s172 = sadd.s32 %s170, %s171
        %s173 = smul.addr %s172, 4
        %s174 = scalar_lea.vmem %s0, %s173
        %p175 = pneg %p52
        %p176 = pneg %p49
        %p177 = pneg %p73
        %p178 = pneg %p70
        %p179 = pneg %p94
        %p180 = pneg %p91
        %p181 = pneg %p122
        %p182 = pneg %p119
        %s183 = sand.u32 %s109, 1
        %s184 = scalar_lea.sflag [#allocation4], %s183
        %s185 = sand.u32 %s109, 1
        %s186 = smul.addr %s185, 256
        %s187 = scalar_lea.vmem [#allocation3], %s186
        %p188 = scmp.lt.s32.totalorder %s21, 1
        %s189 = scalar_select %p188, %s21, 1
        %p190 = scmp.lt.s32.totalorder %s22, 0
        %s191 = scalar_select %p190, %s22, 0
        %s192 = smul.addr %s191, 54
        %s193 = smul.addr %s189, 54
        %s194 = sadd.s32 %s192, %s193
        %s195 = smul.addr %s194, 4
        %s196 = scalar_lea.vmem %s0, %s195
        %s197 = smul.u32 16, %s22
        %v199 = vld [vmem:[%s196] sm:$0xf]
        %v200 = vld [vmem:[%s196 + $0x4] sm:$0xf]
        %v201 = vld [vmem:[%s196 + $0xc] sm:$0xf]
        %v202 = vld [vmem:[%s196 + $0x10] sm:$0xf]
        %v203 = vld [vmem:[%s196 + $0x18] sm:$0xf]
        %v204 = vld [vmem:[%s196 + $0x1c] sm:$0xf]
        %v205 = vld [vmem:[%s196 + $0x24] sm:$0xf]
        %v206 = vld [vmem:[%s196 + $0x28] sm:$0xf]
        %v207 = vld [vmem:[%s196 + $0x30] sm:$0xf]
        %v208 = vld [vmem:[%s196 + $0x34] sm:$0xf]
        %v209 = vld [vmem:[%s196 + $0x3c] sm:$0xf]
        %v210 = vld [vmem:[%s196 + $0x40] sm:$0xf]
        %v211 = vld [vmem:[%s196 + $0x48] sm:$0xf]
        %v212 = vld [vmem:[%s196 + $0x4c] sm:$0xf]
        %v213 = vld [vmem:[%s196 + $0x54] sm:$0xf]
        %v214 = vld [vmem:[%s196 + $0x58] sm:$0xf]
        %v215 = vld [vmem:[%s196 + $0x60] sm:$0xf]
        %v216 = vld [vmem:[%s196 + $0x64] sm:$0xf]
        %v217 = vld [vmem:[%s196 + $0x6c] sm:$0xf]
        %v218 = vld [vmem:[%s196 + $0x70] sm:$0xf]
        %v219 = vld [vmem:[%s196 + $0x78] sm:$0xf]
        %v220 = vld [vmem:[%s196 + $0x7c] sm:$0xf]
        %v221 = vld [vmem:[%s196 + $0x84] sm:$0xf]
        %v222 = vld [vmem:[%s196 + $0x88] sm:$0xf]
        %v223 = vld [vmem:[%s196 + $0x90] sm:$0xf]
        %v224 = vld [vmem:[%s196 + $0x94] sm:$0xf]
        %v225 = vld [vmem:[%s196 + $0x9c] sm:$0xf]
        %v226 = vld [vmem:[%s196 + $0xa0] sm:$0xf]
        %v227 = vld [vmem:[%s196 + $0xa8] sm:$0xf]
        %v228 = vld [vmem:[%s196 + $0xac] sm:$0xf]
        %v229 = vld [vmem:[%s196 + $0xb4] sm:$0xf]
        %v230 = vld [vmem:[%s196 + $0xb8] sm:$0xf]
        %vm231 = vcmask 27648
        %232 = vst.msk [vmem:[#allocation2] sm:$0xf] %vm231, %v199
        %233 = vst.msk [vmem:[#allocation2 + $0x4] sm:$0xf] %vm231, %v200
        %234 = vst.msk [vmem:[#allocation2 + $0x8] sm:$0xf] %vm231, %v201
        %235 = vst.msk [vmem:[#allocation2 + $0xc] sm:$0xf] %vm231, %v202
        %236 = vst.msk [vmem:[#allocation2 + $0x10] sm:$0xf] %vm231, %v203
        %237 = vst.msk [vmem:[#allocation2 + $0x14] sm:$0xf] %vm231, %v204
        %238 = vst.msk [vmem:[#allocation2 + $0x18] sm:$0xf] %vm231, %v205
        %239 = vst.msk [vmem:[#allocation2 + $0x1c] sm:$0xf] %vm231, %v206
        %240 = vst.msk [vmem:[#allocation2 + $0x20] sm:$0xf] %vm231, %v207
        %241 = vst.msk [vmem:[#allocation2 + $0x24] sm:$0xf] %vm231, %v208
        %242 = vst.msk [vmem:[#allocation2 + $0x28] sm:$0xf] %vm231, %v209
        %243 = vst.msk [vmem:[#allocation2 + $0x2c] sm:$0xf] %vm231, %v210
        %244 = vst.msk [vmem:[#allocation2 + $0x30] sm:$0xf] %vm231, %v211
        %245 = vst.msk [vmem:[#allocation2 + $0x34] sm:$0xf] %vm231, %v212
        %246 = vst.msk [vmem:[#allocation2 + $0x38] sm:$0xf] %vm231, %v213
        %247 = vst.msk [vmem:[#allocation2 + $0x3c] sm:$0xf] %vm231, %v214
        %248 = vst.msk [vmem:[#allocation2 + $0x40] sm:$0xf] %vm231, %v215
        %249 = vst.msk [vmem:[#allocation2 + $0x44] sm:$0xf] %vm231, %v216
        %250 = vst.msk [vmem:[#allocation2 + $0x48] sm:$0xf] %vm231, %v217
        %251 = vst.msk [vmem:[#allocation2 + $0x4c] sm:$0xf] %vm231, %v218
        %252 = vst.msk [vmem:[#allocation2 + $0x50] sm:$0xf] %vm231, %v219
        %253 = vst.msk [vmem:[#allocation2 + $0x54] sm:$0xf] %vm231, %v220
        %254 = vst.msk [vmem:[#allocation2 + $0x58] sm:$0xf] %vm231, %v221
        %255 = vst.msk [vmem:[#allocation2 + $0x5c] sm:$0xf] %vm231, %v222
        %256 = vst.msk [vmem:[#allocation2 + $0x60] sm:$0xf] %vm231, %v223
        %257 = vst.msk [vmem:[#allocation2 + $0x64] sm:$0xf] %vm231, %v224
        %258 = vst.msk [vmem:[#allocation2 + $0x68] sm:$0xf] %vm231, %v225
        %259 = vst.msk [vmem:[#allocation2 + $0x6c] sm:$0xf] %vm231, %v226
        %260 = vst.msk [vmem:[#allocation2 + $0x70] sm:$0xf] %vm231, %v227
        %261 = vst.msk [vmem:[#allocation2 + $0x74] sm:$0xf] %vm231, %v228
        %262 = vst.msk [vmem:[#allocation2 + $0x78] sm:$0xf] %vm231, %v229
        %263 = vst.msk [vmem:[#allocation2 + $0x7c] sm:$0xf] %vm231, %v230
        %v264 = vld [vmem:[%s196] sm:$0xf]
        %v265 = vld [vmem:[%s196 + $0x4] sm:$0xf]
        %v266 = vld [vmem:[%s196 + $0x8] sm:$0x1]
        %v267 = vld [vmem:[%s196 + $0xc] sm:$0xf]
        %v268 = vld [vmem:[%s196 + $0x10] sm:$0xf]
        %v269 = vld [vmem:[%s196 + $0x14] sm:$0x1]
        %v270 = vld [vmem:[%s196 + $0x18] sm:$0xf]
        %v271 = vld [vmem:[%s196 + $0x1c] sm:$0xf]
        %v272 = vld [vmem:[%s196 + $0x20] sm:$0x1]
        %v273 = vld [vmem:[%s196 + $0x24] sm:$0xf]
        %v274 = vld [vmem:[%s196 + $0x28] sm:$0xf]
        %v275 = vld [vmem:[%s196 + $0x2c] sm:$0x1]
        %v276 = vld [vmem:[%s196 + $0x30] sm:$0xf]
        %v277 = vld [vmem:[%s196 + $0x34] sm:$0xf]
        %v278 = vld [vmem:[%s196 + $0x38] sm:$0x1]
        %v279 = vld [vmem:[%s196 + $0x3c] sm:$0xf]
        %v280 = vld [vmem:[%s196 + $0x40] sm:$0xf]
        %v281 = vld [vmem:[%s196 + $0x44] sm:$0x1]
        %v282 = vld [vmem:[%s196 + $0x48] sm:$0xf]
        %v283 = vld [vmem:[%s196 + $0x4c] sm:$0xf]
        %v284 = vld [vmem:[%s196 + $0x50] sm:$0x1]
        %v285 = vld [vmem:[%s196 + $0x54] sm:$0xf]
        %v286 = vld [vmem:[%s196 + $0x58] sm:$0xf]
        %v287 = vld [vmem:[%s196 + $0x5c] sm:$0x1]
        %v288 = vld [vmem:[%s196 + $0x60] sm:$0xf]
        %v289 = vld [vmem:[%s196 + $0x64] sm:$0xf]
        %v290 = vld [vmem:[%s196 + $0x68] sm:$0x1]
        %v291 = vld [vmem:[%s196 + $0x6c] sm:$0xf]
        %v292 = vld [vmem:[%s196 + $0x70] sm:$0xf]
        %v293 = vld [vmem:[%s196 + $0x74] sm:$0x1]
        %v294 = vld [vmem:[%s196 + $0x78] sm:$0xf]
        %v295 = vld [vmem:[%s196 + $0x7c] sm:$0xf]
        %v296 = vld [vmem:[%s196 + $0x80] sm:$0x1]
        %v297 = vld [vmem:[%s196 + $0x84] sm:$0xf]
        %v298 = vld [vmem:[%s196 + $0x88] sm:$0xf]
        %v299 = vld [vmem:[%s196 + $0x8c] sm:$0x1]
        %v300 = vld [vmem:[%s196 + $0x90] sm:$0xf]
        %v301 = vld [vmem:[%s196 + $0x94] sm:$0xf]
        %v302 = vld [vmem:[%s196 + $0x98] sm:$0x1]
        %v303 = vld [vmem:[%s196 + $0x9c] sm:$0xf]
        %v304 = vld [vmem:[%s196 + $0xa0] sm:$0xf]
        %v305 = vld [vmem:[%s196 + $0xa4] sm:$0x1]
        %v306 = vld [vmem:[%s196 + $0xa8] sm:$0xf]
        %v307 = vld [vmem:[%s196 + $0xac] sm:$0xf]
        %v308 = vld [vmem:[%s196 + $0xb0] sm:$0x1]
        %v309 = vld [vmem:[%s196 + $0xb4] sm:$0xf]
        %v310 = vld [vmem:[%s196 + $0xb8] sm:$0xf]
        %v311 = vld [vmem:[%s196 + $0xbc] sm:$0x1]
        %vm312 = vsmask.f32 3328
        %vm313 = vsmask.f32 7440
        %vm314 = vmor %vm312, %vm313
        %v316 = vshrl.u32 %v264, 16
        %v318 = vrot.slane %v316, 4
        %v319 = vshll.u32 %v264, 16
        %v321 = vrot.slane %v319, 5
        %v322 = vor.u32 %v318, %v321
        %v323 = vrot.slane %v322, 4
        %v325 = vshll.u32 %v265, 16
        %v327 = vrot.slane %v325, 5
        %v328 = vsel %vm314, %v323, %v327
        %v329 = vshrl.u32 %v265, 16
        %v331 = vrot.slane %v329, 4
        %v332 = vor.u32 %v331, %v327
        %v333 = vrot.slane %v332, 4
        %v335 = vshll.u32 %v266, 16
        %v337 = vrot.slane %v335, 5
        %v338 = vsel %vm314, %v333, %v337
        %v340 = vshrl.u32 %v267, 16
        %v342 = vrot.slane %v340, 4
        %v343 = vshll.u32 %v267, 16
        %v345 = vrot.slane %v343, 5
        %v346 = vor.u32 %v342, %v345
        %v347 = vrot.slane %v346, 4
        %v349 = vshll.u32 %v268, 16
        %v351 = vrot.slane %v349, 5
        %v352 = vsel %vm314, %v347, %v351
        %v353 = vshrl.u32 %v268, 16
        %v355 = vrot.slane %v353, 4
        %v356 = vor.u32 %v355, %v351
        %v357 = vrot.slane %v356, 4
        %v359 = vshll.u32 %v269, 16
        %v361 = vrot.slane %v359, 5
        %v362 = vsel %vm314, %v357, %v361
        %v364 = vshrl.u32 %v270, 16
        %v366 = vrot.slane %v364, 4
        %v367 = vshll.u32 %v270, 16
        %v369 = vrot.slane %v367, 5
        %v370 = vor.u32 %v366, %v369
        %v371 = vrot.slane %v370, 4
        %v373 = vshll.u32 %v271, 16
        %v375 = vrot.slane %v373, 5
        %v376 = vsel %vm314, %v371, %v375
        %v377 = vshrl.u32 %v271, 16
        %v379 = vrot.slane %v377, 4
        %v380 = vor.u32 %v379, %v375
        %v381 = vrot.slane %v380, 4
        %v383 = vshll.u32 %v272, 16
        %v385 = vrot.slane %v383, 5
        %v386 = vsel %vm314, %v381, %v385
        %v388 = vshrl.u32 %v273, 16
        %v390 = vrot.slane %v388, 4
        %v391 = vshll.u32 %v273, 16
        %v393 = vrot.slane %v391, 5
        %v394 = vor.u32 %v390, %v393
        %v395 = vrot.slane %v394, 4
        %v397 = vshll.u32 %v274, 16
        %v399 = vrot.slane %v397, 5
        %v400 = vsel %vm314, %v395, %v399
        %v401 = vshrl.u32 %v274, 16
        %v403 = vrot.slane %v401, 4
        %v404 = vor.u32 %v403, %v399
        %v405 = vrot.slane %v404, 4
        %v407 = vshll.u32 %v275, 16
        %v409 = vrot.slane %v407, 5
        %v410 = vsel %vm314, %v405, %v409
        %v412 = vshrl.u32 %v276, 16
        %v414 = vrot.slane %v412, 4
        %v415 = vshll.u32 %v276, 16
        %v417 = vrot.slane %v415, 5
        %v418 = vor.u32 %v414, %v417
        %v419 = vrot.slane %v418, 4
        %v421 = vshll.u32 %v277, 16
        %v423 = vrot.slane %v421, 5
        %v424 = vsel %vm314, %v419, %v423
        %v425 = vshrl.u32 %v277, 16
        %v427 = vrot.slane %v425, 4
        %v428 = vor.u32 %v427, %v423
        %v429 = vrot.slane %v428, 4
        %v431 = vshll.u32 %v278, 16
        %v433 = vrot.slane %v431, 5
        %v434 = vsel %vm314, %v429, %v433
        %v436 = vshrl.u32 %v279, 16
        %v438 = vrot.slane %v436, 4
        %v439 = vshll.u32 %v279, 16
        %v441 = vrot.slane %v439, 5
        %v442 = vor.u32 %v438, %v441
        %v443 = vrot.slane %v442, 4
        %v445 = vshll.u32 %v280, 16
        %v447 = vrot.slane %v445, 5
        %v448 = vsel %vm314, %v443, %v447
        %v449 = vshrl.u32 %v280, 16
        %v451 = vrot.slane %v449, 4
        %v452 = vor.u32 %v451, %v447
        %v453 = vrot.slane %v452, 4
        %v455 = vshll.u32 %v281, 16
        %v457 = vrot.slane %v455, 5
        %v458 = vsel %vm314, %v453, %v457
        %v460 = vshrl.u32 %v282, 16
        %v462 = vrot.slane %v460, 4
        %v463 = vshll.u32 %v282, 16
        %v465 = vrot.slane %v463, 5
        %v466 = vor.u32 %v462, %v465
        %v467 = vrot.slane %v466, 4
        %v469 = vshll.u32 %v283, 16
        %v471 = vrot.slane %v469, 5
        %v472 = vsel %vm314, %v467, %v471
        %v473 = vshrl.u32 %v283, 16
        %v475 = vrot.slane %v473, 4
        %v476 = vor.u32 %v475, %v471
        %v477 = vrot.slane %v476, 4
        %v479 = vshll.u32 %v284, 16
        %v481 = vrot.slane %v479, 5
        %v482 = vsel %vm314, %v477, %v481
        %v484 = vshrl.u32 %v285, 16
        %v486 = vrot.slane %v484, 4
        %v487 = vshll.u32 %v285, 16
        %v489 = vrot.slane %v487, 5
        %v490 = vor.u32 %v486, %v489
        %v491 = vrot.slane %v490, 4
        %v493 = vshll.u32 %v286, 16
        %v495 = vrot.slane %v493, 5
        %v496 = vsel %vm314, %v491, %v495
        %v497 = vshrl.u32 %v286, 16
        %v499 = vrot.slane %v497, 4
        %v500 = vor.u32 %v499, %v495
        %v501 = vrot.slane %v500, 4
        %v503 = vshll.u32 %v287, 16
        %v505 = vrot.slane %v503, 5
        %v506 = vsel %vm314, %v501, %v505
        %v508 = vshrl.u32 %v288, 16
        %v510 = vrot.slane %v508, 4
        %v511 = vshll.u32 %v288, 16
        %v513 = vrot.slane %v511, 5
        %v514 = vor.u32 %v510, %v513
        %v515 = vrot.slane %v514, 4
        %v517 = vshll.u32 %v289, 16
        %v519 = vrot.slane %v517, 5
        %v520 = vsel %vm314, %v515, %v519
        %v521 = vshrl.u32 %v289, 16
        %v523 = vrot.slane %v521, 4
        %v524 = vor.u32 %v523, %v519
        %v525 = vrot.slane %v524, 4
        %v527 = vshll.u32 %v290, 16
        %v529 = vrot.slane %v527, 5
        %v530 = vsel %vm314, %v525, %v529
        %v532 = vshrl.u32 %v291, 16
        %v534 = vrot.slane %v532, 4
        %v535 = vshll.u32 %v291, 16
        %v537 = vrot.slane %v535, 5
        %v538 = vor.u32 %v534, %v537
        %v539 = vrot.slane %v538, 4
        %v541 = vshll.u32 %v292, 16
        %v543 = vrot.slane %v541, 5
        %v544 = vsel %vm314, %v539, %v543
        %v545 = vshrl.u32 %v292, 16
        %v547 = vrot.slane %v545, 4
        %v548 = vor.u32 %v547, %v543
        %v549 = vrot.slane %v548, 4
        %v551 = vshll.u32 %v293, 16
        %v553 = vrot.slane %v551, 5
        %v554 = vsel %vm314, %v549, %v553
        %v556 = vshrl.u32 %v294, 16
        %v558 = vrot.slane %v556, 4
        %v559 = vshll.u32 %v294, 16
        %v561 = vrot.slane %v559, 5
        %v562 = vor.u32 %v558, %v561
        %v563 = vrot.slane %v562, 4
        %v565 = vshll.u32 %v295, 16
        %v567 = vrot.slane %v565, 5
        %v568 = vsel %vm314, %v563, %v567
        %v569 = vshrl.u32 %v295, 16
        %v571 = vrot.slane %v569, 4
        %v572 = vor.u32 %v571, %v567
        %v573 = vrot.slane %v572, 4
        %v575 = vshll.u32 %v296, 16
        %v577 = vrot.slane %v575, 5
        %v578 = vsel %vm314, %v573, %v577
        %v580 = vshrl.u32 %v297, 16
        %v582 = vrot.slane %v580, 4
        %v583 = vshll.u32 %v297, 16
        %v585 = vrot.slane %v583, 5
        %v586 = vor.u32 %v582, %v585
        %v587 = vrot.slane %v586, 4
        %v589 = vshll.u32 %v298, 16
        %v591 = vrot.slane %v589, 5
        %v592 = vsel %vm314, %v587, %v591
        %v593 = vshrl.u32 %v298, 16
        %v595 = vrot.slane %v593, 4
        %v596 = vor.u32 %v595, %v591
        %v597 = vrot.slane %v596, 4
        %v599 = vshll.u32 %v299, 16
        %v601 = vrot.slane %v599, 5
        %v602 = vsel %vm314, %v597, %v601
        %v604 = vshrl.u32 %v300, 16
        %v606 = vrot.slane %v604, 4
        %v607 = vshll.u32 %v300, 16
        %v609 = vrot.slane %v607, 5
        %v610 = vor.u32 %v606, %v609
        %v611 = vrot.slane %v610, 4
        %v613 = vshll.u32 %v301, 16
        %v615 = vrot.slane %v613, 5
        %v616 = vsel %vm314, %v611, %v615
        %v617 = vshrl.u32 %v301, 16
        %v619 = vrot.slane %v617, 4
        %v620 = vor.u32 %v619, %v615
        %v621 = vrot.slane %v620, 4
        %v623 = vshll.u32 %v302, 16
        %v625 = vrot.slane %v623, 5
        %v626 = vsel %vm314, %v621, %v625
        %v628 = vshrl.u32 %v303, 16
        %v630 = vrot.slane %v628, 4
        %v631 = vshll.u32 %v303, 16
        %v633 = vrot.slane %v631, 5
        %v634 = vor.u32 %v630, %v633
        %v635 = vrot.slane %v634, 4
        %v637 = vshll.u32 %v304, 16
        %v639 = vrot.slane %v637, 5
        %v640 = vsel %vm314, %v635, %v639
        %v641 = vshrl.u32 %v304, 16
        %v643 = vrot.slane %v641, 4
        %v644 = vor.u32 %v643, %v639
        %v645 = vrot.slane %v644, 4
        %v647 = vshll.u32 %v305, 16
        %v649 = vrot.slane %v647, 5
        %v650 = vsel %vm314, %v645, %v649
        %v652 = vshrl.u32 %v306, 16
        %v654 = vrot.slane %v652, 4
        %v655 = vshll.u32 %v306, 16
        %v657 = vrot.slane %v655, 5
        %v658 = vor.u32 %v654, %v657
        %v659 = vrot.slane %v658, 4
        %v661 = vshll.u32 %v307, 16
        %v663 = vrot.slane %v661, 5
        %v664 = vsel %vm314, %v659, %v663
        %v665 = vshrl.u32 %v307, 16
        %v667 = vrot.slane %v665, 4
        %v668 = vor.u32 %v667, %v663
        %v669 = vrot.slane %v668, 4
        %v671 = vshll.u32 %v308, 16
        %v673 = vrot.slane %v671, 5
        %v674 = vsel %vm314, %v669, %v673
        %v676 = vshrl.u32 %v309, 16
        %v678 = vrot.slane %v676, 4
        %v679 = vshll.u32 %v309, 16
        %v681 = vrot.slane %v679, 5
        %v682 = vor.u32 %v678, %v681
        %v683 = vrot.slane %v682, 4
        %v685 = vshll.u32 %v310, 16
        %v687 = vrot.slane %v685, 5
        %v688 = vsel %vm314, %v683, %v687
        %v689 = vshrl.u32 %v310, 16
        %v691 = vrot.slane %v689, 4
        %v692 = vor.u32 %v691, %v687
        %v693 = vrot.slane %v692, 4
        %v695 = vshll.u32 %v311, 16
        %v697 = vrot.slane %v695, 5
        %v698 = vsel %vm314, %v693, %v697
        %699 = vrot.lane.b32.xlu0 %v328, 4
        %v700 = vpop.permute.xlu0 %699
        %701 = vrot.lane.b32.xlu0 %v338, 4
        %v702 = vpop.permute.xlu0 %701
        %703 = vrot.lane.b32.xlu0 %v352, 4
        %v704 = vpop.permute.xlu0 %703
        %705 = vrot.lane.b32.xlu0 %v362, 4
        %v706 = vpop.permute.xlu0 %705
        %707 = vrot.lane.b32.xlu0 %v376, 4
        %v708 = vpop.permute.xlu0 %707
        %709 = vrot.lane.b32.xlu0 %v386, 4
        %v710 = vpop.permute.xlu0 %709
        %711 = vrot.lane.b32.xlu0 %v400, 4
        %v712 = vpop.permute.xlu0 %711
        %713 = vrot.lane.b32.xlu0 %v410, 4
        %v714 = vpop.permute.xlu0 %713
        %715 = vrot.lane.b32.xlu0 %v424, 4
        %v716 = vpop.permute.xlu0 %715
        %717 = vrot.lane.b32.xlu0 %v434, 4
        %v718 = vpop.permute.xlu0 %717
        %719 = vrot.lane.b32.xlu0 %v448, 4
        %v720 = vpop.permute.xlu0 %719
        %721 = vrot.lane.b32.xlu0 %v458, 4
        %v722 = vpop.permute.xlu0 %721
        %723 = vrot.lane.b32.xlu0 %v472, 4
        %v724 = vpop.permute.xlu0 %723
        %725 = vrot.lane.b32.xlu0 %v482, 4
        %v726 = vpop.permute.xlu0 %725
        %727 = vrot.lane.b32.xlu0 %v496, 4
        %v728 = vpop.permute.xlu0 %727
        %729 = vrot.lane.b32.xlu0 %v506, 4
        %v730 = vpop.permute.xlu0 %729
        %731 = vrot.lane.b32.xlu0 %v520, 4
        %v732 = vpop.permute.xlu0 %731
        %733 = vrot.lane.b32.xlu0 %v530, 4
        %v734 = vpop.permute.xlu0 %733
        %735 = vrot.lane.b32.xlu0 %v544, 4
        %v736 = vpop.permute.xlu0 %735
        %737 = vrot.lane.b32.xlu0 %v554, 4
        %v738 = vpop.permute.xlu0 %737
        %739 = vrot.lane.b32.xlu0 %v568, 4
        %v740 = vpop.permute.xlu0 %739
        %741 = vrot.lane.b32.xlu0 %v578, 4
        %v742 = vpop.permute.xlu0 %741
        %743 = vrot.lane.b32.xlu0 %v592, 4
        %v744 = vpop.permute.xlu0 %743
        %745 = vrot.lane.b32.xlu0 %v602, 4
        %v746 = vpop.permute.xlu0 %745
        %747 = vrot.lane.b32.xlu0 %v616, 4
        %v748 = vpop.permute.xlu0 %747
        %749 = vrot.lane.b32.xlu0 %v626, 4
        %v750 = vpop.permute.xlu0 %749
        %751 = vrot.lane.b32.xlu0 %v640, 4
        %v752 = vpop.permute.xlu0 %751
        %753 = vrot.lane.b32.xlu0 %v650, 4
        %v754 = vpop.permute.xlu0 %753
        %755 = vrot.lane.b32.xlu0 %v664, 4
        %v756 = vpop.permute.xlu0 %755
        %757 = vrot.lane.b32.xlu0 %v674, 4
        %v758 = vpop.permute.xlu0 %757
        %759 = vrot.lane.b32.xlu0 %v688, 4
        %v760 = vpop.permute.xlu0 %759
        %761 = vrot.lane.b32.xlu0 %v698, 4
        %v762 = vpop.permute.xlu0 %761
        %vm795 = vcmask 60448
        %796 = vst.msk [vmem:[#allocation2] sm:$0xf] %vm795, %v700
        %797 = vst.msk [vmem:[#allocation2 + $0x4] sm:$0xf] %vm795, %v702
        %798 = vst.msk [vmem:[#allocation2 + $0x8] sm:$0xf] %vm795, %v704
        %799 = vst.msk [vmem:[#allocation2 + $0xc] sm:$0xf] %vm795, %v706
        %800 = vst.msk [vmem:[#allocation2 + $0x10] sm:$0xf] %vm795, %v708
        %801 = vst.msk [vmem:[#allocation2 + $0x14] sm:$0xf] %vm795, %v710
        %802 = vst.msk [vmem:[#allocation2 + $0x18] sm:$0xf] %vm795, %v712
        %803 = vst.msk [vmem:[#allocation2 + $0x1c] sm:$0xf] %vm795, %v714
        %804 = vst.msk [vmem:[#allocation2 + $0x20] sm:$0xf] %vm795, %v716
        %805 = vst.msk [vmem:[#allocation2 + $0x24] sm:$0xf] %vm795, %v718
        %806 = vst.msk [vmem:[#allocation2 + $0x28] sm:$0xf] %vm795, %v720
        %807 = vst.msk [vmem:[#allocation2 + $0x2c] sm:$0xf] %vm795, %v722
        %808 = vst.msk [vmem:[#allocation2 + $0x30] sm:$0xf] %vm795, %v724
        %809 = vst.msk [vmem:[#allocation2 + $0x34] sm:$0xf] %vm795, %v726
        %810 = vst.msk [vmem:[#allocation2 + $0x38] sm:$0xf] %vm795, %v728
        %811 = vst.msk [vmem:[#allocation2 + $0x3c] sm:$0xf] %vm795, %v730
        %812 = vst.msk [vmem:[#allocation2 + $0x40] sm:$0xf] %vm795, %v732
        %813 = vst.msk [vmem:[#allocation2 + $0x44] sm:$0xf] %vm795, %v734
        %814 = vst.msk [vmem:[#allocation2 + $0x48] sm:$0xf] %vm795, %v736
        %815 = vst.msk [vmem:[#allocation2 + $0x4c] sm:$0xf] %vm795, %v738
        %816 = vst.msk [vmem:[#allocation2 + $0x50] sm:$0xf] %vm795, %v740
        %817 = vst.msk [vmem:[#allocation2 + $0x54] sm:$0xf] %vm795, %v742
        %818 = vst.msk [vmem:[#allocation2 + $0x58] sm:$0xf] %vm795, %v744
        %819 = vst.msk [vmem:[#allocation2 + $0x5c] sm:$0xf] %vm795, %v746
        %820 = vst.msk [vmem:[#allocation2 + $0x60] sm:$0xf] %vm795, %v748
        %821 = vst.msk [vmem:[#allocation2 + $0x64] sm:$0xf] %vm795, %v750
        %822 = vst.msk [vmem:[#allocation2 + $0x68] sm:$0xf] %vm795, %v752
        %823 = vst.msk [vmem:[#allocation2 + $0x6c] sm:$0xf] %vm795, %v754
        %824 = vst.msk [vmem:[#allocation2 + $0x70] sm:$0xf] %vm795, %v756
        %825 = vst.msk [vmem:[#allocation2 + $0x74] sm:$0xf] %vm795, %v758
        %826 = vst.msk [vmem:[#allocation2 + $0x78] sm:$0xf] %vm795, %v760
        %827 = vst.msk [vmem:[#allocation2 + $0x7c] sm:$0xf] %vm795, %v762
        %v828 = vld [vmem:[%s196] sm:$0xe]
        %v829 = vld [vmem:[%s196 + $0x4] sm:$0xf]
        %v830 = vld [vmem:[%s196 + $0x8] sm:$0x1]
        %v831 = vld [vmem:[%s196 + $0xc] sm:$0xe]
        %v832 = vld [vmem:[%s196 + $0x10] sm:$0xf]
        %v833 = vld [vmem:[%s196 + $0x14] sm:$0x1]
        %v834 = vld [vmem:[%s196 + $0x18] sm:$0xe]
        %v835 = vld [vmem:[%s196 + $0x1c] sm:$0xf]
        %v836 = vld [vmem:[%s196 + $0x20] sm:$0x1]
        %v837 = vld [vmem:[%s196 + $0x24] sm:$0xe]
        %v838 = vld [vmem:[%s196 + $0x28] sm:$0xf]
        %v839 = vld [vmem:[%s196 + $0x2c] sm:$0x1]
        %v840 = vld [vmem:[%s196 + $0x30] sm:$0xe]
        %v841 = vld [vmem:[%s196 + $0x34] sm:$0xf]
        %v842 = vld [vmem:[%s196 + $0x38] sm:$0x1]
        %v843 = vld [vmem:[%s196 + $0x3c] sm:$0xe]
        %v844 = vld [vmem:[%s196 + $0x40] sm:$0xf]
        %v845 = vld [vmem:[%s196 + $0x44] sm:$0x1]
        %v846 = vld [vmem:[%s196 + $0x48] sm:$0xe]
        %v847 = vld [vmem:[%s196 + $0x4c] sm:$0xf]
        %v848 = vld [vmem:[%s196 + $0x50] sm:$0x1]
        %v849 = vld [vmem:[%s196 + $0x54] sm:$0xe]
        %v850 = vld [vmem:[%s196 + $0x58] sm:$0xf]
        %v851 = vld [vmem:[%s196 + $0x5c] sm:$0x1]
        %v852 = vld [vmem:[%s196 + $0x60] sm:$0xe]
        %v853 = vld [vmem:[%s196 + $0x64] sm:$0xf]
        %v854 = vld [vmem:[%s196 + $0x68] sm:$0x1]
        %v855 = vld [vmem:[%s196 + $0x6c] sm:$0xe]
        %v856 = vld [vmem:[%s196 + $0x70] sm:$0xf]
        %v857 = vld [vmem:[%s196 + $0x74] sm:$0x1]
        %v858 = vld [vmem:[%s196 + $0x78] sm:$0xe]
        %v859 = vld [vmem:[%s196 + $0x7c] sm:$0xf]
        %v860 = vld [vmem:[%s196 + $0x80] sm:$0x1]
        %v861 = vld [vmem:[%s196 + $0x84] sm:$0xe]
        %v862 = vld [vmem:[%s196 + $0x88] sm:$0xf]
        %v863 = vld [vmem:[%s196 + $0x8c] sm:$0x1]
        %v864 = vld [vmem:[%s196 + $0x90] sm:$0xe]
        %v865 = vld [vmem:[%s196 + $0x94] sm:$0xf]
        %v866 = vld [vmem:[%s196 + $0x98] sm:$0x1]
        %v867 = vld [vmem:[%s196 + $0x9c] sm:$0xe]
        %v868 = vld [vmem:[%s196 + $0xa0] sm:$0xf]
        %v869 = vld [vmem:[%s196 + $0xa4] sm:$0x1]
        %v870 = vld [vmem:[%s196 + $0xa8] sm:$0xe]
        %v871 = vld [vmem:[%s196 + $0xac] sm:$0xf]
        %v872 = vld [vmem:[%s196 + $0xb0] sm:$0x1]
        %v873 = vld [vmem:[%s196 + $0xb4] sm:$0xe]
        %v874 = vld [vmem:[%s196 + $0xb8] sm:$0xf]
        %v875 = vld [vmem:[%s196 + $0xbc] sm:$0x1]
        %vm924 = vcmask 1042432
        %vm925 = vcmask 1046532
        %vm926 = vmor %vm924, %vm925
        %v927 = vrot.slane %v828, 5
        %v928 = vrot.slane %v927, 4
        %v929 = vrot.slane %v829, 5
        %v930 = vsel %vm926, %v928, %v929
        %v931 = vrot.slane %v929, 4
        %v932 = vrot.slane %v830, 5
        %v933 = vsel %vm926, %v931, %v932
        %v934 = vrot.slane %v831, 5
        %v935 = vrot.slane %v934, 4
        %v936 = vrot.slane %v832, 5
        %v937 = vsel %vm926, %v935, %v936
        %v938 = vrot.slane %v936, 4
        %v939 = vrot.slane %v833, 5
        %v940 = vsel %vm926, %v938, %v939
        %v941 = vrot.slane %v834, 5
        %v942 = vrot.slane %v941, 4
        %v943 = vrot.slane %v835, 5
        %v944 = vsel %vm926, %v942, %v943
        %v945 = vrot.slane %v943, 4
        %v946 = vrot.slane %v836, 5
        %v947 = vsel %vm926, %v945, %v946
        %v948 = vrot.slane %v837, 5
        %v949 = vrot.slane %v948, 4
        %v950 = vrot.slane %v838, 5
        %v951 = vsel %vm926, %v949, %v950
        %v952 = vrot.slane %v950, 4
        %v953 = vrot.slane %v839, 5
        %v954 = vsel %vm926, %v952, %v953
        %v955 = vrot.slane %v840, 5
        %v956 = vrot.slane %v955, 4
        %v957 = vrot.slane %v841, 5
        %v958 = vsel %vm926, %v956, %v957
        %v959 = vrot.slane %v957, 4
        %v960 = vrot.slane %v842, 5
        %v961 = vsel %vm926, %v959, %v960
        %v962 = vrot.slane %v843, 5
        %v963 = vrot.slane %v962, 4
        %v964 = vrot.slane %v844, 5
        %v965 = vsel %vm926, %v963, %v964
        %v966 = vrot.slane %v964, 4
        %v967 = vrot.slane %v845, 5
        %v968 = vsel %vm926, %v966, %v967
        %v969 = vrot.slane %v846, 5
        %v970 = vrot.slane %v969, 4
        %v971 = vrot.slane %v847, 5
        %v972 = vsel %vm926, %v970, %v971
        %v973 = vrot.slane %v971, 4
        %v974 = vrot.slane %v848, 5
        %v975 = vsel %vm926, %v973, %v974
        %v976 = vrot.slane %v849, 5
        %v977 = vrot.slane %v976, 4
        %v978 = vrot.slane %v850, 5
        %v979 = vsel %vm926, %v977, %v978
        %v980 = vrot.slane %v978, 4
        %v981 = vrot.slane %v851, 5
        %v982 = vsel %vm926, %v980, %v981
        %v983 = vrot.slane %v852, 5
        %v984 = vrot.slane %v983, 4
        %v985 = vrot.slane %v853, 5
        %v986 = vsel %vm926, %v984, %v985
        %v987 = vrot.slane %v985, 4
        %v988 = vrot.slane %v854, 5
        %v989 = vsel %vm926, %v987, %v988
        %v990 = vrot.slane %v855, 5
        %v991 = vrot.slane %v990, 4
        %v992 = vrot.slane %v856, 5
        %v993 = vsel %vm926, %v991, %v992
        %v994 = vrot.slane %v992, 4
        %v995 = vrot.slane %v857, 5
        %v996 = vsel %vm926, %v994, %v995
        %v997 = vrot.slane %v858, 5
        %v998 = vrot.slane %v997, 4
        %v999 = vrot.slane %v859, 5
        %v1000 = vsel %vm926, %v998, %v999
        %v1001 = vrot.slane %v999, 4
        %v1002 = vrot.slane %v860, 5
        %v1003 = vsel %vm926, %v1001, %v1002
        %v1004 = vrot.slane %v861, 5
        %v1005 = vrot.slane %v1004, 4
        %v1006 = vrot.slane %v862, 5
        %v1007 = vsel %vm926, %v1005, %v1006
        %v1008 = vrot.slane %v1006, 4
        %v1009 = vrot.slane %v863, 5
        %v1010 = vsel %vm926, %v1008, %v1009
        %v1011 = vrot.slane %v864, 5
        %v1012 = vrot.slane %v1011, 4
        %v1013 = vrot.slane %v865, 5
        %v1014 = vsel %vm926, %v1012, %v1013
        %v1015 = vrot.slane %v1013, 4
        %v1016 = vrot.slane %v866, 5
        %v1017 = vsel %vm926, %v1015, %v1016
        %v1018 = vrot.slane %v867, 5
        %v1019 = vrot.slane %v1018, 4
        %v1020 = vrot.slane %v868, 5
        %v1021 = vsel %vm926, %v1019, %v1020
        %v1022 = vrot.slane %v1020, 4
        %v1023 = vrot.slane %v869, 5
        %v1024 = vsel %vm926, %v1022, %v1023
        %v1025 = vrot.slane %v870, 5
        %v1026 = vrot.slane %v1025, 4
        %v1027 = vrot.slane %v871, 5
        %v1028 = vsel %vm926, %v1026, %v1027
        %v1029 = vrot.slane %v1027, 4
        %v1030 = vrot.slane %v872, 5
        %v1031 = vsel %vm926, %v1029, %v1030
        %v1032 = vrot.slane %v873, 5
        %v1033 = vrot.slane %v1032, 4
        %v1034 = vrot.slane %v874, 5
        %v1035 = vsel %vm926, %v1033, %v1034
        %v1036 = vrot.slane %v1034, 4
        %v1037 = vrot.slane %v875, 5
        %v1038 = vsel %vm926, %v1036, %v1037
        %1039 = vrot.lane.b32.xlu0 %v930, 8
        %v1040 = vpop.permute.xlu0 %1039
        %1041 = vrot.lane.b32.xlu0 %v933, 8
        %v1042 = vpop.permute.xlu0 %1041
        %1043 = vrot.lane.b32.xlu0 %v937, 8
        %v1044 = vpop.permute.xlu0 %1043
        %1045 = vrot.lane.b32.xlu0 %v940, 8
        %v1046 = vpop.permute.xlu0 %1045
        %1047 = vrot.lane.b32.xlu0 %v944, 8
        %v1048 = vpop.permute.xlu0 %1047
        %1049 = vrot.lane.b32.xlu0 %v947, 8
        %v1050 = vpop.permute.xlu0 %1049
        %1051 = vrot.lane.b32.xlu0 %v951, 8
        %v1052 = vpop.permute.xlu0 %1051
        %1053 = vrot.lane.b32.xlu0 %v954, 8
        %v1054 = vpop.permute.xlu0 %1053
        %1055 = vrot.lane.b32.xlu0 %v958, 8
        %v1056 = vpop.permute.xlu0 %1055
        %1057 = vrot.lane.b32.xlu0 %v961, 8
        %v1058 = vpop.permute.xlu0 %1057
        %1059 = vrot.lane.b32.xlu0 %v965, 8
        %v1060 = vpop.permute.xlu0 %1059
        %1061 = vrot.lane.b32.xlu0 %v968, 8
        %v1062 = vpop.permute.xlu0 %1061
        %1063 = vrot.lane.b32.xlu0 %v972, 8
        %v1064 = vpop.permute.xlu0 %1063
        %1065 = vrot.lane.b32.xlu0 %v975, 8
        %v1066 = vpop.permute.xlu0 %1065
        %1067 = vrot.lane.b32.xlu0 %v979, 8
        %v1068 = vpop.permute.xlu0 %1067
        %1069 = vrot.lane.b32.xlu0 %v982, 8
        %v1070 = vpop.permute.xlu0 %1069
        %1071 = vrot.lane.b32.xlu0 %v986, 8
        %v1072 = vpop.permute.xlu0 %1071
        %1073 = vrot.lane.b32.xlu0 %v989, 8
        %v1074 = vpop.permute.xlu0 %1073
        %1075 = vrot.lane.b32.xlu0 %v993, 8
        %v1076 = vpop.permute.xlu0 %1075
        %1077 = vrot.lane.b32.xlu0 %v996, 8
        %v1078 = vpop.permute.xlu0 %1077
        %1079 = vrot.lane.b32.xlu0 %v1000, 8
        %v1080 = vpop.permute.xlu0 %1079
        %1081 = vrot.lane.b32.xlu0 %v1003, 8
        %v1082 = vpop.permute.xlu0 %1081
        %1083 = vrot.lane.b32.xlu0 %v1007, 8
        %v1084 = vpop.permute.xlu0 %1083
        %1085 = vrot.lane.b32.xlu0 %v1010, 8
        %v1086 = vpop.permute.xlu0 %1085
        %1087 = vrot.lane.b32.xlu0 %v1014, 8
        %v1088 = vpop.permute.xlu0 %1087
        %1089 = vrot.lane.b32.xlu0 %v1017, 8
        %v1090 = vpop.permute.xlu0 %1089
        %1091 = vrot.lane.b32.xlu0 %v1021, 8
        %v1092 = vpop.permute.xlu0 %1091
        %1093 = vrot.lane.b32.xlu0 %v1024, 8
        %v1094 = vpop.permute.xlu0 %1093
        %1095 = vrot.lane.b32.xlu0 %v1028, 8
        %v1096 = vpop.permute.xlu0 %1095
        %1097 = vrot.lane.b32.xlu0 %v1031, 8
        %v1098 = vpop.permute.xlu0 %1097
        %1099 = vrot.lane.b32.xlu0 %v1035, 8
        %v1100 = vpop.permute.xlu0 %1099
        %1101 = vrot.lane.b32.xlu0 %v1038, 8
        %v1102 = vpop.permute.xlu0 %1101
        %vm1135 = vcmask 93248
        %1136 = vst.msk [vmem:[#allocation2] sm:$0xf] %vm1135, %v1040
        %1137 = vst.msk [vmem:[#allocation2 + $0x4] sm:$0xf] %vm1135, %v1042
        %1138 = vst.msk [vmem:[#allocation2 + $0x8] sm:$0xf] %vm1135, %v1044
        %1139 = vst.msk [vmem:[#allocation2 + $0xc] sm:$0xf] %vm1135, %v1046
        %1140 = vst.msk [vmem:[#allocation2 + $0x10] sm:$0xf] %vm1135, %v1048
        %1141 = vst.msk [vmem:[#allocation2 + $0x14] sm:$0xf] %vm1135, %v1050
        %1142 = vst.msk [vmem:[#allocation2 + $0x18] sm:$0xf] %vm1135, %v1052
        %1143 = vst.msk [vmem:[#allocation2 + $0x1c] sm:$0xf] %vm1135, %v1054
        %1144 = vst.msk [vmem:[#allocation2 + $0x20] sm:$0xf] %vm1135, %v1056
        %1145 = vst.msk [vmem:[#allocation2 + $0x24] sm:$0xf] %vm1135, %v1058
        %1146 = vst.msk [vmem:[#allocation2 + $0x28] sm:$0xf] %vm1135, %v1060
        %1147 = vst.msk [vmem:[#allocation2 + $0x2c] sm:$0xf] %vm1135, %v1062
        %1148 = vst.msk [vmem:[#allocation2 + $0x30] sm:$0xf] %vm1135, %v1064
        %1149 = vst.msk [vmem:[#allocation2 + $0x34] sm:$0xf] %vm1135, %v1066
        %1150 = vst.msk [vmem:[#allocation2 + $0x38] sm:$0xf] %vm1135, %v1068
        %1151 = vst.msk [vmem:[#allocation2 + $0x3c] sm:$0xf] %vm1135, %v1070
        %1152 = vst.msk [vmem:[#allocation2 + $0x40] sm:$0xf] %vm1135, %v1072
        %1153 = vst.msk [vmem:[#allocation2 + $0x44] sm:$0xf] %vm1135, %v1074
        %1154 = vst.msk [vmem:[#allocation2 + $0x48] sm:$0xf] %vm1135, %v1076
        %1155 = vst.msk [vmem:[#allocation2 + $0x4c] sm:$0xf] %vm1135, %v1078
        %1156 = vst.msk [vmem:[#allocation2 + $0x50] sm:$0xf] %vm1135, %v1080
        %1157 = vst.msk [vmem:[#allocation2 + $0x54] sm:$0xf] %vm1135, %v1082
        %1158 = vst.msk [vmem:[#allocation2 + $0x58] sm:$0xf] %vm1135, %v1084
        %1159 = vst.msk [vmem:[#allocation2 + $0x5c] sm:$0xf] %vm1135, %v1086
        %1160 = vst.msk [vmem:[#allocation2 + $0x60] sm:$0xf] %vm1135, %v1088
        %1161 = vst.msk [vmem:[#allocation2 + $0x64] sm:$0xf] %vm1135, %v1090
        %1162 = vst.msk [vmem:[#allocation2 + $0x68] sm:$0xf] %vm1135, %v1092
        %1163 = vst.msk [vmem:[#allocation2 + $0x6c] sm:$0xf] %vm1135, %v1094
        %1164 = vst.msk [vmem:[#allocation2 + $0x70] sm:$0xf] %vm1135, %v1096
        %1165 = vst.msk [vmem:[#allocation2 + $0x74] sm:$0xf] %vm1135, %v1098
        %1166 = vst.msk [vmem:[#allocation2 + $0x78] sm:$0xf] %vm1135, %v1100
        %1167 = vst.msk [vmem:[#allocation2 + $0x7c] sm:$0xf] %vm1135, %v1102
        %s1168 = scalar_lea.vmem %s196, 12
        %v1169 = vld [vmem:[%s1168] sm:$0xf]
        %v1170 = vld [vmem:[%s1168 + $0x4] sm:$0xf]
        %v1171 = vld [vmem:[%s1168 + $0xc] sm:$0xf]
        %v1172 = vld [vmem:[%s1168 + $0x10] sm:$0xf]
        %v1173 = vld [vmem:[%s1168 + $0x18] sm:$0xf]
        %v1174 = vld [vmem:[%s1168 + $0x1c] sm:$0xf]
        %v1175 = vld [vmem:[%s1168 + $0x24] sm:$0xf]
        %v1176 = vld [vmem:[%s1168 + $0x28] sm:$0xf]
        %v1177 = vld [vmem:[%s1168 + $0x30] sm:$0xf]
        %v1178 = vld [vmem:[%s1168 + $0x34] sm:$0xf]
        %v1179 = vld [vmem:[%s1168 + $0x3c] sm:$0xf]
        %v1180 = vld [vmem:[%s1168 + $0x40] sm:$0xf]
        %v1181 = vld [vmem:[%s1168 + $0x48] sm:$0xf]
        %v1182 = vld [vmem:[%s1168 + $0x4c] sm:$0xf]
        %v1183 = vld [vmem:[%s1168 + $0x54] sm:$0xf]
        %v1184 = vld [vmem:[%s1168 + $0x58] sm:$0xf]
        %v1185 = vld [vmem:[%s1168 + $0x60] sm:$0xf]
        %v1186 = vld [vmem:[%s1168 + $0x64] sm:$0xf]
        %v1187 = vld [vmem:[%s1168 + $0x6c] sm:$0xf]
        %v1188 = vld [vmem:[%s1168 + $0x70] sm:$0xf]
        %v1189 = vld [vmem:[%s1168 + $0x78] sm:$0xf]
        %v1190 = vld [vmem:[%s1168 + $0x7c] sm:$0xf]
        %v1191 = vld [vmem:[%s1168 + $0x84] sm:$0xf]
        %v1192 = vld [vmem:[%s1168 + $0x88] sm:$0xf]
        %v1193 = vld [vmem:[%s1168 + $0x90] sm:$0xf]
        %v1194 = vld [vmem:[%s1168 + $0x94] sm:$0xf]
        %v1195 = vld [vmem:[%s1168 + $0x9c] sm:$0xf]
        %v1196 = vld [vmem:[%s1168 + $0xa0] sm:$0xf]
        %v1197 = vld [vmem:[%s1168 + $0xa8] sm:$0xf]
        %v1198 = vld [vmem:[%s1168 + $0xac] sm:$0xf]
        %v1199 = vld [vmem:[%s1168 + $0xb4] sm:$0xf]
        %v1200 = vld [vmem:[%s1168 + $0xb8] sm:$0xf]
        %1233 = vrot.lane.b32.xlu0 %v1169, 12
        %v1234 = vpop.permute.xlu0 %1233
        %1235 = vrot.lane.b32.xlu0 %v1170, 12
        %v1236 = vpop.permute.xlu0 %1235
        %1237 = vrot.lane.b32.xlu0 %v1171, 12
        %v1238 = vpop.permute.xlu0 %1237
        %1239 = vrot.lane.b32.xlu0 %v1172, 12
        %v1240 = vpop.permute.xlu0 %1239
        %1241 = vrot.lane.b32.xlu0 %v1173, 12
        %v1242 = vpop.permute.xlu0 %1241
        %1243 = vrot.lane.b32.xlu0 %v1174, 12
        %v1244 = vpop.permute.xlu0 %1243
        %1245 = vrot.lane.b32.xlu0 %v1175, 12
        %v1246 = vpop.permute.xlu0 %1245
        %1247 = vrot.lane.b32.xlu0 %v1176, 12
        %v1248 = vpop.permute.xlu0 %1247
        %1249 = vrot.lane.b32.xlu0 %v1177, 12
        %v1250 = vpop.permute.xlu0 %1249
        %1251 = vrot.lane.b32.xlu0 %v1178, 12
        %v1252 = vpop.permute.xlu0 %1251
        %1253 = vrot.lane.b32.xlu0 %v1179, 12
        %v1254 = vpop.permute.xlu0 %1253
        %1255 = vrot.lane.b32.xlu0 %v1180, 12
        %v1256 = vpop.permute.xlu0 %1255
        %1257 = vrot.lane.b32.xlu0 %v1181, 12
        %v1258 = vpop.permute.xlu0 %1257
        %1259 = vrot.lane.b32.xlu0 %v1182, 12
        %v1260 = vpop.permute.xlu0 %1259
        %1261 = vrot.lane.b32.xlu0 %v1183, 12
        %v1262 = vpop.permute.xlu0 %1261
        %1263 = vrot.lane.b32.xlu0 %v1184, 12
        %v1264 = vpop.permute.xlu0 %1263
        %1265 = vrot.lane.b32.xlu0 %v1185, 12
        %v1266 = vpop.permute.xlu0 %1265
        %1267 = vrot.lane.b32.xlu0 %v1186, 12
        %v1268 = vpop.permute.xlu0 %1267
        %1269 = vrot.lane.b32.xlu0 %v1187, 12
        %v1270 = vpop.permute.xlu0 %1269
        %1271 = vrot.lane.b32.xlu0 %v1188, 12
        %v1272 = vpop.permute.xlu0 %1271
        %1273 = vrot.lane.b32.xlu0 %v1189, 12
        %v1274 = vpop.permute.xlu0 %1273
        %1275 = vrot.lane.b32.xlu0 %v1190, 12
        %v1276 = vpop.permute.xlu0 %1275
        %1277 = vrot.lane.b32.xlu0 %v1191, 12
        %v1278 = vpop.permute.xlu0 %1277
        %1279 = vrot.lane.b32.xlu0 %v1192, 12
        %v1280 = vpop.permute.xlu0 %1279
        %1281 = vrot.lane.b32.xlu0 %v1193, 12
        %v1282 = vpop.permute.xlu0 %1281
        %1283 = vrot.lane.b32.xlu0 %v1194, 12
        %v1284 = vpop.permute.xlu0 %1283
        %1285 = vrot.lane.b32.xlu0 %v1195, 12
        %v1286 = vpop.permute.xlu0 %1285
        %1287 = vrot.lane.b32.xlu0 %v1196, 12
        %v1288 = vpop.permute.xlu0 %1287
        %1289 = vrot.lane.b32.xlu0 %v1197, 12
        %v1290 = vpop.permute.xlu0 %1289
        %1291 = vrot.lane.b32.xlu0 %v1198, 12
        %v1292 = vpop.permute.xlu0 %1291
        %1293 = vrot.lane.b32.xlu0 %v1199, 12
        %v1294 = vpop.permute.xlu0 %1293
        %1295 = vrot.lane.b32.xlu0 %v1200, 12
        %v1296 = vpop.permute.xlu0 %1295
        %vm1329 = vcmask 126048
        %1330 = vst.msk [vmem:[#allocation2] sm:$0xf] %vm1329, %v1234
        %1331 = vst.msk [vmem:[#allocation2 + $0x4] sm:$0xf] %vm1329, %v1236
        %1332 = vst.msk [vmem:[#allocation2 + $0x8] sm:$0xf] %vm1329, %v1238
        %1333 = vst.msk [vmem:[#allocation2 + $0xc] sm:$0xf] %vm1329, %v1240
        %1334 = vst.msk [vmem:[#allocation2 + $0x10] sm:$0xf] %vm1329, %v1242
        %1335 = vst.msk [vmem:[#allocation2 + $0x14] sm:$0xf] %vm1329, %v1244
        %1336 = vst.msk [vmem:[#allocation2 + $0x18] sm:$0xf] %vm1329, %v1246
        %1337 = vst.msk [vmem:[#allocation2 + $0x1c] sm:$0xf] %vm1329, %v1248
        %1338 = vst.msk [vmem:[#allocation2 + $0x20] sm:$0xf] %vm1329, %v1250
        %1339 = vst.msk [vmem:[#allocation2 + $0x24] sm:$0xf] %vm1329, %v1252
        %1340 = vst.msk [vmem:[#allocation2 + $0x28] sm:$0xf] %vm1329, %v1254
        %1341 = vst.msk [vmem:[#allocation2 + $0x2c] sm:$0xf] %vm1329, %v1256
        %1342 = vst.msk [vmem:[#allocation2 + $0x30] sm:$0xf] %vm1329, %v1258
        %1343 = vst.msk [vmem:[#allocation2 + $0x34] sm:$0xf] %vm1329, %v1260
        %1344 = vst.msk [vmem:[#allocation2 + $0x38] sm:$0xf] %vm1329, %v1262
        %1345 = vst.msk [vmem:[#allocation2 + $0x3c] sm:$0xf] %vm1329, %v1264
        %1346 = vst.msk [vmem:[#allocation2 + $0x40] sm:$0xf] %vm1329, %v1266
        %1347 = vst.msk [vmem:[#allocation2 + $0x44] sm:$0xf] %vm1329, %v1268
        %1348 = vst.msk [vmem:[#allocation2 + $0x48] sm:$0xf] %vm1329, %v1270
        %1349 = vst.msk [vmem:[#allocation2 + $0x4c] sm:$0xf] %vm1329, %v1272
        %1350 = vst.msk [vmem:[#allocation2 + $0x50] sm:$0xf] %vm1329, %v1274
        %1351 = vst.msk [vmem:[#allocation2 + $0x54] sm:$0xf] %vm1329, %v1276
        %1352 = vst.msk [vmem:[#allocation2 + $0x58] sm:$0xf] %vm1329, %v1278
        %1353 = vst.msk [vmem:[#allocation2 + $0x5c] sm:$0xf] %vm1329, %v1280
        %1354 = vst.msk [vmem:[#allocation2 + $0x60] sm:$0xf] %vm1329, %v1282
        %1355 = vst.msk [vmem:[#allocation2 + $0x64] sm:$0xf] %vm1329, %v1284
        %1356 = vst.msk [vmem:[#allocation2 + $0x68] sm:$0xf] %vm1329, %v1286
        %1357 = vst.msk [vmem:[#allocation2 + $0x6c] sm:$0xf] %vm1329, %v1288
        %1358 = vst.msk [vmem:[#allocation2 + $0x70] sm:$0xf] %vm1329, %v1290
        %1359 = vst.msk [vmem:[#allocation2 + $0x74] sm:$0xf] %vm1329, %v1292
        %1360 = vst.msk [vmem:[#allocation2 + $0x78] sm:$0xf] %vm1329, %v1294
        %1361 = vst.msk [vmem:[#allocation2 + $0x7c] sm:$0xf] %vm1329, %v1296
        %v1362 = vld [vmem:[%s1168] sm:$0xf]
        %v1363 = vld [vmem:[%s1168 + $0x4] sm:$0xf]
        %v1364 = vld [vmem:[%s1168 + $0x8] sm:$0x1]
        %v1365 = vld [vmem:[%s1168 + $0xc] sm:$0xf]
        %v1366 = vld [vmem:[%s1168 + $0x10] sm:$0xf]
        %v1367 = vld [vmem:[%s1168 + $0x14] sm:$0x1]
        %v1368 = vld [vmem:[%s1168 + $0x18] sm:$0xf]
        %v1369 = vld [vmem:[%s1168 + $0x1c] sm:$0xf]
        %v1370 = vld [vmem:[%s1168 + $0x20] sm:$0x1]
        %v1371 = vld [vmem:[%s1168 + $0x24] sm:$0xf]
        %v1372 = vld [vmem:[%s1168 + $0x28] sm:$0xf]
        %v1373 = vld [vmem:[%s1168 + $0x2c] sm:$0x1]
        %v1374 = vld [vmem:[%s1168 + $0x30] sm:$0xf]
        %v1375 = vld [vmem:[%s1168 + $0x34] sm:$0xf]
        %v1376 = vld [vmem:[%s1168 + $0x38] sm:$0x1]
        %v1377 = vld [vmem:[%s1168 + $0x3c] sm:$0xf]
        %v1378 = vld [vmem:[%s1168 + $0x40] sm:$0xf]
        %v1379 = vld [vmem:[%s1168 + $0x44] sm:$0x1]
        %v1380 = vld [vmem:[%s1168 + $0x48] sm:$0xf]
        %v1381 = vld [vmem:[%s1168 + $0x4c] sm:$0xf]
        %v1382 = vld [vmem:[%s1168 + $0x50] sm:$0x1]
        %v1383 = vld [vmem:[%s1168 + $0x54] sm:$0xf]
        %v1384 = vld [vmem:[%s1168 + $0x58] sm:$0xf]
        %v1385 = vld [vmem:[%s1168 + $0x5c] sm:$0x1]
        %v1386 = vld [vmem:[%s1168 + $0x60] sm:$0xf]
        %v1387 = vld [vmem:[%s1168 + $0x64] sm:$0xf]
        %v1388 = vld [vmem:[%s1168 + $0x68] sm:$0x1]
        %v1389 = vld [vmem:[%s1168 + $0x6c] sm:$0xf]
        %v1390 = vld [vmem:[%s1168 + $0x70] sm:$0xf]
        %v1391 = vld [vmem:[%s1168 + $0x74] sm:$0x1]
        %v1392 = vld [vmem:[%s1168 + $0x78] sm:$0xf]
        %v1393 = vld [vmem:[%s1168 + $0x7c] sm:$0xf]
        %v1394 = vld [vmem:[%s1168 + $0x80] sm:$0x1]
        %v1395 = vld [vmem:[%s1168 + $0x84] sm:$0xf]
        %v1396 = vld [vmem:[%s1168 + $0x88] sm:$0xf]
        %v1397 = vld [vmem:[%s1168 + $0x8c] sm:$0x1]
        %v1398 = vld [vmem:[%s1168 + $0x90] sm:$0xf]
        %v1399 = vld [vmem:[%s1168 + $0x94] sm:$0xf]
        %v1400 = vld [vmem:[%s1168 + $0x98] sm:$0x1]
        %v1401 = vld [vmem:[%s1168 + $0x9c] sm:$0xf]
        %v1402 = vld [vmem:[%s1168 + $0xa0] sm:$0xf]
        %v1403 = vld [vmem:[%s1168 + $0xa4] sm:$0x1]
        %v1404 = vld [vmem:[%s1168 + $0xa8] sm:$0xf]
        %v1405 = vld [vmem:[%s1168 + $0xac] sm:$0xf]
        %v1406 = vld [vmem:[%s1168 + $0xb0] sm:$0x1]
        %v1407 = vld [vmem:[%s1168 + $0xb4] sm:$0xf]
        %v1408 = vld [vmem:[%s1168 + $0xb8] sm:$0xf]
        %v1409 = vld [vmem:[%s1168 + $0xbc] sm:$0x1]
        %v1411 = vshrl.u32 %v1362, 16
        %v1413 = vrot.slane %v1411, 4
        %v1414 = vshll.u32 %v1362, 16
        %v1416 = vrot.slane %v1414, 5
        %v1417 = vor.u32 %v1413, %v1416
        %v1418 = vrot.slane %v1417, 4
        %v1420 = vshll.u32 %v1363, 16
        %v1422 = vrot.slane %v1420, 5
        %v1423 = vsel %vm314, %v1418, %v1422
        %v1424 = vshrl.u32 %v1363, 16
        %v1426 = vrot.slane %v1424, 4
        %v1427 = vor.u32 %v1426, %v1422
        %v1428 = vrot.slane %v1427, 4
        %v1430 = vshll.u32 %v1364, 16
        %v1432 = vrot.slane %v1430, 5
        %v1433 = vsel %vm314, %v1428, %v1432
        %v1435 = vshrl.u32 %v1365, 16
        %v1437 = vrot.slane %v1435, 4
        %v1438 = vshll.u32 %v1365, 16
        %v1440 = vrot.slane %v1438, 5
        %v1441 = vor.u32 %v1437, %v1440
        %v1442 = vrot.slane %v1441, 4
        %v1444 = vshll.u32 %v1366, 16
        %v1446 = vrot.slane %v1444, 5
        %v1447 = vsel %vm314, %v1442, %v1446
        %v1448 = vshrl.u32 %v1366, 16
        %v1450 = vrot.slane %v1448, 4
        %v1451 = vor.u32 %v1450, %v1446
        %v1452 = vrot.slane %v1451, 4
        %v1454 = vshll.u32 %v1367, 16
        %v1456 = vrot.slane %v1454, 5
        %v1457 = vsel %vm314, %v1452, %v1456
        %v1459 = vshrl.u32 %v1368, 16
        %v1461 = vrot.slane %v1459, 4
        %v1462 = vshll.u32 %v1368, 16
        %v1464 = vrot.slane %v1462, 5
        %v1465 = vor.u32 %v1461, %v1464
        %v1466 = vrot.slane %v1465, 4
        %v1468 = vshll.u32 %v1369, 16
        %v1470 = vrot.slane %v1468, 5
        %v1471 = vsel %vm314, %v1466, %v1470
        %v1472 = vshrl.u32 %v1369, 16
        %v1474 = vrot.slane %v1472, 4
        %v1475 = vor.u32 %v1474, %v1470
        %v1476 = vrot.slane %v1475, 4
        %v1478 = vshll.u32 %v1370, 16
        %v1480 = vrot.slane %v1478, 5
        %v1481 = vsel %vm314, %v1476, %v1480
        %v1483 = vshrl.u32 %v1371, 16
        %v1485 = vrot.slane %v1483, 4
        %v1486 = vshll.u32 %v1371, 16
        %v1488 = vrot.slane %v1486, 5
        %v1489 = vor.u32 %v1485, %v1488
        %v1490 = vrot.slane %v1489, 4
        %v1492 = vshll.u32 %v1372, 16
        %v1494 = vrot.slane %v1492, 5
        %v1495 = vsel %vm314, %v1490, %v1494
        %v1496 = vshrl.u32 %v1372, 16
        %v1498 = vrot.slane %v1496, 4
        %v1499 = vor.u32 %v1498, %v1494
        %v1500 = vrot.slane %v1499, 4
        %v1502 = vshll.u32 %v1373, 16
        %v1504 = vrot.slane %v1502, 5
        %v1505 = vsel %vm314, %v1500, %v1504
        %v1507 = vshrl.u32 %v1374, 16
        %v1509 = vrot.slane %v1507, 4
        %v1510 = vshll.u32 %v1374, 16
        %v1512 = vrot.slane %v1510, 5
        %v1513 = vor.u32 %v1509, %v1512
        %v1514 = vrot.slane %v1513, 4
        %v1516 = vshll.u32 %v1375, 16
        %v1518 = vrot.slane %v1516, 5
        %v1519 = vsel %vm314, %v1514, %v1518
        %v1520 = vshrl.u32 %v1375, 16
        %v1522 = vrot.slane %v1520, 4
        %v1523 = vor.u32 %v1522, %v1518
        %v1524 = vrot.slane %v1523, 4
        %v1526 = vshll.u32 %v1376, 16
        %v1528 = vrot.slane %v1526, 5
        %v1529 = vsel %vm314, %v1524, %v1528
        %v1531 = vshrl.u32 %v1377, 16
        %v1533 = vrot.slane %v1531, 4
        %v1534 = vshll.u32 %v1377, 16
        %v1536 = vrot.slane %v1534, 5
        %v1537 = vor.u32 %v1533, %v1536
        %v1538 = vrot.slane %v1537, 4
        %v1540 = vshll.u32 %v1378, 16
        %v1542 = vrot.slane %v1540, 5
        %v1543 = vsel %vm314, %v1538, %v1542
        %v1544 = vshrl.u32 %v1378, 16
        %v1546 = vrot.slane %v1544, 4
        %v1547 = vor.u32 %v1546, %v1542
        %v1548 = vrot.slane %v1547, 4
        %v1550 = vshll.u32 %v1379, 16
        %v1552 = vrot.slane %v1550, 5
        %v1553 = vsel %vm314, %v1548, %v1552
        %v1555 = vshrl.u32 %v1380, 16
        %v1557 = vrot.slane %v1555, 4
        %v1558 = vshll.u32 %v1380, 16
        %v1560 = vrot.slane %v1558, 5
        %v1561 = vor.u32 %v1557, %v1560
        %v1562 = vrot.slane %v1561, 4
        %v1564 = vshll.u32 %v1381, 16
        %v1566 = vrot.slane %v1564, 5
        %v1567 = vsel %vm314, %v1562, %v1566
        %v1568 = vshrl.u32 %v1381, 16
        %v1570 = vrot.slane %v1568, 4
        %v1571 = vor.u32 %v1570, %v1566
        %v1572 = vrot.slane %v1571, 4
        %v1574 = vshll.u32 %v1382, 16
        %v1576 = vrot.slane %v1574, 5
        %v1577 = vsel %vm314, %v1572, %v1576
        %v1579 = vshrl.u32 %v1383, 16
        %v1581 = vrot.slane %v1579, 4
        %v1582 = vshll.u32 %v1383, 16
        %v1584 = vrot.slane %v1582, 5
        %v1585 = vor.u32 %v1581, %v1584
        %v1586 = vrot.slane %v1585, 4
        %v1588 = vshll.u32 %v1384, 16
        %v1590 = vrot.slane %v1588, 5
        %v1591 = vsel %vm314, %v1586, %v1590
        %v1592 = vshrl.u32 %v1384, 16
        %v1594 = vrot.slane %v1592, 4
        %v1595 = vor.u32 %v1594, %v1590
        %v1596 = vrot.slane %v1595, 4
        %v1598 = vshll.u32 %v1385, 16
        %v1600 = vrot.slane %v1598, 5
        %v1601 = vsel %vm314, %v1596, %v1600
        %v1603 = vshrl.u32 %v1386, 16
        %v1605 = vrot.slane %v1603, 4
        %v1606 = vshll.u32 %v1386, 16
        %v1608 = vrot.slane %v1606, 5
        %v1609 = vor.u32 %v1605, %v1608
        %v1610 = vrot.slane %v1609, 4
        %v1612 = vshll.u32 %v1387, 16
        %v1614 = vrot.slane %v1612, 5
        %v1615 = vsel %vm314, %v1610, %v1614
        %v1616 = vshrl.u32 %v1387, 16
        %v1618 = vrot.slane %v1616, 4
        %v1619 = vor.u32 %v1618, %v1614
        %v1620 = vrot.slane %v1619, 4
        %v1622 = vshll.u32 %v1388, 16
        %v1624 = vrot.slane %v1622, 5
        %v1625 = vsel %vm314, %v1620, %v1624
        %v1627 = vshrl.u32 %v1389, 16
        %v1629 = vrot.slane %v1627, 4
        %v1630 = vshll.u32 %v1389, 16
        %v1632 = vrot.slane %v1630, 5
        %v1633 = vor.u32 %v1629, %v1632
        %v1634 = vrot.slane %v1633, 4
        %v1636 = vshll.u32 %v1390, 16
        %v1638 = vrot.slane %v1636, 5
        %v1639 = vsel %vm314, %v1634, %v1638
        %v1640 = vshrl.u32 %v1390, 16
        %v1642 = vrot.slane %v1640, 4
        %v1643 = vor.u32 %v1642, %v1638
        %v1644 = vrot.slane %v1643, 4
        %v1646 = vshll.u32 %v1391, 16
        %v1648 = vrot.slane %v1646, 5
        %v1649 = vsel %vm314, %v1644, %v1648
        %v1651 = vshrl.u32 %v1392, 16
        %v1653 = vrot.slane %v1651, 4
        %v1654 = vshll.u32 %v1392, 16
        %v1656 = vrot.slane %v1654, 5
        %v1657 = vor.u32 %v1653, %v1656
        %v1658 = vrot.slane %v1657, 4
        %v1660 = vshll.u32 %v1393, 16
        %v1662 = vrot.slane %v1660, 5
        %v1663 = vsel %vm314, %v1658, %v1662
        %v1664 = vshrl.u32 %v1393, 16
        %v1666 = vrot.slane %v1664, 4
        %v1667 = vor.u32 %v1666, %v1662
        %v1668 = vrot.slane %v1667, 4
        %v1670 = vshll.u32 %v1394, 16
        %v1672 = vrot.slane %v1670, 5
        %v1673 = vsel %vm314, %v1668, %v1672
        %v1675 = vshrl.u32 %v1395, 16
        %v1677 = vrot.slane %v1675, 4
        %v1678 = vshll.u32 %v1395, 16
        %v1680 = vrot.slane %v1678, 5
        %v1681 = vor.u32 %v1677, %v1680
        %v1682 = vrot.slane %v1681, 4
        %v1684 = vshll.u32 %v1396, 16
        %v1686 = vrot.slane %v1684, 5
        %v1687 = vsel %vm314, %v1682, %v1686
        %v1688 = vshrl.u32 %v1396, 16
        %v1690 = vrot.slane %v1688, 4
        %v1691 = vor.u32 %v1690, %v1686
        %v1692 = vrot.slane %v1691, 4
        %v1694 = vshll.u32 %v1397, 16
        %v1696 = vrot.slane %v1694, 5
        %v1697 = vsel %vm314, %v1692, %v1696
        %v1699 = vshrl.u32 %v1398, 16
        %v1701 = vrot.slane %v1699, 4
        %v1702 = vshll.u32 %v1398, 16
        %v1704 = vrot.slane %v1702, 5
        %v1705 = vor.u32 %v1701, %v1704
        %v1706 = vrot.slane %v1705, 4
        %v1708 = vshll.u32 %v1399, 16
        %v1710 = vrot.slane %v1708, 5
        %v1711 = vsel %vm314, %v1706, %v1710
        %v1712 = vshrl.u32 %v1399, 16
        %v1714 = vrot.slane %v1712, 4
        %v1715 = vor.u32 %v1714, %v1710
        %v1716 = vrot.slane %v1715, 4
        %v1718 = vshll.u32 %v1400, 16
        %v1720 = vrot.slane %v1718, 5
        %v1721 = vsel %vm314, %v1716, %v1720
        %v1723 = vshrl.u32 %v1401, 16
        %v1725 = vrot.slane %v1723, 4
        %v1726 = vshll.u32 %v1401, 16
        %v1728 = vrot.slane %v1726, 5
        %v1729 = vor.u32 %v1725, %v1728
        %v1730 = vrot.slane %v1729, 4
        %v1732 = vshll.u32 %v1402, 16
        %v1734 = vrot.slane %v1732, 5
        %v1735 = vsel %vm314, %v1730, %v1734
        %v1736 = vshrl.u32 %v1402, 16
        %v1738 = vrot.slane %v1736, 4
        %v1739 = vor.u32 %v1738, %v1734
        %v1740 = vrot.slane %v1739, 4
        %v1742 = vshll.u32 %v1403, 16
        %v1744 = vrot.slane %v1742, 5
        %v1745 = vsel %vm314, %v1740, %v1744
        %v1747 = vshrl.u32 %v1404, 16
        %v1749 = vrot.slane %v1747, 4
        %v1750 = vshll.u32 %v1404, 16
        %v1752 = vrot.slane %v1750, 5
        %v1753 = vor.u32 %v1749, %v1752
        %v1754 = vrot.slane %v1753, 4
        %v1756 = vshll.u32 %v1405, 16
        %v1758 = vrot.slane %v1756, 5
        %v1759 = vsel %vm314, %v1754, %v1758
        %v1760 = vshrl.u32 %v1405, 16
        %v1762 = vrot.slane %v1760, 4
        %v1763 = vor.u32 %v1762, %v1758
        %v1764 = vrot.slane %v1763, 4
        %v1766 = vshll.u32 %v1406, 16
        %v1768 = vrot.slane %v1766, 5
        %v1769 = vsel %vm314, %v1764, %v1768
        %v1771 = vshrl.u32 %v1407, 16
        %v1773 = vrot.slane %v1771, 4
        %v1774 = vshll.u32 %v1407, 16
        %v1776 = vrot.slane %v1774, 5
        %v1777 = vor.u32 %v1773, %v1776
        %v1778 = vrot.slane %v1777, 4
        %v1780 = vshll.u32 %v1408, 16
        %v1782 = vrot.slane %v1780, 5
        %v1783 = vsel %vm314, %v1778, %v1782
        %v1784 = vshrl.u32 %v1408, 16
        %v1786 = vrot.slane %v1784, 4
        %v1787 = vor.u32 %v1786, %v1782
        %v1788 = vrot.slane %v1787, 4
        %v1790 = vshll.u32 %v1409, 16
        %v1792 = vrot.slane %v1790, 5
        %v1793 = vsel %vm314, %v1788, %v1792
        %1794 = vrot.lane.b32.xlu0 %v1423, 16
        %v1795 = vpop.permute.xlu0 %1794
        %1796 = vrot.lane.b32.xlu0 %v1433, 16
        %v1797 = vpop.permute.xlu0 %1796
        %1798 = vrot.lane.b32.xlu0 %v1447, 16
        %v1799 = vpop.permute.xlu0 %1798
        %1800 = vrot.lane.b32.xlu0 %v1457, 16
        %v1801 = vpop.permute.xlu0 %1800
        %1802 = vrot.lane.b32.xlu0 %v1471, 16
        %v1803 = vpop.permute.xlu0 %1802
        %1804 = vrot.lane.b32.xlu0 %v1481, 16
        %v1805 = vpop.permute.xlu0 %1804
        %1806 = vrot.lane.b32.xlu0 %v1495, 16
        %v1807 = vpop.permute.xlu0 %1806
        %1808 = vrot.lane.b32.xlu0 %v1505, 16
        %v1809 = vpop.permute.xlu0 %1808
        %1810 = vrot.lane.b32.xlu0 %v1519, 16
        %v1811 = vpop.permute.xlu0 %1810
        %1812 = vrot.lane.b32.xlu0 %v1529, 16
        %v1813 = vpop.permute.xlu0 %1812
        %1814 = vrot.lane.b32.xlu0 %v1543, 16
        %v1815 = vpop.permute.xlu0 %1814
        %1816 = vrot.lane.b32.xlu0 %v1553, 16
        %v1817 = vpop.permute.xlu0 %1816
        %1818 = vrot.lane.b32.xlu0 %v1567, 16
        %v1819 = vpop.permute.xlu0 %1818
        %1820 = vrot.lane.b32.xlu0 %v1577, 16
        %v1821 = vpop.permute.xlu0 %1820
        %1822 = vrot.lane.b32.xlu0 %v1591, 16
        %v1823 = vpop.permute.xlu0 %1822
        %1824 = vrot.lane.b32.xlu0 %v1601, 16
        %v1825 = vpop.permute.xlu0 %1824
        %1826 = vrot.lane.b32.xlu0 %v1615, 16
        %v1827 = vpop.permute.xlu0 %1826
        %1828 = vrot.lane.b32.xlu0 %v1625, 16
        %v1829 = vpop.permute.xlu0 %1828
        %1830 = vrot.lane.b32.xlu0 %v1639, 16
        %v1831 = vpop.permute.xlu0 %1830
        %1832 = vrot.lane.b32.xlu0 %v1649, 16
        %v1833 = vpop.permute.xlu0 %1832
        %1834 = vrot.lane.b32.xlu0 %v1663, 16
        %v1835 = vpop.permute.xlu0 %1834
        %1836 = vrot.lane.b32.xlu0 %v1673, 16
        %v1837 = vpop.permute.xlu0 %1836
        %1838 = vrot.lane.b32.xlu0 %v1687, 16
        %v1839 = vpop.permute.xlu0 %1838
        %1840 = vrot.lane.b32.xlu0 %v1697, 16
        %v1841 = vpop.permute.xlu0 %1840
        %1842 = vrot.lane.b32.xlu0 %v1711, 16
        %v1843 = vpop.permute.xlu0 %1842
        %1844 = vrot.lane.b32.xlu0 %v1721, 16
        %v1845 = vpop.permute.xlu0 %1844
        %1846 = vrot.lane.b32.xlu0 %v1735, 16
        %v1847 = vpop.permute.xlu0 %1846
        %1848 = vrot.lane.b32.xlu0 %v1745, 16
        %v1849 = vpop.permute.xlu0 %1848
        %1850 = vrot.lane.b32.xlu0 %v1759, 16
        %v1851 = vpop.permute.xlu0 %1850
        %1852 = vrot.lane.b32.xlu0 %v1769, 16
        %v1853 = vpop.permute.xlu0 %1852
        %1854 = vrot.lane.b32.xlu0 %v1783, 16
        %v1855 = vpop.permute.xlu0 %1854
        %1856 = vrot.lane.b32.xlu0 %v1793, 16
        %v1857 = vpop.permute.xlu0 %1856
        %vm1890 = vcmask 158848
        %1891 = vst.msk [vmem:[#allocation2] sm:$0xf] %vm1890, %v1795
        %1892 = vst.msk [vmem:[#allocation2 + $0x4] sm:$0xf] %vm1890, %v1797
        %1893 = vst.msk [vmem:[#allocation2 + $0x8] sm:$0xf] %vm1890, %v1799
        %1894 = vst.msk [vmem:[#allocation2 + $0xc] sm:$0xf] %vm1890, %v1801
        %1895 = vst.msk [vmem:[#allocation2 + $0x10] sm:$0xf] %vm1890, %v1803
        %1896 = vst.msk [vmem:[#allocation2 + $0x14] sm:$0xf] %vm1890, %v1805
        %1897 = vst.msk [vmem:[#allocation2 + $0x18] sm:$0xf] %vm1890, %v1807
        %1898 = vst.msk [vmem:[#allocation2 + $0x1c] sm:$0xf] %vm1890, %v1809
        %1899 = vst.msk [vmem:[#allocation2 + $0x20] sm:$0xf] %vm1890, %v1811
        %1900 = vst.msk [vmem:[#allocation2 + $0x24] sm:$0xf] %vm1890, %v1813
        %1901 = vst.msk [vmem:[#allocation2 + $0x28] sm:$0xf] %vm1890, %v1815
        %1902 = vst.msk [vmem:[#allocation2 + $0x2c] sm:$0xf] %vm1890, %v1817
        %1903 = vst.msk [vmem:[#allocation2 + $0x30] sm:$0xf] %vm1890, %v1819
        %1904 = vst.msk [vmem:[#allocation2 + $0x34] sm:$0xf] %vm1890, %v1821
        %1905 = vst.msk [vmem:[#allocation2 + $0x38] sm:$0xf] %vm1890, %v1823
        %1906 = vst.msk [vmem:[#allocation2 + $0x3c] sm:$0xf] %vm1890, %v1825
        %1907 = vst.msk [vmem:[#allocation2 + $0x40] sm:$0xf] %vm1890, %v1827
        %1908 = vst.msk [vmem:[#allocation2 + $0x44] sm:$0xf] %vm1890, %v1829
        %1909 = vst.msk [vmem:[#allocation2 + $0x48] sm:$0xf] %vm1890, %v1831
        %1910 = vst.msk [vmem:[#allocation2 + $0x4c] sm:$0xf] %vm1890, %v1833
        %1911 = vst.msk [vmem:[#allocation2 + $0x50] sm:$0xf] %vm1890, %v1835
        %1912 = vst.msk [vmem:[#allocation2 + $0x54] sm:$0xf] %vm1890, %v1837
        %1913 = vst.msk [vmem:[#allocation2 + $0x58] sm:$0xf] %vm1890, %v1839
        %1914 = vst.msk [vmem:[#allocation2 + $0x5c] sm:$0xf] %vm1890, %v1841
        %1915 = vst.msk [vmem:[#allocation2 + $0x60] sm:$0xf] %vm1890, %v1843
        %1916 = vst.msk [vmem:[#allocation2 + $0x64] sm:$0xf] %vm1890, %v1845
        %1917 = vst.msk [vmem:[#allocation2 + $0x68] sm:$0xf] %vm1890, %v1847
        %1918 = vst.msk [vmem:[#allocation2 + $0x6c] sm:$0xf] %vm1890, %v1849
        %1919 = vst.msk [vmem:[#allocation2 + $0x70] sm:$0xf] %vm1890, %v1851
        %1920 = vst.msk [vmem:[#allocation2 + $0x74] sm:$0xf] %vm1890, %v1853
        %1921 = vst.msk [vmem:[#allocation2 + $0x78] sm:$0xf] %vm1890, %v1855
        %1922 = vst.msk [vmem:[#allocation2 + $0x7c] sm:$0xf] %vm1890, %v1857
        %v1923 = vld [vmem:[%s1168] sm:$0xe]
        %v1924 = vld [vmem:[%s1168 + $0x4] sm:$0xf]
        %v1925 = vld [vmem:[%s1168 + $0x8] sm:$0x1]
        %v1926 = vld [vmem:[%s1168 + $0xc] sm:$0xe]
        %v1927 = vld [vmem:[%s1168 + $0x10] sm:$0xf]
        %v1928 = vld [vmem:[%s1168 + $0x14] sm:$0x1]
        %v1929 = vld [vmem:[%s1168 + $0x18] sm:$0xe]
        %v1930 = vld [vmem:[%s1168 + $0x1c] sm:$0xf]
        %v1931 = vld [vmem:[%s1168 + $0x20] sm:$0x1]
        %v1932 = vld [vmem:[%s1168 + $0x24] sm:$0xe]
        %v1933 = vld [vmem:[%s1168 + $0x28] sm:$0xf]
        %v1934 = vld [vmem:[%s1168 + $0x2c] sm:$0x1]
        %v1935 = vld [vmem:[%s1168 + $0x30] sm:$0xe]
        %v1936 = vld [vmem:[%s1168 + $0x34] sm:$0xf]
        %v1937 = vld [vmem:[%s1168 + $0x38] sm:$0x1]
        %v1938 = vld [vmem:[%s1168 + $0x3c] sm:$0xe]
        %v1939 = vld [vmem:[%s1168 + $0x40] sm:$0xf]
        %v1940 = vld [vmem:[%s1168 + $0x44] sm:$0x1]
        %v1941 = vld [vmem:[%s1168 + $0x48] sm:$0xe]
        %v1942 = vld [vmem:[%s1168 + $0x4c] sm:$0xf]
        %v1943 = vld [vmem:[%s1168 + $0x50] sm:$0x1]
        %v1944 = vld [vmem:[%s1168 + $0x54] sm:$0xe]
        %v1945 = vld [vmem:[%s1168 + $0x58] sm:$0xf]
        %v1946 = vld [vmem:[%s1168 + $0x5c] sm:$0x1]
        %v1947 = vld [vmem:[%s1168 + $0x60] sm:$0xe]
        %v1948 = vld [vmem:[%s1168 + $0x64] sm:$0xf]
        %v1949 = vld [vmem:[%s1168 + $0x68] sm:$0x1]
        %v1950 = vld [vmem:[%s1168 + $0x6c] sm:$0xe]
        %v1951 = vld [vmem:[%s1168 + $0x70] sm:$0xf]
        %v1952 = vld [vmem:[%s1168 + $0x74] sm:$0x1]
        %v1953 = vld [vmem:[%s1168 + $0x78] sm:$0xe]
        %v1954 = vld [vmem:[%s1168 + $0x7c] sm:$0xf]
        %v1955 = vld [vmem:[%s1168 + $0x80] sm:$0x1]
        %v1956 = vld [vmem:[%s1168 + $0x84] sm:$0xe]
        %v1957 = vld [vmem:[%s1168 + $0x88] sm:$0xf]
        %v1958 = vld [vmem:[%s1168 + $0x8c] sm:$0x1]
        %v1959 = vld [vmem:[%s1168 + $0x90] sm:$0xe]
        %v1960 = vld [vmem:[%s1168 + $0x94] sm:$0xf]
        %v1961 = vld [vmem:[%s1168 + $0x98] sm:$0x1]
        %v1962 = vld [vmem:[%s1168 + $0x9c] sm:$0xe]
        %v1963 = vld [vmem:[%s1168 + $0xa0] sm:$0xf]
        %v1964 = vld [vmem:[%s1168 + $0xa4] sm:$0x1]
        %v1965 = vld [vmem:[%s1168 + $0xa8] sm:$0xe]
        %v1966 = vld [vmem:[%s1168 + $0xac] sm:$0xf]
        %v1967 = vld [vmem:[%s1168 + $0xb0] sm:$0x1]
        %v1968 = vld [vmem:[%s1168 + $0xb4] sm:$0xe]
        %v1969 = vld [vmem:[%s1168 + $0xb8] sm:$0xf]
        %v1970 = vld [vmem:[%s1168 + $0xbc] sm:$0x1]
        %v2019 = vrot.slane %v1923, 5
        %v2020 = vrot.slane %v2019, 4
        %v2021 = vrot.slane %v1924, 5
        %v2022 = vsel %vm926, %v2020, %v2021
        %v2023 = vrot.slane %v2021, 4
        %v2024 = vrot.slane %v1925, 5
        %v2025 = vsel %vm926, %v2023, %v2024
        %v2026 = vrot.slane %v1926, 5
        %v2027 = vrot.slane %v2026, 4
        %v2028 = vrot.slane %v1927, 5
        %v2029 = vsel %vm926, %v2027, %v2028
        %v2030 = vrot.slane %v2028, 4
        %v2031 = vrot.slane %v1928, 5
        %v2032 = vsel %vm926, %v2030, %v2031
        %v2033 = vrot.slane %v1929, 5
        %v2034 = vrot.slane %v2033, 4
        %v2035 = vrot.slane %v1930, 5
        %v2036 = vsel %vm926, %v2034, %v2035
        %v2037 = vrot.slane %v2035, 4
        %v2038 = vrot.slane %v1931, 5
        %v2039 = vsel %vm926, %v2037, %v2038
        %v2040 = vrot.slane %v1932, 5
        %v2041 = vrot.slane %v2040, 4
        %v2042 = vrot.slane %v1933, 5
        %v2043 = vsel %vm926, %v2041, %v2042
        %v2044 = vrot.slane %v2042, 4
        %v2045 = vrot.slane %v1934, 5
        %v2046 = vsel %vm926, %v2044, %v2045
        %v2047 = vrot.slane %v1935, 5
        %v2048 = vrot.slane %v2047, 4
        %v2049 = vrot.slane %v1936, 5
        %v2050 = vsel %vm926, %v2048, %v2049
        %v2051 = vrot.slane %v2049, 4
        %v2052 = vrot.slane %v1937, 5
        %v2053 = vsel %vm926, %v2051, %v2052
        %v2054 = vrot.slane %v1938, 5
        %v2055 = vrot.slane %v2054, 4
        %v2056 = vrot.slane %v1939, 5
        %v2057 = vsel %vm926, %v2055, %v2056
        %v2058 = vrot.slane %v2056, 4
        %v2059 = vrot.slane %v1940, 5
        %v2060 = vsel %vm926, %v2058, %v2059
        %v2061 = vrot.slane %v1941, 5
        %v2062 = vrot.slane %v2061, 4
        %v2063 = vrot.slane %v1942, 5
        %v2064 = vsel %vm926, %v2062, %v2063
        %v2065 = vrot.slane %v2063, 4
        %v2066 = vrot.slane %v1943, 5
        %v2067 = vsel %vm926, %v2065, %v2066
        %v2068 = vrot.slane %v1944, 5
        %v2069 = vrot.slane %v2068, 4
        %v2070 = vrot.slane %v1945, 5
        %v2071 = vsel %vm926, %v2069, %v2070
        %v2072 = vrot.slane %v2070, 4
        %v2073 = vrot.slane %v1946, 5
        %v2074 = vsel %vm926, %v2072, %v2073
        %v2075 = vrot.slane %v1947, 5
        %v2076 = vrot.slane %v2075, 4
        %v2077 = vrot.slane %v1948, 5
        %v2078 = vsel %vm926, %v2076, %v2077
        %v2079 = vrot.slane %v2077, 4
        %v2080 = vrot.slane %v1949, 5
        %v2081 = vsel %vm926, %v2079, %v2080
        %v2082 = vrot.slane %v1950, 5
        %v2083 = vrot.slane %v2082, 4
        %v2084 = vrot.slane %v1951, 5
        %v2085 = vsel %vm926, %v2083, %v2084
        %v2086 = vrot.slane %v2084, 4
        %v2087 = vrot.slane %v1952, 5
        %v2088 = vsel %vm926, %v2086, %v2087
        %v2089 = vrot.slane %v1953, 5
        %v2090 = vrot.slane %v2089, 4
        %v2091 = vrot.slane %v1954, 5
        %v2092 = vsel %vm926, %v2090, %v2091
        %v2093 = vrot.slane %v2091, 4
        %v2094 = vrot.slane %v1955, 5
        %v2095 = vsel %vm926, %v2093, %v2094
        %v2096 = vrot.slane %v1956, 5
        %v2097 = vrot.slane %v2096, 4
        %v2098 = vrot.slane %v1957, 5
        %v2099 = vsel %vm926, %v2097, %v2098
        %v2100 = vrot.slane %v2098, 4
        %v2101 = vrot.slane %v1958, 5
        %v2102 = vsel %vm926, %v2100, %v2101
        %v2103 = vrot.slane %v1959, 5
        %v2104 = vrot.slane %v2103, 4
        %v2105 = vrot.slane %v1960, 5
        %v2106 = vsel %vm926, %v2104, %v2105
        %v2107 = vrot.slane %v2105, 4
        %v2108 = vrot.slane %v1961, 5
        %v2109 = vsel %vm926, %v2107, %v2108
        %v2110 = vrot.slane %v1962, 5
        %v2111 = vrot.slane %v2110, 4
        %v2112 = vrot.slane %v1963, 5
        %v2113 = vsel %vm926, %v2111, %v2112
        %v2114 = vrot.slane %v2112, 4
        %v2115 = vrot.slane %v1964, 5
        %v2116 = vsel %vm926, %v2114, %v2115
        %v2117 = vrot.slane %v1965, 5
        %v2118 = vrot.slane %v2117, 4
        %v2119 = vrot.slane %v1966, 5
        %v2120 = vsel %vm926, %v2118, %v2119
        %v2121 = vrot.slane %v2119, 4
        %v2122 = vrot.slane %v1967, 5
        %v2123 = vsel %vm926, %v2121, %v2122
        %v2124 = vrot.slane %v1968, 5
        %v2125 = vrot.slane %v2124, 4
        %v2126 = vrot.slane %v1969, 5
        %v2127 = vsel %vm926, %v2125, %v2126
        %v2128 = vrot.slane %v2126, 4
        %v2129 = vrot.slane %v1970, 5
        %v2130 = vsel %vm926, %v2128, %v2129
        %2131 = vrot.lane.b32.xlu0 %v2022, 20
        %v2132 = vpop.permute.xlu0 %2131
        %2133 = vrot.lane.b32.xlu0 %v2025, 20
        %v2134 = vpop.permute.xlu0 %2133
        %2135 = vrot.lane.b32.xlu0 %v2029, 20
        %v2136 = vpop.permute.xlu0 %2135
        %2137 = vrot.lane.b32.xlu0 %v2032, 20
        %v2138 = vpop.permute.xlu0 %2137
        %2139 = vrot.lane.b32.xlu0 %v2036, 20
        %v2140 = vpop.permute.xlu0 %2139
        %2141 = vrot.lane.b32.xlu0 %v2039, 20
        %v2142 = vpop.permute.xlu0 %2141
        %2143 = vrot.lane.b32.xlu0 %v2043, 20
        %v2144 = vpop.permute.xlu0 %2143
        %2145 = vrot.lane.b32.xlu0 %v2046, 20
        %v2146 = vpop.permute.xlu0 %2145
        %2147 = vrot.lane.b32.xlu0 %v2050, 20
        %v2148 = vpop.permute.xlu0 %2147
        %2149 = vrot.lane.b32.xlu0 %v2053, 20
        %v2150 = vpop.permute.xlu0 %2149
        %2151 = vrot.lane.b32.xlu0 %v2057, 20
        %v2152 = vpop.permute.xlu0 %2151
        %2153 = vrot.lane.b32.xlu0 %v2060, 20
        %v2154 = vpop.permute.xlu0 %2153
        %2155 = vrot.lane.b32.xlu0 %v2064, 20
        %v2156 = vpop.permute.xlu0 %2155
        %2157 = vrot.lane.b32.xlu0 %v2067, 20
        %v2158 = vpop.permute.xlu0 %2157
        %2159 = vrot.lane.b32.xlu0 %v2071, 20
        %v2160 = vpop.permute.xlu0 %2159
        %2161 = vrot.lane.b32.xlu0 %v2074, 20
        %v2162 = vpop.permute.xlu0 %2161
        %2163 = vrot.lane.b32.xlu0 %v2078, 20
        %v2164 = vpop.permute.xlu0 %2163
        %2165 = vrot.lane.b32.xlu0 %v2081, 20
        %v2166 = vpop.permute.xlu0 %2165
        %2167 = vrot.lane.b32.xlu0 %v2085, 20
        %v2168 = vpop.permute.xlu0 %2167
        %2169 = vrot.lane.b32.xlu0 %v2088, 20
        %v2170 = vpop.permute.xlu0 %2169
        %2171 = vrot.lane.b32.xlu0 %v2092, 20
        %v2172 = vpop.permute.xlu0 %2171
        %2173 = vrot.lane.b32.xlu0 %v2095, 20
        %v2174 = vpop.permute.xlu0 %2173
        %2175 = vrot.lane.b32.xlu0 %v2099, 20
        %v2176 = vpop.permute.xlu0 %2175
        %2177 = vrot.lane.b32.xlu0 %v2102, 20
        %v2178 = vpop.permute.xlu0 %2177
        %2179 = vrot.lane.b32.xlu0 %v2106, 20
        %v2180 = vpop.permute.xlu0 %2179
        %2181 = vrot.lane.b32.xlu0 %v2109, 20
        %v2182 = vpop.permute.xlu0 %2181
        %2183 = vrot.lane.b32.xlu0 %v2113, 20
        %v2184 = vpop.permute.xlu0 %2183
        %2185 = vrot.lane.b32.xlu0 %v2116, 20
        %v2186 = vpop.permute.xlu0 %2185
        %2187 = vrot.lane.b32.xlu0 %v2120, 20
        %v2188 = vpop.permute.xlu0 %2187
        %2189 = vrot.lane.b32.xlu0 %v2123, 20
        %v2190 = vpop.permute.xlu0 %2189
        %2191 = vrot.lane.b32.xlu0 %v2127, 20
        %v2192 = vpop.permute.xlu0 %2191
        %2193 = vrot.lane.b32.xlu0 %v2130, 20
        %v2194 = vpop.permute.xlu0 %2193
        %vm2227 = vcmask 191648
        %2228 = vst.msk [vmem:[#allocation2] sm:$0xf] %vm2227, %v2132
        %2229 = vst.msk [vmem:[#allocation2 + $0x4] sm:$0xf] %vm2227, %v2134
        %2230 = vst.msk [vmem:[#allocation2 + $0x8] sm:$0xf] %vm2227, %v2136
        %2231 = vst.msk [vmem:[#allocation2 + $0xc] sm:$0xf] %vm2227, %v2138
        %2232 = vst.msk [vmem:[#allocation2 + $0x10] sm:$0xf] %vm2227, %v2140
        %2233 = vst.msk [vmem:[#allocation2 + $0x14] sm:$0xf] %vm2227, %v2142
        %2234 = vst.msk [vmem:[#allocation2 + $0x18] sm:$0xf] %vm2227, %v2144
        %2235 = vst.msk [vmem:[#allocation2 + $0x1c] sm:$0xf] %vm2227, %v2146
        %2236 = vst.msk [vmem:[#allocation2 + $0x20] sm:$0xf] %vm2227, %v2148
        %2237 = vst.msk [vmem:[#allocation2 + $0x24] sm:$0xf] %vm2227, %v2150
        %2238 = vst.msk [vmem:[#allocation2 + $0x28] sm:$0xf] %vm2227, %v2152
        %2239 = vst.msk [vmem:[#allocation2 + $0x2c] sm:$0xf] %vm2227, %v2154
        %2240 = vst.msk [vmem:[#allocation2 + $0x30] sm:$0xf] %vm2227, %v2156
        %2241 = vst.msk [vmem:[#allocation2 + $0x34] sm:$0xf] %vm2227, %v2158
        %2242 = vst.msk [vmem:[#allocation2 + $0x38] sm:$0xf] %vm2227, %v2160
        %2243 = vst.msk [vmem:[#allocation2 + $0x3c] sm:$0xf] %vm2227, %v2162
        %2244 = vst.msk [vmem:[#allocation2 + $0x40] sm:$0xf] %vm2227, %v2164
        %2245 = vst.msk [vmem:[#allocation2 + $0x44] sm:$0xf] %vm2227, %v2166
        %2246 = vst.msk [vmem:[#allocation2 + $0x48] sm:$0xf] %vm2227, %v2168
        %2247 = vst.msk [vmem:[#allocation2 + $0x4c] sm:$0xf] %vm2227, %v2170
        %2248 = vst.msk [vmem:[#allocation2 + $0x50] sm:$0xf] %vm2227, %v2172
        %2249 = vst.msk [vmem:[#allocation2 + $0x54] sm:$0xf] %vm2227, %v2174
        %2250 = vst.msk [vmem:[#allocation2 + $0x58] sm:$0xf] %vm2227, %v2176
        %2251 = vst.msk [vmem:[#allocation2 + $0x5c] sm:$0xf] %vm2227, %v2178
        %2252 = vst.msk [vmem:[#allocation2 + $0x60] sm:$0xf] %vm2227, %v2180
        %2253 = vst.msk [vmem:[#allocation2 + $0x64] sm:$0xf] %vm2227, %v2182
        %2254 = vst.msk [vmem:[#allocation2 + $0x68] sm:$0xf] %vm2227, %v2184
        %2255 = vst.msk [vmem:[#allocation2 + $0x6c] sm:$0xf] %vm2227, %v2186
        %2256 = vst.msk [vmem:[#allocation2 + $0x70] sm:$0xf] %vm2227, %v2188
        %2257 = vst.msk [vmem:[#allocation2 + $0x74] sm:$0xf] %vm2227, %v2190
        %2258 = vst.msk [vmem:[#allocation2 + $0x78] sm:$0xf] %vm2227, %v2192
        %2259 = vst.msk [vmem:[#allocation2 + $0x7c] sm:$0xf] %vm2227, %v2194
        %s2260 = scalar_lea.vmem %s196, 24
        %v2261 = vld [vmem:[%s2260] sm:$0xf]
        %v2262 = vld [vmem:[%s2260 + $0x4] sm:$0xf]
        %v2263 = vld [vmem:[%s2260 + $0xc] sm:$0xf]
        %v2264 = vld [vmem:[%s2260 + $0x10] sm:$0xf]
        %v2265 = vld [vmem:[%s2260 + $0x18] sm:$0xf]
        %v2266 = vld [vmem:[%s2260 + $0x1c] sm:$0xf]
        %v2267 = vld [vmem:[%s2260 + $0x24] sm:$0xf]
        %v2268 = vld [vmem:[%s2260 + $0x28] sm:$0xf]
        %v2269 = vld [vmem:[%s2260 + $0x30] sm:$0xf]
        %v2270 = vld [vmem:[%s2260 + $0x34] sm:$0xf]
        %v2271 = vld [vmem:[%s2260 + $0x3c] sm:$0xf]
        %v2272 = vld [vmem:[%s2260 + $0x40] sm:$0xf]
        %v2273 = vld [vmem:[%s2260 + $0x48] sm:$0xf]
        %v2274 = vld [vmem:[%s2260 + $0x4c] sm:$0xf]
        %v2275 = vld [vmem:[%s2260 + $0x54] sm:$0xf]
        %v2276 = vld [vmem:[%s2260 + $0x58] sm:$0xf]
        %v2277 = vld [vmem:[%s2260 + $0x60] sm:$0xf]
        %v2278 = vld [vmem:[%s2260 + $0x64] sm:$0xf]
        %v2279 = vld [vmem:[%s2260 + $0x6c] sm:$0xf]
        %v2280 = vld [vmem:[%s2260 + $0x70] sm:$0xf]
        %v2281 = vld [vmem:[%s2260 + $0x78] sm:$0xf]
        %v2282 = vld [vmem:[%s2260 + $0x7c] sm:$0xf]
        %v2283 = vld [vmem:[%s2260 + $0x84] sm:$0xf]
        %v2284 = vld [vmem:[%s2260 + $0x88] sm:$0xf]
        %v2285 = vld [vmem:[%s2260 + $0x90] sm:$0xf]
        %v2286 = vld [vmem:[%s2260 + $0x94] sm:$0xf]
        %v2287 = vld [vmem:[%s2260 + $0x9c] sm:$0xf]
        %v2288 = vld [vmem:[%s2260 + $0xa0] sm:$0xf]
        %v2289 = vld [vmem:[%s2260 + $0xa8] sm:$0xf]
        %v2290 = vld [vmem:[%s2260 + $0xac] sm:$0xf]
        %v2291 = vld [vmem:[%s2260 + $0xb4] sm:$0xf]
        %v2292 = vld [vmem:[%s2260 + $0xb8] sm:$0xf]
        %2325 = vrot.lane.b32.xlu0 %v2261, 24
        %v2326 = vpop.permute.xlu0 %2325
        %2327 = vrot.lane.b32.xlu0 %v2262, 24
        %v2328 = vpop.permute.xlu0 %2327
        %2329 = vrot.lane.b32.xlu0 %v2263, 24
        %v2330 = vpop.permute.xlu0 %2329
        %2331 = vrot.lane.b32.xlu0 %v2264, 24
        %v2332 = vpop.permute.xlu0 %2331
        %2333 = vrot.lane.b32.xlu0 %v2265, 24
        %v2334 = vpop.permute.xlu0 %2333
        %2335 = vrot.lane.b32.xlu0 %v2266, 24
        %v2336 = vpop.permute.xlu0 %2335
        %2337 = vrot.lane.b32.xlu0 %v2267, 24
        %v2338 = vpop.permute.xlu0 %2337
        %2339 = vrot.lane.b32.xlu0 %v2268, 24
        %v2340 = vpop.permute.xlu0 %2339
        %2341 = vrot.lane.b32.xlu0 %v2269, 24
        %v2342 = vpop.permute.xlu0 %2341
        %2343 = vrot.lane.b32.xlu0 %v2270, 24
        %v2344 = vpop.permute.xlu0 %2343
        %2345 = vrot.lane.b32.xlu0 %v2271, 24
        %v2346 = vpop.permute.xlu0 %2345
        %2347 = vrot.lane.b32.xlu0 %v2272, 24
        %v2348 = vpop.permute.xlu0 %2347
        %2349 = vrot.lane.b32.xlu0 %v2273, 24
        %v2350 = vpop.permute.xlu0 %2349
        %2351 = vrot.lane.b32.xlu0 %v2274, 24
        %v2352 = vpop.permute.xlu0 %2351
        %2353 = vrot.lane.b32.xlu0 %v2275, 24
        %v2354 = vpop.permute.xlu0 %2353
        %2355 = vrot.lane.b32.xlu0 %v2276, 24
        %v2356 = vpop.permute.xlu0 %2355
        %2357 = vrot.lane.b32.xlu0 %v2277, 24
        %v2358 = vpop.permute.xlu0 %2357
        %2359 = vrot.lane.b32.xlu0 %v2278, 24
        %v2360 = vpop.permute.xlu0 %2359
        %2361 = vrot.lane.b32.xlu0 %v2279, 24
        %v2362 = vpop.permute.xlu0 %2361
        %2363 = vrot.lane.b32.xlu0 %v2280, 24
        %v2364 = vpop.permute.xlu0 %2363
        %2365 = vrot.lane.b32.xlu0 %v2281, 24
        %v2366 = vpop.permute.xlu0 %2365
        %2367 = vrot.lane.b32.xlu0 %v2282, 24
        %v2368 = vpop.permute.xlu0 %2367
        %2369 = vrot.lane.b32.xlu0 %v2283, 24
        %v2370 = vpop.permute.xlu0 %2369
        %2371 = vrot.lane.b32.xlu0 %v2284, 24
        %v2372 = vpop.permute.xlu0 %2371
        %2373 = vrot.lane.b32.xlu0 %v2285, 24
        %v2374 = vpop.permute.xlu0 %2373
        %2375 = vrot.lane.b32.xlu0 %v2286, 24
        %v2376 = vpop.permute.xlu0 %2375
        %2377 = vrot.lane.b32.xlu0 %v2287, 24
        %v2378 = vpop.permute.xlu0 %2377
        %2379 = vrot.lane.b32.xlu0 %v2288, 24
        %v2380 = vpop.permute.xlu0 %2379
        %2381 = vrot.lane.b32.xlu0 %v2289, 24
        %v2382 = vpop.permute.xlu0 %2381
        %2383 = vrot.lane.b32.xlu0 %v2290, 24
        %v2384 = vpop.permute.xlu0 %2383
        %2385 = vrot.lane.b32.xlu0 %v2291, 24
        %v2386 = vpop.permute.xlu0 %2385
        %2387 = vrot.lane.b32.xlu0 %v2292, 24
        %v2388 = vpop.permute.xlu0 %2387
        %vm2421 = vcmask 224448
        %2422 = vst.msk [vmem:[#allocation2] sm:$0xf] %vm2421, %v2326
        %2423 = vst.msk [vmem:[#allocation2 + $0x4] sm:$0xf] %vm2421, %v2328
        %2424 = vst.msk [vmem:[#allocation2 + $0x8] sm:$0xf] %vm2421, %v2330
        %2425 = vst.msk [vmem:[#allocation2 + $0xc] sm:$0xf] %vm2421, %v2332
        %2426 = vst.msk [vmem:[#allocation2 + $0x10] sm:$0xf] %vm2421, %v2334
        %2427 = vst.msk [vmem:[#allocation2 + $0x14] sm:$0xf] %vm2421, %v2336
        %2428 = vst.msk [vmem:[#allocation2 + $0x18] sm:$0xf] %vm2421, %v2338
        %2429 = vst.msk [vmem:[#allocation2 + $0x1c] sm:$0xf] %vm2421, %v2340
        %2430 = vst.msk [vmem:[#allocation2 + $0x20] sm:$0xf] %vm2421, %v2342
        %2431 = vst.msk [vmem:[#allocation2 + $0x24] sm:$0xf] %vm2421, %v2344
        %2432 = vst.msk [vmem:[#allocation2 + $0x28] sm:$0xf] %vm2421, %v2346
        %2433 = vst.msk [vmem:[#allocation2 + $0x2c] sm:$0xf] %vm2421, %v2348
        %2434 = vst.msk [vmem:[#allocation2 + $0x30] sm:$0xf] %vm2421, %v2350
        %2435 = vst.msk [vmem:[#allocation2 + $0x34] sm:$0xf] %vm2421, %v2352
        %2436 = vst.msk [vmem:[#allocation2 + $0x38] sm:$0xf] %vm2421, %v2354
        %2437 = vst.msk [vmem:[#allocation2 + $0x3c] sm:$0xf] %vm2421, %v2356
        %2438 = vst.msk [vmem:[#allocation2 + $0x40] sm:$0xf] %vm2421, %v2358
        %2439 = vst.msk [vmem:[#allocation2 + $0x44] sm:$0xf] %vm2421, %v2360
        %2440 = vst.msk [vmem:[#allocation2 + $0x48] sm:$0xf] %vm2421, %v2362
        %2441 = vst.msk [vmem:[#allocation2 + $0x4c] sm:$0xf] %vm2421, %v2364
        %2442 = vst.msk [vmem:[#allocation2 + $0x50] sm:$0xf] %vm2421, %v2366
        %2443 = vst.msk [vmem:[#allocation2 + $0x54] sm:$0xf] %vm2421, %v2368
        %2444 = vst.msk [vmem:[#allocation2 + $0x58] sm:$0xf] %vm2421, %v2370
        %2445 = vst.msk [vmem:[#allocation2 + $0x5c] sm:$0xf] %vm2421, %v2372
        %2446 = vst.msk [vmem:[#allocation2 + $0x60] sm:$0xf] %vm2421, %v2374
        %2447 = vst.msk [vmem:[#allocation2 + $0x64] sm:$0xf] %vm2421, %v2376
        %2448 = vst.msk [vmem:[#allocation2 + $0x68] sm:$0xf] %vm2421, %v2378
        %2449 = vst.msk [vmem:[#allocation2 + $0x6c] sm:$0xf] %vm2421, %v2380
        %2450 = vst.msk [vmem:[#allocation2 + $0x70] sm:$0xf] %vm2421, %v2382
        %2451 = vst.msk [vmem:[#allocation2 + $0x74] sm:$0xf] %vm2421, %v2384
        %2452 = vst.msk [vmem:[#allocation2 + $0x78] sm:$0xf] %vm2421, %v2386
        %2453 = vst.msk [vmem:[#allocation2 + $0x7c] sm:$0xf] %vm2421, %v2388
        %v2454 = vld [vmem:[%s2260] sm:$0xf]
        %v2455 = vld [vmem:[%s2260 + $0x4] sm:$0xf]
        %v2456 = vld [vmem:[%s2260 + $0x8] sm:$0x1]
        %v2457 = vld [vmem:[%s2260 + $0xc] sm:$0xf]
        %v2458 = vld [vmem:[%s2260 + $0x10] sm:$0xf]
        %v2459 = vld [vmem:[%s2260 + $0x14] sm:$0x1]
        %v2460 = vld [vmem:[%s2260 + $0x18] sm:$0xf]
        %v2461 = vld [vmem:[%s2260 + $0x1c] sm:$0xf]
        %v2462 = vld [vmem:[%s2260 + $0x20] sm:$0x1]
        %v2463 = vld [vmem:[%s2260 + $0x24] sm:$0xf]
        %v2464 = vld [vmem:[%s2260 + $0x28] sm:$0xf]
        %v2465 = vld [vmem:[%s2260 + $0x2c] sm:$0x1]
        %v2466 = vld [vmem:[%s2260 + $0x30] sm:$0xf]
        %v2467 = vld [vmem:[%s2260 + $0x34] sm:$0xf]
        %v2468 = vld [vmem:[%s2260 + $0x38] sm:$0x1]
        %v2469 = vld [vmem:[%s2260 + $0x3c] sm:$0xf]
        %v2470 = vld [vmem:[%s2260 + $0x40] sm:$0xf]
        %v2471 = vld [vmem:[%s2260 + $0x44] sm:$0x1]
        %v2472 = vld [vmem:[%s2260 + $0x48] sm:$0xf]
        %v2473 = vld [vmem:[%s2260 + $0x4c] sm:$0xf]
        %v2474 = vld [vmem:[%s2260 + $0x50] sm:$0x1]
        %v2475 = vld [vmem:[%s2260 + $0x54] sm:$0xf]
        %v2476 = vld [vmem:[%s2260 + $0x58] sm:$0xf]
        %v2477 = vld [vmem:[%s2260 + $0x5c] sm:$0x1]
        %v2478 = vld [vmem:[%s2260 + $0x60] sm:$0xf]
        %v2479 = vld [vmem:[%s2260 + $0x64] sm:$0xf]
        %v2480 = vld [vmem:[%s2260 + $0x68] sm:$0x1]
        %v2481 = vld [vmem:[%s2260 + $0x6c] sm:$0xf]
        %v2482 = vld [vmem:[%s2260 + $0x70] sm:$0xf]
        %v2483 = vld [vmem:[%s2260 + $0x74] sm:$0x1]
        %v2484 = vld [vmem:[%s2260 + $0x78] sm:$0xf]
        %v2485 = vld [vmem:[%s2260 + $0x7c] sm:$0xf]
        %v2486 = vld [vmem:[%s2260 + $0x80] sm:$0x1]
        %v2487 = vld [vmem:[%s2260 + $0x84] sm:$0xf]
        %v2488 = vld [vmem:[%s2260 + $0x88] sm:$0xf]
        %v2489 = vld [vmem:[%s2260 + $0x8c] sm:$0x1]
        %v2490 = vld [vmem:[%s2260 + $0x90] sm:$0xf]
        %v2491 = vld [vmem:[%s2260 + $0x94] sm:$0xf]
        %v2492 = vld [vmem:[%s2260 + $0x98] sm:$0x1]
        %v2493 = vld [vmem:[%s2260 + $0x9c] sm:$0xf]
        %v2494 = vld [vmem:[%s2260 + $0xa0] sm:$0xf]
        %v2495 = vld [vmem:[%s2260 + $0xa4] sm:$0x1]
        %v2496 = vld [vmem:[%s2260 + $0xa8] sm:$0xf]
        %v2497 = vld [vmem:[%s2260 + $0xac] sm:$0xf]
        %v2498 = vld [vmem:[%s2260 + $0xb0] sm:$0x1]
        %v2499 = vld [vmem:[%s2260 + $0xb4] sm:$0xf]
        %v2500 = vld [vmem:[%s2260 + $0xb8] sm:$0xf]
        %v2501 = vld [vmem:[%s2260 + $0xbc] sm:$0x1]
        %v2503 = vshrl.u32 %v2454, 16
        %v2505 = vrot.slane %v2503, 4
        %v2506 = vshll.u32 %v2454, 16
        %v2508 = vrot.slane %v2506, 5
        %v2509 = vor.u32 %v2505, %v2508
        %v2510 = vrot.slane %v2509, 4
        %v2512 = vshll.u32 %v2455, 16
        %v2514 = vrot.slane %v2512, 5
        %v2515 = vsel %vm314, %v2510, %v2514
        %v2516 = vshrl.u32 %v2455, 16
        %v2518 = vrot.slane %v2516, 4
        %v2519 = vor.u32 %v2518, %v2514
        %v2520 = vrot.slane %v2519, 4
        %v2522 = vshll.u32 %v2456, 16
        %v2524 = vrot.slane %v2522, 5
        %v2525 = vsel %vm314, %v2520, %v2524
        %v2527 = vshrl.u32 %v2457, 16
        %v2529 = vrot.slane %v2527, 4
        %v2530 = vshll.u32 %v2457, 16
        %v2532 = vrot.slane %v2530, 5
        %v2533 = vor.u32 %v2529, %v2532
        %v2534 = vrot.slane %v2533, 4
        %v2536 = vshll.u32 %v2458, 16
        %v2538 = vrot.slane %v2536, 5
        %v2539 = vsel %vm314, %v2534, %v2538
        %v2540 = vshrl.u32 %v2458, 16
        %v2542 = vrot.slane %v2540, 4
        %v2543 = vor.u32 %v2542, %v2538
        %v2544 = vrot.slane %v2543, 4
        %v2546 = vshll.u32 %v2459, 16
        %v2548 = vrot.slane %v2546, 5
        %v2549 = vsel %vm314, %v2544, %v2548
        %v2551 = vshrl.u32 %v2460, 16
        %v2553 = vrot.slane %v2551, 4
        %v2554 = vshll.u32 %v2460, 16
        %v2556 = vrot.slane %v2554, 5
        %v2557 = vor.u32 %v2553, %v2556
        %v2558 = vrot.slane %v2557, 4
        %v2560 = vshll.u32 %v2461, 16
        %v2562 = vrot.slane %v2560, 5
        %v2563 = vsel %vm314, %v2558, %v2562
        %v2564 = vshrl.u32 %v2461, 16
        %v2566 = vrot.slane %v2564, 4
        %v2567 = vor.u32 %v2566, %v2562
        %v2568 = vrot.slane %v2567, 4
        %v2570 = vshll.u32 %v2462, 16
        %v2572 = vrot.slane %v2570, 5
        %v2573 = vsel %vm314, %v2568, %v2572
        %v2575 = vshrl.u32 %v2463, 16
        %v2577 = vrot.slane %v2575, 4
        %v2578 = vshll.u32 %v2463, 16
        %v2580 = vrot.slane %v2578, 5
        %v2581 = vor.u32 %v2577, %v2580
        %v2582 = vrot.slane %v2581, 4
        %v2584 = vshll.u32 %v2464, 16
        %v2586 = vrot.slane %v2584, 5
        %v2587 = vsel %vm314, %v2582, %v2586
        %v2588 = vshrl.u32 %v2464, 16
        %v2590 = vrot.slane %v2588, 4
        %v2591 = vor.u32 %v2590, %v2586
        %v2592 = vrot.slane %v2591, 4
        %v2594 = vshll.u32 %v2465, 16
        %v2596 = vrot.slane %v2594, 5
        %v2597 = vsel %vm314, %v2592, %v2596
        %v2599 = vshrl.u32 %v2466, 16
        %v2601 = vrot.slane %v2599, 4
        %v2602 = vshll.u32 %v2466, 16
        %v2604 = vrot.slane %v2602, 5
        %v2605 = vor.u32 %v2601, %v2604
        %v2606 = vrot.slane %v2605, 4
        %v2608 = vshll.u32 %v2467, 16
        %v2610 = vrot.slane %v2608, 5
        %v2611 = vsel %vm314, %v2606, %v2610
        %v2612 = vshrl.u32 %v2467, 16
        %v2614 = vrot.slane %v2612, 4
        %v2615 = vor.u32 %v2614, %v2610
        %v2616 = vrot.slane %v2615, 4
        %v2618 = vshll.u32 %v2468, 16
        %v2620 = vrot.slane %v2618, 5
        %v2621 = vsel %vm314, %v2616, %v2620
        %v2623 = vshrl.u32 %v2469, 16
        %v2625 = vrot.slane %v2623, 4
        %v2626 = vshll.u32 %v2469, 16
        %v2628 = vrot.slane %v2626, 5
        %v2629 = vor.u32 %v2625, %v2628
        %v2630 = vrot.slane %v2629, 4
        %v2632 = vshll.u32 %v2470, 16
        %v2634 = vrot.slane %v2632, 5
        %v2635 = vsel %vm314, %v2630, %v2634
        %v2636 = vshrl.u32 %v2470, 16
        %v2638 = vrot.slane %v2636, 4
        %v2639 = vor.u32 %v2638, %v2634
        %v2640 = vrot.slane %v2639, 4
        %v2642 = vshll.u32 %v2471, 16
        %v2644 = vrot.slane %v2642, 5
        %v2645 = vsel %vm314, %v2640, %v2644
        %v2647 = vshrl.u32 %v2472, 16
        %v2649 = vrot.slane %v2647, 4
        %v2650 = vshll.u32 %v2472, 16
        %v2652 = vrot.slane %v2650, 5
        %v2653 = vor.u32 %v2649, %v2652
        %v2654 = vrot.slane %v2653, 4
        %v2656 = vshll.u32 %v2473, 16
        %v2658 = vrot.slane %v2656, 5
        %v2659 = vsel %vm314, %v2654, %v2658
        %v2660 = vshrl.u32 %v2473, 16
        %v2662 = vrot.slane %v2660, 4
        %v2663 = vor.u32 %v2662, %v2658
        %v2664 = vrot.slane %v2663, 4
        %v2666 = vshll.u32 %v2474, 16
        %v2668 = vrot.slane %v2666, 5
        %v2669 = vsel %vm314, %v2664, %v2668
        %v2671 = vshrl.u32 %v2475, 16
        %v2673 = vrot.slane %v2671, 4
        %v2674 = vshll.u32 %v2475, 16
        %v2676 = vrot.slane %v2674, 5
        %v2677 = vor.u32 %v2673, %v2676
        %v2678 = vrot.slane %v2677, 4
        %v2680 = vshll.u32 %v2476, 16
        %v2682 = vrot.slane %v2680, 5
        %v2683 = vsel %vm314, %v2678, %v2682
        %v2684 = vshrl.u32 %v2476, 16
        %v2686 = vrot.slane %v2684, 4
        %v2687 = vor.u32 %v2686, %v2682
        %v2688 = vrot.slane %v2687, 4
        %v2690 = vshll.u32 %v2477, 16
        %v2692 = vrot.slane %v2690, 5
        %v2693 = vsel %vm314, %v2688, %v2692
        %v2695 = vshrl.u32 %v2478, 16
        %v2697 = vrot.slane %v2695, 4
        %v2698 = vshll.u32 %v2478, 16
        %v2700 = vrot.slane %v2698, 5
        %v2701 = vor.u32 %v2697, %v2700
        %v2702 = vrot.slane %v2701, 4
        %v2704 = vshll.u32 %v2479, 16
        %v2706 = vrot.slane %v2704, 5
        %v2707 = vsel %vm314, %v2702, %v2706
        %v2708 = vshrl.u32 %v2479, 16
        %v2710 = vrot.slane %v2708, 4
        %v2711 = vor.u32 %v2710, %v2706
        %v2712 = vrot.slane %v2711, 4
        %v2714 = vshll.u32 %v2480, 16
        %v2716 = vrot.slane %v2714, 5
        %v2717 = vsel %vm314, %v2712, %v2716
        %v2719 = vshrl.u32 %v2481, 16
        %v2721 = vrot.slane %v2719, 4
        %v2722 = vshll.u32 %v2481, 16
        %v2724 = vrot.slane %v2722, 5
        %v2725 = vor.u32 %v2721, %v2724
        %v2726 = vrot.slane %v2725, 4
        %v2728 = vshll.u32 %v2482, 16
        %v2730 = vrot.slane %v2728, 5
        %v2731 = vsel %vm314, %v2726, %v2730
        %v2732 = vshrl.u32 %v2482, 16
        %v2734 = vrot.slane %v2732, 4
        %v2735 = vor.u32 %v2734, %v2730
        %v2736 = vrot.slane %v2735, 4
        %v2738 = vshll.u32 %v2483, 16
        %v2740 = vrot.slane %v2738, 5
        %v2741 = vsel %vm314, %v2736, %v2740
        %v2743 = vshrl.u32 %v2484, 16
        %v2745 = vrot.slane %v2743, 4
        %v2746 = vshll.u32 %v2484, 16
        %v2748 = vrot.slane %v2746, 5
        %v2749 = vor.u32 %v2745, %v2748
        %v2750 = vrot.slane %v2749, 4
        %v2752 = vshll.u32 %v2485, 16
        %v2754 = vrot.slane %v2752, 5
        %v2755 = vsel %vm314, %v2750, %v2754
        %v2756 = vshrl.u32 %v2485, 16
        %v2758 = vrot.slane %v2756, 4
        %v2759 = vor.u32 %v2758, %v2754
        %v2760 = vrot.slane %v2759, 4
        %v2762 = vshll.u32 %v2486, 16
        %v2764 = vrot.slane %v2762, 5
        %v2765 = vsel %vm314, %v2760, %v2764
        %v2767 = vshrl.u32 %v2487, 16
        %v2769 = vrot.slane %v2767, 4
        %v2770 = vshll.u32 %v2487, 16
        %v2772 = vrot.slane %v2770, 5
        %v2773 = vor.u32 %v2769, %v2772
        %v2774 = vrot.slane %v2773, 4
        %v2776 = vshll.u32 %v2488, 16
        %v2778 = vrot.slane %v2776, 5
        %v2779 = vsel %vm314, %v2774, %v2778
        %v2780 = vshrl.u32 %v2488, 16
        %v2782 = vrot.slane %v2780, 4
        %v2783 = vor.u32 %v2782, %v2778
        %v2784 = vrot.slane %v2783, 4
        %v2786 = vshll.u32 %v2489, 16
        %v2788 = vrot.slane %v2786, 5
        %v2789 = vsel %vm314, %v2784, %v2788
        %v2791 = vshrl.u32 %v2490, 16
        %v2793 = vrot.slane %v2791, 4
        %v2794 = vshll.u32 %v2490, 16
        %v2796 = vrot.slane %v2794, 5
        %v2797 = vor.u32 %v2793, %v2796
        %v2798 = vrot.slane %v2797, 4
        %v2800 = vshll.u32 %v2491, 16
        %v2802 = vrot.slane %v2800, 5
        %v2803 = vsel %vm314, %v2798, %v2802
        %v2804 = vshrl.u32 %v2491, 16
        %v2806 = vrot.slane %v2804, 4
        %v2807 = vor.u32 %v2806, %v2802
        %v2808 = vrot.slane %v2807, 4
        %v2810 = vshll.u32 %v2492, 16
        %v2812 = vrot.slane %v2810, 5
        %v2813 = vsel %vm314, %v2808, %v2812
        %v2815 = vshrl.u32 %v2493, 16
        %v2817 = vrot.slane %v2815, 4
        %v2818 = vshll.u32 %v2493, 16
        %v2820 = vrot.slane %v2818, 5
        %v2821 = vor.u32 %v2817, %v2820
        %v2822 = vrot.slane %v2821, 4
        %v2824 = vshll.u32 %v2494, 16
        %v2826 = vrot.slane %v2824, 5
        %v2827 = vsel %vm314, %v2822, %v2826
        %v2828 = vshrl.u32 %v2494, 16
        %v2830 = vrot.slane %v2828, 4
        %v2831 = vor.u32 %v2830, %v2826
        %v2832 = vrot.slane %v2831, 4
        %v2834 = vshll.u32 %v2495, 16
        %v2836 = vrot.slane %v2834, 5
        %v2837 = vsel %vm314, %v2832, %v2836
        %v2839 = vshrl.u32 %v2496, 16
        %v2841 = vrot.slane %v2839, 4
        %v2842 = vshll.u32 %v2496, 16
        %v2844 = vrot.slane %v2842, 5
        %v2845 = vor.u32 %v2841, %v2844
        %v2846 = vrot.slane %v2845, 4
        %v2848 = vshll.u32 %v2497, 16
        %v2850 = vrot.slane %v2848, 5
        %v2851 = vsel %vm314, %v2846, %v2850
        %v2852 = vshrl.u32 %v2497, 16
        %v2854 = vrot.slane %v2852, 4
        %v2855 = vor.u32 %v2854, %v2850
        %v2856 = vrot.slane %v2855, 4
        %v2858 = vshll.u32 %v2498, 16
        %v2860 = vrot.slane %v2858, 5
        %v2861 = vsel %vm314, %v2856, %v2860
        %v2863 = vshrl.u32 %v2499, 16
        %v2865 = vrot.slane %v2863, 4
        %v2866 = vshll.u32 %v2499, 16
        %v2868 = vrot.slane %v2866, 5
        %v2869 = vor.u32 %v2865, %v2868
        %v2870 = vrot.slane %v2869, 4
        %v2872 = vshll.u32 %v2500, 16
        %v2874 = vrot.slane %v2872, 5
        %v2875 = vsel %vm314, %v2870, %v2874
        %v2876 = vshrl.u32 %v2500, 16
        %v2878 = vrot.slane %v2876, 4
        %v2879 = vor.u32 %v2878, %v2874
        %v2880 = vrot.slane %v2879, 4
        %v2882 = vshll.u32 %v2501, 16
        %v2884 = vrot.slane %v2882, 5
        %v2885 = vsel %vm314, %v2880, %v2884
        %2886 = vrot.lane.b32.xlu0 %v2515, 28
        %v2887 = vpop.permute.xlu0 %2886
        %2888 = vrot.lane.b32.xlu0 %v2525, 28
        %v2889 = vpop.permute.xlu0 %2888
        %2890 = vrot.lane.b32.xlu0 %v2539, 28
        %v2891 = vpop.permute.xlu0 %2890
        %2892 = vrot.lane.b32.xlu0 %v2549, 28
        %v2893 = vpop.permute.xlu0 %2892
        %2894 = vrot.lane.b32.xlu0 %v2563, 28
        %v2895 = vpop.permute.xlu0 %2894
        %2896 = vrot.lane.b32.xlu0 %v2573, 28
        %v2897 = vpop.permute.xlu0 %2896
        %2898 = vrot.lane.b32.xlu0 %v2587, 28
        %v2899 = vpop.permute.xlu0 %2898
        %2900 = vrot.lane.b32.xlu0 %v2597, 28
        %v2901 = vpop.permute.xlu0 %2900
        %2902 = vrot.lane.b32.xlu0 %v2611, 28
        %v2903 = vpop.permute.xlu0 %2902
        %2904 = vrot.lane.b32.xlu0 %v2621, 28
        %v2905 = vpop.permute.xlu0 %2904
        %2906 = vrot.lane.b32.xlu0 %v2635, 28
        %v2907 = vpop.permute.xlu0 %2906
        %2908 = vrot.lane.b32.xlu0 %v2645, 28
        %v2909 = vpop.permute.xlu0 %2908
        %2910 = vrot.lane.b32.xlu0 %v2659, 28
        %v2911 = vpop.permute.xlu0 %2910
        %2912 = vrot.lane.b32.xlu0 %v2669, 28
        %v2913 = vpop.permute.xlu0 %2912
        %2914 = vrot.lane.b32.xlu0 %v2683, 28
        %v2915 = vpop.permute.xlu0 %2914
        %2916 = vrot.lane.b32.xlu0 %v2693, 28
        %v2917 = vpop.permute.xlu0 %2916
        %2918 = vrot.lane.b32.xlu0 %v2707, 28
        %v2919 = vpop.permute.xlu0 %2918
        %2920 = vrot.lane.b32.xlu0 %v2717, 28
        %v2921 = vpop.permute.xlu0 %2920
        %2922 = vrot.lane.b32.xlu0 %v2731, 28
        %v2923 = vpop.permute.xlu0 %2922
        %2924 = vrot.lane.b32.xlu0 %v2741, 28
        %v2925 = vpop.permute.xlu0 %2924
        %2926 = vrot.lane.b32.xlu0 %v2755, 28
        %v2927 = vpop.permute.xlu0 %2926
        %2928 = vrot.lane.b32.xlu0 %v2765, 28
        %v2929 = vpop.permute.xlu0 %2928
        %2930 = vrot.lane.b32.xlu0 %v2779, 28
        %v2931 = vpop.permute.xlu0 %2930
        %2932 = vrot.lane.b32.xlu0 %v2789, 28
        %v2933 = vpop.permute.xlu0 %2932
        %2934 = vrot.lane.b32.xlu0 %v2803, 28
        %v2935 = vpop.permute.xlu0 %2934
        %2936 = vrot.lane.b32.xlu0 %v2813, 28
        %v2937 = vpop.permute.xlu0 %2936
        %2938 = vrot.lane.b32.xlu0 %v2827, 28
        %v2939 = vpop.permute.xlu0 %2938
        %2940 = vrot.lane.b32.xlu0 %v2837, 28
        %v2941 = vpop.permute.xlu0 %2940
        %2942 = vrot.lane.b32.xlu0 %v2851, 28
        %v2943 = vpop.permute.xlu0 %2942
        %2944 = vrot.lane.b32.xlu0 %v2861, 28
        %v2945 = vpop.permute.xlu0 %2944
        %2946 = vrot.lane.b32.xlu0 %v2875, 28
        %v2947 = vpop.permute.xlu0 %2946
        %2948 = vrot.lane.b32.xlu0 %v2885, 28
        %v2949 = vpop.permute.xlu0 %2948
        %vm2982 = vcmask 257248
        %2983 = vst.msk [vmem:[#allocation2] sm:$0xf] %vm2982, %v2887
        %2984 = vst.msk [vmem:[#allocation2 + $0x4] sm:$0xf] %vm2982, %v2889
        %2985 = vst.msk [vmem:[#allocation2 + $0x8] sm:$0xf] %vm2982, %v2891
        %2986 = vst.msk [vmem:[#allocation2 + $0xc] sm:$0xf] %vm2982, %v2893
        %2987 = vst.msk [vmem:[#allocation2 + $0x10] sm:$0xf] %vm2982, %v2895
        %2988 = vst.msk [vmem:[#allocation2 + $0x14] sm:$0xf] %vm2982, %v2897
        %2989 = vst.msk [vmem:[#allocation2 + $0x18] sm:$0xf] %vm2982, %v2899
        %2990 = vst.msk [vmem:[#allocation2 + $0x1c] sm:$0xf] %vm2982, %v2901
        %2991 = vst.msk [vmem:[#allocation2 + $0x20] sm:$0xf] %vm2982, %v2903
        %2992 = vst.msk [vmem:[#allocation2 + $0x24] sm:$0xf] %vm2982, %v2905
        %2993 = vst.msk [vmem:[#allocation2 + $0x28] sm:$0xf] %vm2982, %v2907
        %2994 = vst.msk [vmem:[#allocation2 + $0x2c] sm:$0xf] %vm2982, %v2909
        %2995 = vst.msk [vmem:[#allocation2 + $0x30] sm:$0xf] %vm2982, %v2911
        %2996 = vst.msk [vmem:[#allocation2 + $0x34] sm:$0xf] %vm2982, %v2913
        %2997 = vst.msk [vmem:[#allocation2 + $0x38] sm:$0xf] %vm2982, %v2915
        %2998 = vst.msk [vmem:[#allocation2 + $0x3c] sm:$0xf] %vm2982, %v2917
        %2999 = vst.msk [vmem:[#allocation2 + $0x40] sm:$0xf] %vm2982, %v2919
        %3000 = vst.msk [vmem:[#allocation2 + $0x44] sm:$0xf] %vm2982, %v2921
        %3001 = vst.msk [vmem:[#allocation2 + $0x48] sm:$0xf] %vm2982, %v2923
        %3002 = vst.msk [vmem:[#allocation2 + $0x4c] sm:$0xf] %vm2982, %v2925
        %3003 = vst.msk [vmem:[#allocation2 + $0x50] sm:$0xf] %vm2982, %v2927
        %3004 = vst.msk [vmem:[#allocation2 + $0x54] sm:$0xf] %vm2982, %v2929
        %3005 = vst.msk [vmem:[#allocation2 + $0x58] sm:$0xf] %vm2982, %v2931
        %3006 = vst.msk [vmem:[#allocation2 + $0x5c] sm:$0xf] %vm2982, %v2933
        %3007 = vst.msk [vmem:[#allocation2 + $0x60] sm:$0xf] %vm2982, %v2935
        %3008 = vst.msk [vmem:[#allocation2 + $0x64] sm:$0xf] %vm2982, %v2937
        %3009 = vst.msk [vmem:[#allocation2 + $0x68] sm:$0xf] %vm2982, %v2939
        %3010 = vst.msk [vmem:[#allocation2 + $0x6c] sm:$0xf] %vm2982, %v2941
        %3011 = vst.msk [vmem:[#allocation2 + $0x70] sm:$0xf] %vm2982, %v2943
        %3012 = vst.msk [vmem:[#allocation2 + $0x74] sm:$0xf] %vm2982, %v2945
        %3013 = vst.msk [vmem:[#allocation2 + $0x78] sm:$0xf] %vm2982, %v2947
        %3014 = vst.msk [vmem:[#allocation2 + $0x7c] sm:$0xf] %vm2982, %v2949
        %v3015 = vld [vmem:[%s2260] sm:$0xe]
        %v3016 = vld [vmem:[%s2260 + $0x4] sm:$0xf]
        %v3017 = vld [vmem:[%s2260 + $0x8] sm:$0x1]
        %v3018 = vld [vmem:[%s2260 + $0xc] sm:$0xe]
        %v3019 = vld [vmem:[%s2260 + $0x10] sm:$0xf]
        %v3020 = vld [vmem:[%s2260 + $0x14] sm:$0x1]
        %v3021 = vld [vmem:[%s2260 + $0x18] sm:$0xe]
        %v3022 = vld [vmem:[%s2260 + $0x1c] sm:$0xf]
        %v3023 = vld [vmem:[%s2260 + $0x20] sm:$0x1]
        %v3024 = vld [vmem:[%s2260 + $0x24] sm:$0xe]
        %v3025 = vld [vmem:[%s2260 + $0x28] sm:$0xf]
        %v3026 = vld [vmem:[%s2260 + $0x2c] sm:$0x1]
        %v3027 = vld [vmem:[%s2260 + $0x30] sm:$0xe]
        %v3028 = vld [vmem:[%s2260 + $0x34] sm:$0xf]
        %v3029 = vld [vmem:[%s2260 + $0x38] sm:$0x1]
        %v3030 = vld [vmem:[%s2260 + $0x3c] sm:$0xe]
        %v3031 = vld [vmem:[%s2260 + $0x40] sm:$0xf]
        %v3032 = vld [vmem:[%s2260 + $0x44] sm:$0x1]
        %v3033 = vld [vmem:[%s2260 + $0x48] sm:$0xe]
        %v3034 = vld [vmem:[%s2260 + $0x4c] sm:$0xf]
        %v3035 = vld [vmem:[%s2260 + $0x50] sm:$0x1]
        %v3036 = vld [vmem:[%s2260 + $0x54] sm:$0xe]
        %v3037 = vld [vmem:[%s2260 + $0x58] sm:$0xf]
        %v3038 = vld [vmem:[%s2260 + $0x5c] sm:$0x1]
        %v3039 = vld [vmem:[%s2260 + $0x60] sm:$0xe]
        %v3040 = vld [vmem:[%s2260 + $0x64] sm:$0xf]
        %v3041 = vld [vmem:[%s2260 + $0x68] sm:$0x1]
        %v3042 = vld [vmem:[%s2260 + $0x6c] sm:$0xe]
        %v3043 = vld [vmem:[%s2260 + $0x70] sm:$0xf]
        %v3044 = vld [vmem:[%s2260 + $0x74] sm:$0x1]
        %v3045 = vld [vmem:[%s2260 + $0x78] sm:$0xe]
        %v3046 = vld [vmem:[%s2260 + $0x7c] sm:$0xf]
        %v3047 = vld [vmem:[%s2260 + $0x80] sm:$0x1]
        %v3048 = vld [vmem:[%s2260 + $0x84] sm:$0xe]
        %v3049 = vld [vmem:[%s2260 + $0x88] sm:$0xf]
        %v3050 = vld [vmem:[%s2260 + $0x8c] sm:$0x1]
        %v3051 = vld [vmem:[%s2260 + $0x90] sm:$0xe]
        %v3052 = vld [vmem:[%s2260 + $0x94] sm:$0xf]
        %v3053 = vld [vmem:[%s2260 + $0x98] sm:$0x1]
        %v3054 = vld [vmem:[%s2260 + $0x9c] sm:$0xe]
        %v3055 = vld [vmem:[%s2260 + $0xa0] sm:$0xf]
        %v3056 = vld [vmem:[%s2260 + $0xa4] sm:$0x1]
        %v3057 = vld [vmem:[%s2260 + $0xa8] sm:$0xe]
        %v3058 = vld [vmem:[%s2260 + $0xac] sm:$0xf]
        %v3059 = vld [vmem:[%s2260 + $0xb0] sm:$0x1]
        %v3060 = vld [vmem:[%s2260 + $0xb4] sm:$0xe]
        %v3061 = vld [vmem:[%s2260 + $0xb8] sm:$0xf]
        %v3062 = vld [vmem:[%s2260 + $0xbc] sm:$0x1]
        %v3111 = vrot.slane %v3015, 5
        %v3112 = vrot.slane %v3111, 4
        %v3113 = vrot.slane %v3016, 5
        %v3114 = vsel %vm926, %v3112, %v3113
        %v3115 = vrot.slane %v3113, 4
        %v3116 = vrot.slane %v3017, 5
        %v3117 = vsel %vm926, %v3115, %v3116
        %v3118 = vrot.slane %v3018, 5
        %v3119 = vrot.slane %v3118, 4
        %v3120 = vrot.slane %v3019, 5
        %v3121 = vsel %vm926, %v3119, %v3120
        %v3122 = vrot.slane %v3120, 4
        %v3123 = vrot.slane %v3020, 5
        %v3124 = vsel %vm926, %v3122, %v3123
        %v3125 = vrot.slane %v3021, 5
        %v3126 = vrot.slane %v3125, 4
        %v3127 = vrot.slane %v3022, 5
        %v3128 = vsel %vm926, %v3126, %v3127
        %v3129 = vrot.slane %v3127, 4
        %v3130 = vrot.slane %v3023, 5
        %v3131 = vsel %vm926, %v3129, %v3130
        %v3132 = vrot.slane %v3024, 5
        %v3133 = vrot.slane %v3132, 4
        %v3134 = vrot.slane %v3025, 5
        %v3135 = vsel %vm926, %v3133, %v3134
        %v3136 = vrot.slane %v3134, 4
        %v3137 = vrot.slane %v3026, 5
        %v3138 = vsel %vm926, %v3136, %v3137
        %v3139 = vrot.slane %v3027, 5
        %v3140 = vrot.slane %v3139, 4
        %v3141 = vrot.slane %v3028, 5
        %v3142 = vsel %vm926, %v3140, %v3141
        %v3143 = vrot.slane %v3141, 4
        %v3144 = vrot.slane %v3029, 5
        %v3145 = vsel %vm926, %v3143, %v3144
        %v3146 = vrot.slane %v3030, 5
        %v3147 = vrot.slane %v3146, 4
        %v3148 = vrot.slane %v3031, 5
        %v3149 = vsel %vm926, %v3147, %v3148
        %v3150 = vrot.slane %v3148, 4
        %v3151 = vrot.slane %v3032, 5
        %v3152 = vsel %vm926, %v3150, %v3151
        %v3153 = vrot.slane %v3033, 5
        %v3154 = vrot.slane %v3153, 4
        %v3155 = vrot.slane %v3034, 5
        %v3156 = vsel %vm926, %v3154, %v3155
        %v3157 = vrot.slane %v3155, 4
        %v3158 = vrot.slane %v3035, 5
        %v3159 = vsel %vm926, %v3157, %v3158
        %v3160 = vrot.slane %v3036, 5
        %v3161 = vrot.slane %v3160, 4
        %v3162 = vrot.slane %v3037, 5
        %v3163 = vsel %vm926, %v3161, %v3162
        %v3164 = vrot.slane %v3162, 4
        %v3165 = vrot.slane %v3038, 5
        %v3166 = vsel %vm926, %v3164, %v3165
        %v3167 = vrot.slane %v3039, 5
        %v3168 = vrot.slane %v3167, 4
        %v3169 = vrot.slane %v3040, 5
        %v3170 = vsel %vm926, %v3168, %v3169
        %v3171 = vrot.slane %v3169, 4
        %v3172 = vrot.slane %v3041, 5
        %v3173 = vsel %vm926, %v3171, %v3172
        %v3174 = vrot.slane %v3042, 5
        %v3175 = vrot.slane %v3174, 4
        %v3176 = vrot.slane %v3043, 5
        %v3177 = vsel %vm926, %v3175, %v3176
        %v3178 = vrot.slane %v3176, 4
        %v3179 = vrot.slane %v3044, 5
        %v3180 = vsel %vm926, %v3178, %v3179
        %v3181 = vrot.slane %v3045, 5
        %v3182 = vrot.slane %v3181, 4
        %v3183 = vrot.slane %v3046, 5
        %v3184 = vsel %vm926, %v3182, %v3183
        %v3185 = vrot.slane %v3183, 4
        %v3186 = vrot.slane %v3047, 5
        %v3187 = vsel %vm926, %v3185, %v3186
        %v3188 = vrot.slane %v3048, 5
        %v3189 = vrot.slane %v3188, 4
        %v3190 = vrot.slane %v3049, 5
        %v3191 = vsel %vm926, %v3189, %v3190
        %v3192 = vrot.slane %v3190, 4
        %v3193 = vrot.slane %v3050, 5
        %v3194 = vsel %vm926, %v3192, %v3193
        %v3195 = vrot.slane %v3051, 5
        %v3196 = vrot.slane %v3195, 4
        %v3197 = vrot.slane %v3052, 5
        %v3198 = vsel %vm926, %v3196, %v3197
        %v3199 = vrot.slane %v3197, 4
        %v3200 = vrot.slane %v3053, 5
        %v3201 = vsel %vm926, %v3199, %v3200
        %v3202 = vrot.slane %v3054, 5
        %v3203 = vrot.slane %v3202, 4
        %v3204 = vrot.slane %v3055, 5
        %v3205 = vsel %vm926, %v3203, %v3204
        %v3206 = vrot.slane %v3204, 4
        %v3207 = vrot.slane %v3056, 5
        %v3208 = vsel %vm926, %v3206, %v3207
        %v3209 = vrot.slane %v3057, 5
        %v3210 = vrot.slane %v3209, 4
        %v3211 = vrot.slane %v3058, 5
        %v3212 = vsel %vm926, %v3210, %v3211
        %v3213 = vrot.slane %v3211, 4
        %v3214 = vrot.slane %v3059, 5
        %v3215 = vsel %vm926, %v3213, %v3214
        %v3216 = vrot.slane %v3060, 5
        %v3217 = vrot.slane %v3216, 4
        %v3218 = vrot.slane %v3061, 5
        %v3219 = vsel %vm926, %v3217, %v3218
        %v3220 = vrot.slane %v3218, 4
        %v3221 = vrot.slane %v3062, 5
        %v3222 = vsel %vm926, %v3220, %v3221
        %3223 = vrot.lane.b32.xlu0 %v3114, 32
        %v3224 = vpop.permute.xlu0 %3223
        %3225 = vrot.lane.b32.xlu0 %v3117, 32
        %v3226 = vpop.permute.xlu0 %3225
        %3227 = vrot.lane.b32.xlu0 %v3121, 32
        %v3228 = vpop.permute.xlu0 %3227
        %3229 = vrot.lane.b32.xlu0 %v3124, 32
        %v3230 = vpop.permute.xlu0 %3229
        %3231 = vrot.lane.b32.xlu0 %v3128, 32
        %v3232 = vpop.permute.xlu0 %3231
        %3233 = vrot.lane.b32.xlu0 %v3131, 32
        %v3234 = vpop.permute.xlu0 %3233
        %3235 = vrot.lane.b32.xlu0 %v3135, 32
        %v3236 = vpop.permute.xlu0 %3235
        %3237 = vrot.lane.b32.xlu0 %v3138, 32
        %v3238 = vpop.permute.xlu0 %3237
        %3239 = vrot.lane.b32.xlu0 %v3142, 32
        %v3240 = vpop.permute.xlu0 %3239
        %3241 = vrot.lane.b32.xlu0 %v3145, 32
        %v3242 = vpop.permute.xlu0 %3241
        %3243 = vrot.lane.b32.xlu0 %v3149, 32
        %v3244 = vpop.permute.xlu0 %3243
        %3245 = vrot.lane.b32.xlu0 %v3152, 32
        %v3246 = vpop.permute.xlu0 %3245
        %3247 = vrot.lane.b32.xlu0 %v3156, 32
        %v3248 = vpop.permute.xlu0 %3247
        %3249 = vrot.lane.b32.xlu0 %v3159, 32
        %v3250 = vpop.permute.xlu0 %3249
        %3251 = vrot.lane.b32.xlu0 %v3163, 32
        %v3252 = vpop.permute.xlu0 %3251
        %3253 = vrot.lane.b32.xlu0 %v3166, 32
        %v3254 = vpop.permute.xlu0 %3253
        %3255 = vrot.lane.b32.xlu0 %v3170, 32
        %v3256 = vpop.permute.xlu0 %3255
        %3257 = vrot.lane.b32.xlu0 %v3173, 32
        %v3258 = vpop.permute.xlu0 %3257
        %3259 = vrot.lane.b32.xlu0 %v3177, 32
        %v3260 = vpop.permute.xlu0 %3259
        %3261 = vrot.lane.b32.xlu0 %v3180, 32
        %v3262 = vpop.permute.xlu0 %3261
        %3263 = vrot.lane.b32.xlu0 %v3184, 32
        %v3264 = vpop.permute.xlu0 %3263
        %3265 = vrot.lane.b32.xlu0 %v3187, 32
        %v3266 = vpop.permute.xlu0 %3265
        %3267 = vrot.lane.b32.xlu0 %v3191, 32
        %v3268 = vpop.permute.xlu0 %3267
        %3269 = vrot.lane.b32.xlu0 %v3194, 32
        %v3270 = vpop.permute.xlu0 %3269
        %3271 = vrot.lane.b32.xlu0 %v3198, 32
        %v3272 = vpop.permute.xlu0 %3271
        %3273 = vrot.lane.b32.xlu0 %v3201, 32
        %v3274 = vpop.permute.xlu0 %3273
        %3275 = vrot.lane.b32.xlu0 %v3205, 32
        %v3276 = vpop.permute.xlu0 %3275
        %3277 = vrot.lane.b32.xlu0 %v3208, 32
        %v3278 = vpop.permute.xlu0 %3277
        %3279 = vrot.lane.b32.xlu0 %v3212, 32
        %v3280 = vpop.permute.xlu0 %3279
        %3281 = vrot.lane.b32.xlu0 %v3215, 32
        %v3282 = vpop.permute.xlu0 %3281
        %3283 = vrot.lane.b32.xlu0 %v3219, 32
        %v3284 = vpop.permute.xlu0 %3283
        %3285 = vrot.lane.b32.xlu0 %v3222, 32
        %v3286 = vpop.permute.xlu0 %3285
        %vm3319 = vcmask 290048
        %3320 = vst.msk [vmem:[#allocation2] sm:$0xf] %vm3319, %v3224
        %3321 = vst.msk [vmem:[#allocation2 + $0x4] sm:$0xf] %vm3319, %v3226
        %3322 = vst.msk [vmem:[#allocation2 + $0x8] sm:$0xf] %vm3319, %v3228
        %3323 = vst.msk [vmem:[#allocation2 + $0xc] sm:$0xf] %vm3319, %v3230
        %3324 = vst.msk [vmem:[#allocation2 + $0x10] sm:$0xf] %vm3319, %v3232
        %3325 = vst.msk [vmem:[#allocation2 + $0x14] sm:$0xf] %vm3319, %v3234
        %3326 = vst.msk [vmem:[#allocation2 + $0x18] sm:$0xf] %vm3319, %v3236
        %3327 = vst.msk [vmem:[#allocation2 + $0x1c] sm:$0xf] %vm3319, %v3238
        %3328 = vst.msk [vmem:[#allocation2 + $0x20] sm:$0xf] %vm3319, %v3240
        %3329 = vst.msk [vmem:[#allocation2 + $0x24] sm:$0xf] %vm3319, %v3242
        %3330 = vst.msk [vmem:[#allocation2 + $0x28] sm:$0xf] %vm3319, %v3244
        %3331 = vst.msk [vmem:[#allocation2 + $0x2c] sm:$0xf] %vm3319, %v3246
        %3332 = vst.msk [vmem:[#allocation2 + $0x30] sm:$0xf] %vm3319, %v3248
        %3333 = vst.msk [vmem:[#allocation2 + $0x34] sm:$0xf] %vm3319, %v3250
        %3334 = vst.msk [vmem:[#allocation2 + $0x38] sm:$0xf] %vm3319, %v3252
        %3335 = vst.msk [vmem:[#allocation2 + $0x3c] sm:$0xf] %vm3319, %v3254
        %3336 = vst.msk [vmem:[#allocation2 + $0x40] sm:$0xf] %vm3319, %v3256
        %3337 = vst.msk [vmem:[#allocation2 + $0x44] sm:$0xf] %vm3319, %v3258
        %3338 = vst.msk [vmem:[#allocation2 + $0x48] sm:$0xf] %vm3319, %v3260
        %3339 = vst.msk [vmem:[#allocation2 + $0x4c] sm:$0xf] %vm3319, %v3262
        %3340 = vst.msk [vmem:[#allocation2 + $0x50] sm:$0xf] %vm3319, %v3264
        %3341 = vst.msk [vmem:[#allocation2 + $0x54] sm:$0xf] %vm3319, %v3266
        %3342 = vst.msk [vmem:[#allocation2 + $0x58] sm:$0xf] %vm3319, %v3268
        %3343 = vst.msk [vmem:[#allocation2 + $0x5c] sm:$0xf] %vm3319, %v3270
        %3344 = vst.msk [vmem:[#allocation2 + $0x60] sm:$0xf] %vm3319, %v3272
        %3345 = vst.msk [vmem:[#allocation2 + $0x64] sm:$0xf] %vm3319, %v3274
        %3346 = vst.msk [vmem:[#allocation2 + $0x68] sm:$0xf] %vm3319, %v3276
        %3347 = vst.msk [vmem:[#allocation2 + $0x6c] sm:$0xf] %vm3319, %v3278
        %3348 = vst.msk [vmem:[#allocation2 + $0x70] sm:$0xf] %vm3319, %v3280
        %3349 = vst.msk [vmem:[#allocation2 + $0x74] sm:$0xf] %vm3319, %v3282
        %3350 = vst.msk [vmem:[#allocation2 + $0x78] sm:$0xf] %vm3319, %v3284
        %3351 = vst.msk [vmem:[#allocation2 + $0x7c] sm:$0xf] %vm3319, %v3286
        %v3352 = vld [vmem:[#allocation2] sm:$0xf]
        %v3353 = vld [vmem:[#allocation2 + $0x4] sm:$0xf]
        %v3354 = vld [vmem:[#allocation2 + $0x8] sm:$0xf]
        %v3355 = vld [vmem:[#allocation2 + $0xc] sm:$0xf]
        %v3356 = vld [vmem:[#allocation2 + $0x10] sm:$0xf]
        %v3357 = vld [vmem:[#allocation2 + $0x14] sm:$0xf]
        %v3358 = vld [vmem:[#allocation2 + $0x18] sm:$0xf]
        %v3359 = vld [vmem:[#allocation2 + $0x1c] sm:$0xf]
        %v3360 = vld [vmem:[#allocation2 + $0x20] sm:$0xf]
        %v3361 = vld [vmem:[#allocation2 + $0x24] sm:$0xf]
        %v3362 = vld [vmem:[#allocation2 + $0x28] sm:$0xf]
        %v3363 = vld [vmem:[#allocation2 + $0x2c] sm:$0xf]
        %v3364 = vld [vmem:[#allocation2 + $0x30] sm:$0xf]
        %v3365 = vld [vmem:[#allocation2 + $0x34] sm:$0xf]
        %v3366 = vld [vmem:[#allocation2 + $0x38] sm:$0xf]
        %v3367 = vld [vmem:[#allocation2 + $0x3c] sm:$0xf]
        %v3368 = vld [vmem:[#allocation2 + $0x40] sm:$0xf]
        %v3369 = vld [vmem:[#allocation2 + $0x44] sm:$0xf]
        %v3370 = vld [vmem:[#allocation2 + $0x48] sm:$0xf]
        %v3371 = vld [vmem:[#allocation2 + $0x4c] sm:$0xf]
        %v3372 = vld [vmem:[#allocation2 + $0x50] sm:$0xf]
        %v3373 = vld [vmem:[#allocation2 + $0x54] sm:$0xf]
        %v3374 = vld [vmem:[#allocation2 + $0x58] sm:$0xf]
        %v3375 = vld [vmem:[#allocation2 + $0x5c] sm:$0xf]
        %v3376 = vld [vmem:[#allocation2 + $0x60] sm:$0xf]
        %v3377 = vld [vmem:[#allocation2 + $0x64] sm:$0xf]
        %v3378 = vld [vmem:[#allocation2 + $0x68] sm:$0xf]
        %v3379 = vld [vmem:[#allocation2 + $0x6c] sm:$0xf]
        %v3380 = vld [vmem:[#allocation2 + $0x70] sm:$0xf]
        %v3381 = vld [vmem:[#allocation2 + $0x74] sm:$0xf]
        %v3382 = vld [vmem:[#allocation2 + $0x78] sm:$0xf]
        %v3383 = vld [vmem:[#allocation2 + $0x7c] sm:$0xf]
        %v3384 = vld [vmem:[%s1] sm:$0xf]
        %v3385 = vld [vmem:[%s1 + $0x4] sm:$0xf]
        %v3386 = vld [vmem:[%s1 + $0x8] sm:$0xf]
        %v3387 = vld [vmem:[%s1 + $0xc] sm:$0xf]
        %v3388 = vld [vmem:[%s1 + $0x10] sm:$0x3]
        %v3389 = vld [vmem:[%s2] sm:$0x1]
        %v3391 = vperm.slane %v3389, 0
        %v3425 = vunpack.c.l.b16 %v3352
        %v3426 = vunpack.c.l.b16 %v3353
        %v3427 = vunpack.c.l.b16 %v3354
        %v3428 = vunpack.c.l.b16 %v3355
        %v3429 = vunpack.c.l.b16 %v3356
        %v3430 = vunpack.c.l.b16 %v3357
        %v3431 = vunpack.c.l.b16 %v3358
        %v3432 = vunpack.c.l.b16 %v3359
        %v3433 = vunpack.c.l.b16 %v3360
        %v3434 = vunpack.c.l.b16 %v3361
        %v3435 = vunpack.c.l.b16 %v3362
        %v3436 = vunpack.c.l.b16 %v3363
        %v3437 = vunpack.c.l.b16 %v3364
        %v3438 = vunpack.c.l.b16 %v3365
        %v3439 = vunpack.c.l.b16 %v3366
        %v3440 = vunpack.c.l.b16 %v3367
        %v3441 = vunpack.c.l.b16 %v3368
        %v3442 = vunpack.c.l.b16 %v3369
        %v3443 = vunpack.c.l.b16 %v3370
        %v3444 = vunpack.c.l.b16 %v3371
        %v3445 = vunpack.c.l.b16 %v3372
        %v3446 = vunpack.c.l.b16 %v3373
        %v3447 = vunpack.c.l.b16 %v3374
        %v3448 = vunpack.c.l.b16 %v3375
        %v3449 = vunpack.c.l.b16 %v3376
        %v3450 = vunpack.c.l.b16 %v3377
        %v3451 = vunpack.c.l.b16 %v3378
        %v3452 = vunpack.c.l.b16 %v3379
        %v3453 = vunpack.c.l.b16 %v3380
        %v3454 = vunpack.c.l.b16 %v3381
        %v3455 = vunpack.c.l.b16 %v3382
        %v3456 = vunpack.c.l.b16 %v3383
        %v3457 = vpack.c.b16 %v3426, %v3425
        %v3458 = vpack.c.b16 %v3428, %v3427
        %v3459 = vpack.c.b16 %v3430, %v3429
        %v3460 = vpack.c.b16 %v3432, %v3431
        %v3461 = vpack.c.b16 %v3434, %v3433
        %v3462 = vpack.c.b16 %v3436, %v3435
        %v3463 = vpack.c.b16 %v3438, %v3437
        %v3464 = vpack.c.b16 %v3440, %v3439
        %v3465 = vpack.c.b16 %v3442, %v3441
        %v3466 = vpack.c.b16 %v3444, %v3443
        %v3467 = vpack.c.b16 %v3446, %v3445
        %v3468 = vpack.c.b16 %v3448, %v3447
        %v3469 = vpack.c.b16 %v3450, %v3449
        %v3470 = vpack.c.b16 %v3452, %v3451
        %v3471 = vpack.c.b16 %v3454, %v3453
        %v3472 = vpack.c.b16 %v3456, %v3455
        %v3478 = vunpack.c.l.b16 %v3384
        %v3479 = vunpack.c.l.b16 %v3385
        %v3480 = vunpack.c.l.b16 %v3386
        %v3481 = vunpack.c.l.b16 %v3387
        %v3482 = vunpack.c.l.b16 %v3388
        %v3483 = vpack.c.b16 %v3479, %v3478
        %v3484 = vpack.c.b16 %v3481, %v3480
        %v3485 = vpack.c.b16 %v3482, %v3482
        %vm3488 = vcmask 293888
        %v3490 = vsel %vm3488, %v3457, 0
        %v3493 = vsel %vm3488, %v3458, 0
        %v3496 = vsel %vm3488, %v3459, 0
        %v3499 = vsel %vm3488, %v3460, 0
        %v3502 = vsel %vm3488, %v3461, 0
        %v3505 = vsel %vm3488, %v3462, 0
        %v3508 = vsel %vm3488, %v3463, 0
        %v3511 = vsel %vm3488, %v3464, 0
        %v3514 = vsel %vm3488, %v3465, 0
        %v3517 = vsel %vm3488, %v3466, 0
        %v3520 = vsel %vm3488, %v3467, 0
        %v3523 = vsel %vm3488, %v3468, 0
        %v3526 = vsel %vm3488, %v3469, 0
        %v3529 = vsel %vm3488, %v3470, 0
        %v3532 = vsel %vm3488, %v3471, 0
        %v3535 = vsel %vm3488, %v3472, 0
        %vm3537 = vcmask 1041408
        %v3539 = vsel %vm3537, %v3485, 0
        %3541 = vmatpush.bf16.msra.mxu0 0
        %3542 = vmatpush.bf16.msra.mxu0 0
        %3543 = vmatpush.bf16.msra.mxu0 0
        %3544 = vmatpush.bf16.msra.mxu0 0
        %3545 = vmatpush.bf16.msra.mxu0 0
        %3546 = vmatpush.bf16.msra.mxu0 %v3539
        %3547 = vmatpush.bf16.msra.mxu0 %v3484
        %3548 = vmatpush.bf16.msra.mxu0 %v3483
        %3549 = vmatmul.bf16.gmra.mxu0 %v3490
        %v3550 = vpop.f32.mrf.mxu0
        %v3551 = vadd.f32 %v3391, %v3550
        %v3552 = vpop.f32.mrf.mxu0
        %v3553 = vadd.f32 %v3391, %v3552
        %3554 = vmatmul.bf16.gmra.mxu0 %v3493
        %v3555 = vpop.f32.mrf.mxu0
        %v3556 = vadd.f32 %v3391, %v3555
        %v3557 = vpop.f32.mrf.mxu0
        %v3558 = vadd.f32 %v3391, %v3557
        %3559 = vmatmul.bf16.gmra.mxu0 %v3496
        %v3560 = vpop.f32.mrf.mxu0
        %v3561 = vadd.f32 %v3391, %v3560
        %v3562 = vpop.f32.mrf.mxu0
        %v3563 = vadd.f32 %v3391, %v3562
        %3564 = vmatmul.bf16.gmra.mxu0 %v3499
        %v3565 = vpop.f32.mrf.mxu0
        %v3566 = vadd.f32 %v3391, %v3565
        %v3567 = vpop.f32.mrf.mxu0
        %v3568 = vadd.f32 %v3391, %v3567
        %3569 = vmatmul.bf16.gmra.mxu0 %v3502
        %v3570 = vpop.f32.mrf.mxu0
        %v3571 = vadd.f32 %v3391, %v3570
        %v3572 = vpop.f32.mrf.mxu0
        %v3573 = vadd.f32 %v3391, %v3572
        %3574 = vmatmul.bf16.gmra.mxu0 %v3505
        %v3575 = vpop.f32.mrf.mxu0
        %v3576 = vadd.f32 %v3391, %v3575
        %v3577 = vpop.f32.mrf.mxu0
        %v3578 = vadd.f32 %v3391, %v3577
        %3579 = vmatmul.bf16.gmra.mxu0 %v3508
        %v3580 = vpop.f32.mrf.mxu0
        %v3581 = vadd.f32 %v3391, %v3580
        %v3582 = vpop.f32.mrf.mxu0
        %v3583 = vadd.f32 %v3391, %v3582
        %3584 = vmatmul.bf16.gmra.mxu0 %v3511
        %v3585 = vpop.f32.mrf.mxu0
        %v3586 = vadd.f32 %v3391, %v3585
        %v3587 = vpop.f32.mrf.mxu0
        %v3588 = vadd.f32 %v3391, %v3587
        %3589 = vmatmul.bf16.gmra.mxu0 %v3514
        %v3590 = vpop.f32.mrf.mxu0
        %v3591 = vadd.f32 %v3391, %v3590
        %v3592 = vpop.f32.mrf.mxu0
        %v3593 = vadd.f32 %v3391, %v3592
        %3594 = vmatmul.bf16.gmra.mxu0 %v3517
        %v3595 = vpop.f32.mrf.mxu0
        %v3596 = vadd.f32 %v3391, %v3595
        %v3597 = vpop.f32.mrf.mxu0
        %v3598 = vadd.f32 %v3391, %v3597
        %3599 = vmatmul.bf16.gmra.mxu0 %v3520
        %v3600 = vpop.f32.mrf.mxu0
        %v3601 = vadd.f32 %v3391, %v3600
        %v3602 = vpop.f32.mrf.mxu0
        %v3603 = vadd.f32 %v3391, %v3602
        %3604 = vmatmul.bf16.gmra.mxu0 %v3523
        %v3605 = vpop.f32.mrf.mxu0
        %v3606 = vadd.f32 %v3391, %v3605
        %v3607 = vpop.f32.mrf.mxu0
        %v3608 = vadd.f32 %v3391, %v3607
        %3609 = vmatmul.bf16.gmra.mxu0 %v3526
        %v3610 = vpop.f32.mrf.mxu0
        %v3611 = vadd.f32 %v3391, %v3610
        %v3612 = vpop.f32.mrf.mxu0
        %v3613 = vadd.f32 %v3391, %v3612
        %3614 = vmatmul.bf16.gmra.mxu0 %v3529
        %v3615 = vpop.f32.mrf.mxu0
        %v3616 = vadd.f32 %v3391, %v3615
        %v3617 = vpop.f32.mrf.mxu0
        %v3618 = vadd.f32 %v3391, %v3617
        %3619 = vmatmul.bf16.gmra.mxu0 %v3532
        %v3620 = vpop.f32.mrf.mxu0
        %v3621 = vadd.f32 %v3391, %v3620
        %v3622 = vpop.f32.mrf.mxu0
        %v3623 = vadd.f32 %v3391, %v3622
        %3624 = vmatmul.bf16.gmra.mxu0 %v3535
        %v3625 = vpop.f32.mrf.mxu0
        %v3626 = vadd.f32 %v3391, %v3625
        %v3627 = vpop.f32.mrf.mxu0
        %v3628 = vadd.f32 %v3391, %v3627
        %3629 = vdwg.mxu0
        %v3630 = vmax.f32 %v3551, 0.0
        %v3631 = vmax.f32 %v3553, 0.0
        %v3632 = vmax.f32 %v3556, 0.0
        %v3633 = vmax.f32 %v3558, 0.0
        %v3634 = vmax.f32 %v3561, 0.0
        %v3635 = vmax.f32 %v3563, 0.0
        %v3636 = vmax.f32 %v3566, 0.0
        %v3637 = vmax.f32 %v3568, 0.0
        %v3638 = vmax.f32 %v3571, 0.0
        %v3639 = vmax.f32 %v3573, 0.0
        %v3640 = vmax.f32 %v3576, 0.0
        %v3641 = vmax.f32 %v3578, 0.0
        %v3642 = vmax.f32 %v3581, 0.0
        %v3643 = vmax.f32 %v3583, 0.0
        %v3644 = vmax.f32 %v3586, 0.0
        %v3645 = vmax.f32 %v3588, 0.0
        %v3646 = vmax.f32 %v3591, 0.0
        %v3647 = vmax.f32 %v3593, 0.0
        %v3648 = vmax.f32 %v3596, 0.0
        %v3649 = vmax.f32 %v3598, 0.0
        %v3650 = vmax.f32 %v3601, 0.0
        %v3651 = vmax.f32 %v3603, 0.0
        %v3652 = vmax.f32 %v3606, 0.0
        %v3653 = vmax.f32 %v3608, 0.0
        %v3654 = vmax.f32 %v3611, 0.0
        %v3655 = vmax.f32 %v3613, 0.0
        %v3656 = vmax.f32 %v3616, 0.0
        %v3657 = vmax.f32 %v3618, 0.0
        %v3658 = vmax.f32 %v3621, 0.0
        %v3659 = vmax.f32 %v3623, 0.0
        %v3660 = vmax.f32 %v3626, 0.0
        %v3661 = vmax.f32 %v3628, 0.0
        %3662 = vst [vmem:[%s187] sm:$0xff] %v3630
        %3663 = vst [vmem:[%s187 + $0x8] sm:$0xff] %v3631
        %3664 = vst [vmem:[%s187 + $0x10] sm:$0xff] %v3632
        %3665 = vst [vmem:[%s187 + $0x18] sm:$0xff] %v3633
        %3666 = vst [vmem:[%s187 + $0x20] sm:$0xff] %v3634
        %3667 = vst [vmem:[%s187 + $0x28] sm:$0xff] %v3635
        %3668 = vst [vmem:[%s187 + $0x30] sm:$0xff] %v3636
        %3669 = vst [vmem:[%s187 + $0x38] sm:$0xff] %v3637
        %3670 = vst [vmem:[%s187 + $0x40] sm:$0xff] %v3638
        %3671 = vst [vmem:[%s187 + $0x48] sm:$0xff] %v3639
        %3672 = vst [vmem:[%s187 + $0x50] sm:$0xff] %v3640
        %3673 = vst [vmem:[%s187 + $0x58] sm:$0xff] %v3641
        %3674 = vst [vmem:[%s187 + $0x60] sm:$0xff] %v3642
        %3675 = vst [vmem:[%s187 + $0x68] sm:$0xff] %v3643
        %3676 = vst [vmem:[%s187 + $0x70] sm:$0xff] %v3644
        %3677 = vst [vmem:[%s187 + $0x78] sm:$0xff] %v3645
        %3678 = vst [vmem:[%s187 + $0x80] sm:$0xff] %v3646
        %3679 = vst [vmem:[%s187 + $0x88] sm:$0xff] %v3647
        %3680 = vst [vmem:[%s187 + $0x90] sm:$0xff] %v3648
        %3681 = vst [vmem:[%s187 + $0x98] sm:$0xff] %v3649
        %3682 = vst [vmem:[%s187 + $0xa0] sm:$0xff] %v3650
        %3683 = vst [vmem:[%s187 + $0xa8] sm:$0xff] %v3651
        %3684 = vst [vmem:[%s187 + $0xb0] sm:$0xff] %v3652
        %3685 = vst [vmem:[%s187 + $0xb8] sm:$0xff] %v3653
        %3686 = vst [vmem:[%s187 + $0xc0] sm:$0xff] %v3654
        %3687 = vst [vmem:[%s187 + $0xc8] sm:$0xff] %v3655
        %3688 = vst [vmem:[%s187 + $0xd0] sm:$0xff] %v3656
        %3689 = vst [vmem:[%s187 + $0xd8] sm:$0xff] %v3657
        %3690 = vst [vmem:[%s187 + $0xe0] sm:$0xff] %v3658
        %3691 = vst [vmem:[%s187 + $0xe8] sm:$0xff] %v3659
        %3692 = vst [vmem:[%s187 + $0xf0] sm:$0xff] %v3660
        %3693 = vst [vmem:[%s187 + $0xf8] sm:$0xff] %v3661
        %s3694 = sand.u32 %s109, 1
        %s3695 = scalar_lea.sflag [#allocation4], %s3694
        %s3696 = sand.u32 %s109, 1
        %s3697 = smul.addr %s3696, 256
        %s3698 = scalar_lea.vmem [#allocation3], %s3697
        // Predicated region
        $region33: #{tpu_custom_call.1} parent=31 // pred_check
          %p3699 = pneg %p119
        $region34: #{tpu_custom_call.1} parent=31 // pred_check_branch
          %3701 = sbr.rel (%p3699) target = $region36
        $region35: #{tpu_custom_call.1} parent=31 // pred_region
          %s3702 = smul.u32 16, %s22
          %3704 = vsyncadd %s3695, 0
          %s3705 = smul.addr %s3702, 2
          %s3706 = smul.addr %s21, 32
          %s3707 = sadd.s32 %s3705, %s3706
          %s3708 = smul.addr %s3707, 8
          %s3709 = scalar_lea.hbm %s3, %s3708
          %s3710 = sshll.u32 %s3698, 4
          %s3711 = int_to_ptr.vmem [resolvable:$true] %s3710
          %s3712 = sshll.u32 %s3709, 4
          %s3713 = int_to_ptr.hbm [resolvable:$true] %s3712
          %3718 = dma.vmem_to_hbm [thread:$0]  %s3711, 4096, %s3713, %s3695, 128, 128, 8
        $region36: #{tpu_custom_call.1} parent=31 // pred_fallthru
          _
      $region32: #{tpu_custom_call.1} parent=5 // pred_fallthru
        _
      %p3719 = scmp.le.s32.totalorder 2, %s12
      // Predicated region
      $region37: #{tpu_custom_call.1} parent=5 // pred_check
        %p3720 = pneg %p3719
      $region38: #{tpu_custom_call.1} parent=5 // pred_check_branch
        %3722 = sbr.rel (%p3720) target = $region40
      $region39: #{tpu_custom_call.1} parent=5 // pred_region
        %s3723 = ssub.s32 %s12, 2
        // Predicated region
        $region41: #{tpu_custom_call.1} parent=39 // pred_check
          %p3724 = pneg %p125
        $region42: #{tpu_custom_call.1} parent=39 // pred_check_branch
          %3726 = sbr.rel (%p3724) target = $region44
        $region43: #{tpu_custom_call.1} parent=39 // pred_region
          %s3727 = sand.u32 %s110, 1
          %s3728 = scalar_lea.sflag [#allocation4], %s3727
          %s3729 = sand.u32 %s110, 1
          %s3730 = smul.addr %s3729, 256
          %s3731 = scalar_lea.vmem [#allocation3], %s3730
          %3733 = dma.done %s3728, 4096
        $region44: #{tpu_custom_call.1} parent=39 // pred_fallthru
          _
      $region40: #{tpu_custom_call.1} parent=5 // pred_fallthru
        _
    $region6: #{tpu_custom_call.1} parent=1 // loop_footer
      %s16 = sadd.s32 1, %s12
    $region7: #{tpu_custom_call.1} parent=1 // loop_footer_branch
      %11 = sbr.rel target = $region3
    $region8: #{tpu_custom_call.1} parent=1 // loop_exit
      _
    %3734 = vsyncpa [#allocation4], 1
    %s3735 = scalar_lea.sflag [#allocation4], 1
    %3736 = vsyncpa %s3735, 1

</llo_original>
